<compile_context>
chip_gen: v7x
topology: tpu7x:2x2x1
jax: 0.10.0
libtpu: 0.0.40
codegen_flags: <defaults>
</compile_context>

<pallas_src>
import functools
import math

import jax
import jax.numpy as jnp
from jax.experimental import pallas as pl
from jax.experimental.pallas import tpu as pltpu

# ----------------------------- config (small) --------------------------------
VOCAB = 100
HIDDEN = 32
NUM_HEADS = 4
HEAD_DIM = HIDDEN // NUM_HEADS
NUM_LAYERS = 2
INTERMEDIATE = 64
MAX_POS = 16
TYPE_VOCAB = 2
NUM_CLASSES = 2
LN_EPS = 1e-12
_SQRT_2_OVER_PI = 0.7978845608028654


# ------------------------------ kernel helpers --------------------------------
def _layernorm(x, g, b):
    """Row-wise LayerNorm over the last (lane) dim. x:(M,H), g,b:(1,H). f32 math."""
    mu = jnp.mean(x, axis=-1, keepdims=True)
    xc = x - mu
    var = jnp.mean(xc * xc, axis=-1, keepdims=True)
    return xc * jax.lax.rsqrt(var + LN_EPS) * g + b


def _gelu(x):
    # TODO(synk): HF BERT uses exact erf-GELU; tanh approximation used here.
    return 0.5 * x * (1.0 + jnp.tanh(_SQRT_2_OVER_PI * (x + 0.044715 * x * x * x)))


# ------------------------------ fused encoder kernel --------------------------
def _bert_encoder_kernel(
    # inputs
    x_emb_ref, mask_ref, embg_ref, embb_ref,
    wqkv_ref, bqkv_ref, wao_ref, bao_ref, ln1g_ref, ln1b_ref,
    wff1_ref, bff1_ref, wff2_ref, bff2_ref, ln2g_ref, ln2b_ref,
    # outputs
    probs_ref, hidden_ref,
    *, batch, seq,
):
    l = pl.program_id(0)

    # --- first grid step only: embedding LayerNorm seeds the VMEM-resident state.
    @pl.when(l == 0)
    def _():
        hidden_ref[...] = _layernorm(x_emb_ref[...], embg_ref[...], embb_ref[...])

    x = hidden_ref[...]                     # (BS, H) f32, VMEM-resident across layers
    key_bias = mask_ref[...]                # (B, S) additive HF-style key mask (0 / -1e9)

    wqkv = wqkv_ref[0]                      # (3*NH*D, H) bf16, 1/sqrt(D) folded into Q
    bqkv = bqkv_ref[0]                      # (3*NH*D, 1) f32
    wao = wao_ref[0]                        # (H, H) bf16
    wff1 = wff1_ref[0]                      # (H, I) bf16
    wff2 = wff2_ref[0]                      # (I, H) bf16

    # ---------------- self-attention, per batch (B=2, unrolled) ----------------
    attn_rows = []
    for b in range(batch):
        # Aligned row-tile slice of the hidden state (no lane slicing).
        xb = x[b * seq:(b + 1) * seq, :].astype(jnp.bfloat16)          # (S, H)

        # One packed QKV projection, produced transposed: rows = (qkv, head, dim).
        qkv_t = jax.lax.dot_general(
            wqkv, xb, (((1,), (1,)), ((), ())),
            preferred_element_type=jnp.float32) + bqkv                  # (3*NH*D, S)
        qkv_t = qkv_t.reshape(3 * NUM_HEADS, HEAD_DIM, seq)             # (3NH, D, S) free

        # Per-head scores via leading-axis views (free) + tiny 2-D matmuls.
        scores = []
        for h in range(NUM_HEADS):
            q_t = qkv_t[h]                                              # (D, S)
            k_t = qkv_t[NUM_HEADS + h]                                  # (D, S)
            scores.append(jax.lax.dot_general(                          # q^T k -> (Sq, Sk)
                q_t, k_t, (((0,), (0,)), ((), ())),
                preferred_element_type=jnp.float32))
        s = jnp.stack(scores, axis=0)                                   # (NH, S, S)
        s = s + key_bias[b:b + 1, :][None]                              # (1, 1, S) key mask
        s = s - jnp.max(s, axis=-1, keepdims=True)
        e = jnp.exp(s)
        p = e / jnp.sum(e, axis=-1, keepdims=True)                      # exact softmax
        # attention-prob dropout (p=0.1) is identity in eval mode.
        probs_ref[0, b] = p                                             # one (NH,S,S) store

        # Head-batched P @ V (contracts the key axis; output in transposed form).
        v_t = qkv_t[2 * NUM_HEADS:]                                     # (NH, D, S)
        ctx_t = jnp.einsum("ndk,nqk->ndq", v_t, p,
                           preferred_element_type=jnp.float32)          # (NH, D, S)
        ctx = ctx_t.reshape(HIDDEN, seq).astype(jnp.bfloat16)           # (H, S) free reshape

        # Single fused output projection (K = HIDDEN), not per-head accumulation.
        attn_rows.append(jax.lax.dot_general(
            ctx, wao, (((0,), (0,)), ((), ())),
            preferred_element_type=jnp.float32))                        # (S, H)

    attn = jnp.concatenate(attn_rows, axis=0) + bao_ref[0]              # (BS, H)
    # hidden dropout (p=0.1) is identity in eval mode.
    x = _layernorm(x + attn, ln1g_ref[0], ln1b_ref[0])                  # fused residual+LN

    # ---------------- fused FFN: (BS, I) activation never leaves VMEM ----------
    h1 = jnp.dot(x.astype(jnp.bfloat16), wff1,
                 preferred_element_type=jnp.float32) + bff1_ref[0]
    h1 = _gelu(h1)
    ff = jnp.dot(h1.astype(jnp.bfloat16), wff2,
                 preferred_element_type=jnp.float32) + bff2_ref[0]
    hidden_ref[...] = _layernorm(x + ff, ln2g_ref[0], ln2b_ref[0])      # fused residual+LN


# ------------------------------ wrapper ---------------------------------------
@jax.jit
def bert_for_text_classification(params, input_ids, attention_mask, token_type_ids):
    B, S = input_ids.shape
    BS = B * S
    H, L, I = HIDDEN, NUM_LAYERS, INTERMEDIATE
    NH, D = NUM_HEADS, HEAD_DIM

    # Embedding table gathers stay in XLA (no tiled-DMA win at this size).
    pos_ids = jnp.arange(S)
    x_emb = (params["word_emb"][input_ids]
             + params["pos_emb"][pos_ids][None, :, :]
             + params["type_emb"][token_type_ids]).reshape(BS, H).astype(jnp.float32)
    # embedding dropout (p=0.1) is identity in eval mode

    # HF-style additive key mask per batch (no dense (BS,BS) matrix).
    key_bias = (1.0 - attention_mask.astype(jnp.float32)) * -1e9        # (B, S)

    # ---- weight packing for the kernel (XLA-side, once per call) --------------
    scale = 1.0 / math.sqrt(D)
    qkv_scale = jnp.array([scale, 1.0, 1.0], jnp.float32)                # fold into Q
    wqkv = params["wqkv"].reshape(L, H, 3, NH, D) * qkv_scale[None, None, :, None, None]
    wqkv_k = jnp.transpose(wqkv, (0, 2, 3, 4, 1)).reshape(L, 3 * NH * D, H)
    bqkv_k = (params["bqkv"].reshape(L, 3, NH, D)
              * qkv_scale[None, :, None, None]).reshape(L, 3 * NH * D, 1)

    bf16 = jnp.bfloat16
    wqkv_k = wqkv_k.astype(bf16)                                         # bf16 weight streaming
    wao_k = params["wao"].astype(bf16)
    wff1_k = params["wff1"].astype(bf16)
    wff2_k = params["wff2"].astype(bf16)

    emb_g = params["emb_ln_g"].reshape(1, H)
    emb_b = params["emb_ln_b"].reshape(1, H)
    bao_k = params["bao"].reshape(L, 1, H)
    ln1g_k = params["ln1_g"].reshape(L, 1, H)
    ln1b_k = params["ln1_b"].reshape(L, 1, H)
    bff1_k = params["bff1"].reshape(L, 1, I)
    bff2_k = params["bff2"].reshape(L, 1, H)
    ln2g_k = params["ln2_g"].reshape(L, 1, H)
    ln2b_k = params["ln2_b"].reshape(L, 1, H)

    kernel = functools.partial(_bert_encoder_kernel, batch=B, seq=S)

    grid_spec = pltpu.PrefetchScalarGridSpec(
        num_scalar_prefetch=0,
        grid=(L,),
        in_specs=[
            pl.BlockSpec((BS, H), lambda l: (0, 0)),                       # x_emb
            pl.BlockSpec((B, S), lambda l: (0, 0)),                        # key mask
            pl.BlockSpec((1, H), lambda l: (0, 0)),                        # emb_ln_g
            pl.BlockSpec((1, H), lambda l: (0, 0)),                        # emb_ln_b
            pl.BlockSpec((1, 3 * NH * D, H), lambda l: (l, 0, 0)),         # wqkv (bf16)
            pl.BlockSpec((1, 3 * NH * D, 1), lambda l: (l, 0, 0)),         # bqkv
            pl.BlockSpec((1, H, H), lambda l: (l, 0, 0)),                  # wao (bf16)
            pl.BlockSpec((1, 1, H), lambda l: (l, 0, 0)),                  # bao
            pl.BlockSpec((1, 1, H), lambda l: (l, 0, 0)),                  # ln1_g
            pl.BlockSpec((1, 1, H), lambda l: (l, 0, 0)),                  # ln1_b
            pl.BlockSpec((1, H, I), lambda l: (l, 0, 0)),                  # wff1 (bf16)
            pl.BlockSpec((1, 1, I), lambda l: (l, 0, 0)),                  # bff1
            pl.BlockSpec((1, I, H), lambda l: (l, 0, 0)),                  # wff2 (bf16)
            pl.BlockSpec((1, 1, H), lambda l: (l, 0, 0)),                  # bff2
            pl.BlockSpec((1, 1, H), lambda l: (l, 0, 0)),                  # ln2_g
            pl.BlockSpec((1, 1, H), lambda l: (l, 0, 0)),                  # ln2_b
        ],
        out_specs=(
            pl.BlockSpec((1, B, NH, S, S), lambda l: (l, 0, 0, 0, 0)),     # attn probs
            pl.BlockSpec((BS, H), lambda l: (0, 0)),                       # final hidden state
        ),
    )

    probs, hidden = pl.pallas_call(
        kernel,
        grid_spec=grid_spec,
        out_shape=(
            jax.ShapeDtypeStruct((L, B, NH, S, S), jnp.float32),
            jax.ShapeDtypeStruct((BS, H), jnp.float32),
        ),
        # layer axis carries state through the resident hidden block -> sequential
        compiler_params=pltpu.CompilerParams(dimension_semantics=("arbitrary",)),
    )(x_emb, key_bias, emb_g, emb_b,
      wqkv_k, bqkv_k, wao_k, bao_k, ln1g_k, ln1b_k,
      wff1_k, bff1_k, wff2_k, bff2_k, ln2g_k, ln2b_k)

    # CLS-token classifier in XLA (tiny (H, 2) matmul; dropout identity in eval).
    cls_hidden = hidden.reshape(B, S, H)[:, 0, :]
    logits = cls_hidden @ params["cls_w"] + params["cls_b"]
    attentions = tuple(probs[l] for l in range(L))                        # each (B, NH, S, S)
    return logits, attentions


# ------------------------------ params ----------------------------------------
def init_params(key):
    def normal(k, shape):
        return (0.02 * jax.random.normal(k, shape)).astype(jnp.float32)

    ks = iter(jax.random.split(key, 12))
    H, L, I = HIDDEN, NUM_LAYERS, INTERMEDIATE
    # NOTE: weights stored as (in, out); torch.nn.Linear stores (out, in).
    #       wqkv columns are packed [Wq | Wk | Wv], head-major within each block.
    return {
        "word_emb": normal(next(ks), (VOCAB, H)),
        "pos_emb": normal(next(ks), (MAX_POS, H)),
        "type_emb": normal(next(ks), (TYPE_VOCAB, H)),
        "emb_ln_g": jnp.ones((H,), jnp.float32),
        "emb_ln_b": jnp.zeros((H,), jnp.float32),
        "wqkv": normal(next(ks), (L, H, 3 * H)),
        "bqkv": jnp.zeros((L, 3 * H), jnp.float32),
        "wao": normal(next(ks), (L, H, H)),
        "bao": jnp.zeros((L, H), jnp.float32),
        "ln1_g": jnp.ones((L, H), jnp.float32),
        "ln1_b": jnp.zeros((L, H), jnp.float32),
        "wff1": normal(next(ks), (L, H, I)),
        "bff1": jnp.zeros((L, I), jnp.float32),
        "wff2": normal(next(ks), (L, I, H)),
        "bff2": jnp.zeros((L, H), jnp.float32),
        "ln2_g": jnp.ones((L, H), jnp.float32),
        "ln2_b": jnp.zeros((L, H), jnp.float32),
        "cls_w": normal(next(ks), (H, NUM_CLASSES)),
        "cls_b": jnp.zeros((NUM_CLASSES,), jnp.float32),
    }


# ------------------------------ pure-JAX reference -----------------------------
def _reference_forward(params, input_ids, attention_mask, token_type_ids):
    B, S = input_ids.shape
    x = (params["word_emb"][input_ids]
         + params["pos_emb"][jnp.arange(S)][None]
         + params["type_emb"][token_type_ids])

    def ln(t, g, b):
        mu = t.mean(-1, keepdims=True)
        v = ((t - mu) ** 2).mean(-1, keepdims=True)
        return (t - mu) * jax.lax.rsqrt(v + LN_EPS) * g + b

    x = ln(x, params["emb_ln_g"], params["emb_ln_b"])
    ext = (1.0 - attention_mask.astype(jnp.float32)) * -1e9
    atts = []
    for l in range(NUM_LAYERS):
        qkv = x @ params["wqkv"][l] + params["bqkv"][l]
        q, k, v = jnp.split(qkv, 3, axis=-1)

        def heads(t):
            return t.reshape(B, S, NUM_HEADS, HEAD_DIM).transpose(0, 2, 1, 3)

        qh, kh, vh = heads(q), heads(k), heads(v)
        s = jnp.einsum("bhqd,bhkd->bhqk", qh, kh) / math.sqrt(HEAD_DIM)
        s = s + ext[:, None, None, :]
        p = jax.nn.softmax(s, axis=-1)
        atts.append(p)
        ctx = (jnp.einsum("bhqk,bhkd->bhqd", p, vh)
               .transpose(0, 2, 1, 3).reshape(B, S, HIDDEN))
        attn = ctx @ params["wao"][l] + params["bao"][l]
        x = ln(x + attn, params["ln1_g"][l], params["ln1_b"][l])
        h1 = x @ params["wff1"][l] + params["bff1"][l]
        h1 = 0.5 * h1 * (1.0 + jnp.tanh(_SQRT_2_OVER_PI * (h1 + 0.044715 * h1 ** 3)))
        ff = h1 @ params["wff2"][l] + params["bff2"][l]
        x = ln(x + ff, params["ln2_g"][l], params["ln2_b"][l])
    logits = x[:, 0, :] @ params["cls_w"] + params["cls_b"]
    return logits, atts


# ------------------------------ main -------------------------------------------
if __name__ == "__main__":
    B, S = 2, 8
    key = jax.random.PRNGKey(0)
    k_param, k_ids = jax.random.split(key)

    params = init_params(k_param)
    input_ids = jax.random.randint(k_ids, (B, S), 0, VOCAB, dtype=jnp.int32)
    attention_mask = jnp.array([[1, 1, 1, 1, 1, 1, 1, 1],
                                [1, 1, 1, 1, 1, 0, 0, 0]], dtype=jnp.int32)
    token_type_ids = jnp.zeros((B, S), dtype=jnp.int32)

    logits, attentions = bert_for_text_classification(
        params, input_ids, attention_mask, token_type_ids)
    jax.block_until_ready(logits)
    jax.block_until_ready(attentions)

    assert logits.shape == (B, NUM_CLASSES)
    assert len(attentions) == NUM_LAYERS
    assert attentions[0].shape == (B, NUM_HEADS, S, S)
    assert bool(jnp.all(jnp.isfinite(logits)))
    # masked key positions of batch 1 must get (near-)zero attention probability
    assert float(jnp.max(attentions[0][1, :, :, 5:])) < 1e-6

    # correctness check vs. a pure-JAX f32 reference (tol accounts for bf16 weights)
    ref_logits, ref_atts = _reference_forward(
        params, input_ids, attention_mask, token_type_ids)
    assert bool(jnp.allclose(logits, ref_logits, atol=1e-2, rtol=1e-2))
    for a, ra in zip(attentions, ref_atts):
        assert bool(jnp.allclose(a, ra, atol=1e-2, rtol=1e-2))

    print("KERNEL_OK")
</pallas_src>

<mosaic_0001>
module attributes {stable_mosaic.version = 11 : i64} {
  func.func @_bert_encoder_kernel(%arg0: i32, %arg1: memref<16x32xf32, #tpu.memory_space<vmem>>, %arg2: memref<2x8xf32, #tpu.memory_space<vmem>>, %arg3: memref<1x32xf32, #tpu.memory_space<vmem>>, %arg4: memref<1x32xf32, #tpu.memory_space<vmem>>, %arg5: memref<1x96x32xbf16, #tpu.memory_space<vmem>>, %arg6: memref<1x96x1xf32, #tpu.memory_space<vmem>>, %arg7: memref<1x32x32xbf16, #tpu.memory_space<vmem>>, %arg8: memref<1x1x32xf32, #tpu.memory_space<vmem>>, %arg9: memref<1x1x32xf32, #tpu.memory_space<vmem>>, %arg10: memref<1x1x32xf32, #tpu.memory_space<vmem>>, %arg11: memref<1x32x64xbf16, #tpu.memory_space<vmem>>, %arg12: memref<1x1x64xf32, #tpu.memory_space<vmem>>, %arg13: memref<1x64x32xbf16, #tpu.memory_space<vmem>>, %arg14: memref<1x1x32xf32, #tpu.memory_space<vmem>>, %arg15: memref<1x1x32xf32, #tpu.memory_space<vmem>>, %arg16: memref<1x1x32xf32, #tpu.memory_space<vmem>>, %arg17: memref<1x2x4x8x8xf32, #tpu.memory_space<vmem>>, %arg18: memref<16x32xf32, #tpu.memory_space<vmem>>) attributes {dimension_semantics = [#tpu.dimension_semantics<arbitrary>], iteration_bounds = array<i64: 2>, scalar_prefetch = 0 : i64, scratch_operands = 0 : i64, tpu.core_type = #tpu.core_type<tc>, window_params = [{pipeline_mode = #tpu.pipeline_mode<synchronous>, transform_indices = @transform_0, window_bounds = array<i64: 16, 32>}, {pipeline_mode = #tpu.pipeline_mode<synchronous>, transform_indices = @transform_1, window_bounds = array<i64: 2, 8>}, {pipeline_mode = #tpu.pipeline_mode<synchronous>, transform_indices = @transform_2, window_bounds = array<i64: 1, 32>}, {pipeline_mode = #tpu.pipeline_mode<synchronous>, transform_indices = @transform_3, window_bounds = array<i64: 1, 32>}, {transform_indices = @transform_4, window_bounds = array<i64: 1, 96, 32>}, {transform_indices = @transform_5, window_bounds = array<i64: 1, 96, 1>}, {transform_indices = @transform_6, window_bounds = array<i64: 1, 32, 32>}, {transform_indices = @transform_7, window_bounds = array<i64: 1, 1, 32>}, {transform_indices = @transform_8, window_bounds = array<i64: 1, 1, 32>}, {transform_indices = @transform_9, window_bounds = array<i64: 1, 1, 32>}, {transform_indices = @transform_10, window_bounds = array<i64: 1, 32, 64>}, {transform_indices = @transform_11, window_bounds = array<i64: 1, 1, 64>}, {transform_indices = @transform_12, window_bounds = array<i64: 1, 64, 32>}, {transform_indices = @transform_13, window_bounds = array<i64: 1, 1, 32>}, {transform_indices = @transform_14, window_bounds = array<i64: 1, 1, 32>}, {transform_indices = @transform_15, window_bounds = array<i64: 1, 1, 32>}, {transform_indices = @transform_16, window_bounds = array<i64: 1, 2, 4, 8, 8>}, {pipeline_mode = #tpu.pipeline_mode<synchronous>, transform_indices = @transform_17, window_bounds = array<i64: 16, 32>}]} {
    %c0_i32 = arith.constant 0 : i32
    %0 = arith.cmpi eq, %arg0, %c0_i32 : i32
    %1 = arith.extui %0 : i1 to i32
    %c0_i32_0 = arith.constant 0 : i32
    %2 = arith.cmpi ne, %1, %c0_i32_0 : i32
    scf.if %2 {
      %c0_84 = arith.constant 0 : index
      %c0_85 = arith.constant 0 : index
      %200 = vector.load %arg1[%c0_84, %c0_85] : memref<16x32xf32, #tpu.memory_space<vmem>>, vector<16x32xf32>
      %c0_86 = arith.constant 0 : index
      %c0_87 = arith.constant 0 : index
      %201 = vector.load %arg3[%c0_86, %c0_87] : memref<1x32xf32, #tpu.memory_space<vmem>>, vector<1x32xf32>
      %c0_88 = arith.constant 0 : index
      %c0_89 = arith.constant 0 : index
      %202 = vector.load %arg4[%c0_88, %c0_89] : memref<1x32xf32, #tpu.memory_space<vmem>>, vector<1x32xf32>
      %cst_90 = arith.constant dense<0.000000e+00> : vector<16xf32>
      %203 = vector.multi_reduction <add>, %200, %cst_90 [1] : vector<16x32xf32> to vector<16xf32>
      %204 = vector.shape_cast %203 : vector<16xf32> to vector<16x1xf32>
      %cst_91 = arith.constant 3.200000e+01 : f32
      %205 = vector.broadcast %cst_91 : f32 to vector<16x1xf32>
      %206 = arith.divf %204, %205 : vector<16x1xf32>
      %207 = vector.broadcast %206 : vector<16x1xf32> to vector<16x32xf32>
      %208 = arith.subf %200, %207 : vector<16x32xf32>
      %209 = arith.mulf %208, %208 : vector<16x32xf32>
      %cst_92 = arith.constant dense<0.000000e+00> : vector<16xf32>
      %210 = vector.multi_reduction <add>, %209, %cst_92 [1] : vector<16x32xf32> to vector<16xf32>
      %211 = vector.shape_cast %210 : vector<16xf32> to vector<16x1xf32>
      %cst_93 = arith.constant 3.200000e+01 : f32
      %212 = vector.broadcast %cst_93 : f32 to vector<16x1xf32>
      %213 = arith.divf %211, %212 : vector<16x1xf32>
      %cst_94 = arith.constant 9.99999996E-13 : f32
      %214 = vector.broadcast %cst_94 : f32 to vector<16x1xf32>
      %215 = arith.addf %213, %214 : vector<16x1xf32>
      %216 = math.rsqrt %215 : vector<16x1xf32>
      %217 = vector.broadcast %216 : vector<16x1xf32> to vector<16x32xf32>
      %218 = arith.mulf %208, %217 : vector<16x32xf32>
      %219 = vector.broadcast %201 : vector<1x32xf32> to vector<16x32xf32>
      %220 = arith.mulf %218, %219 : vector<16x32xf32>
      %221 = vector.broadcast %202 : vector<1x32xf32> to vector<16x32xf32>
      %222 = arith.addf %220, %221 : vector<16x32xf32>
      %c0_95 = arith.constant 0 : index
      %c0_96 = arith.constant 0 : index
      %223 = vector.load %arg18[%c0_95, %c0_96] : memref<16x32xf32, #tpu.memory_space<vmem>>, vector<16x32xf32>
      tpu.vector_store %arg18[%c0_95, %c0_96], %222 {strides = array<i32>} : memref<16x32xf32, #tpu.memory_space<vmem>>, vector<16x32xf32>,
    } else {
    }
    %c0 = arith.constant 0 : index
    %c0_1 = arith.constant 0 : index
    %3 = vector.load %arg18[%c0, %c0_1] : memref<16x32xf32, #tpu.memory_space<vmem>>, vector<16x32xf32>
    %c0_2 = arith.constant 0 : index
    %c0_3 = arith.constant 0 : index
    %4 = vector.load %arg2[%c0_2, %c0_3] : memref<2x8xf32, #tpu.memory_space<vmem>>, vector<2x8xf32>
    %c0_4 = arith.constant 0 : index
    %c0_5 = arith.constant 0 : index
    %c0_6 = arith.constant 0 : index
    %5 = vector.load %arg5[%c0_4, %c0_5, %c0_6] : memref<1x96x32xbf16, #tpu.memory_space<vmem>>, vector<1x96x32xbf16>
    %6 = vector.shape_cast %5 : vector<1x96x32xbf16> to vector<96x32xbf16>
    %c0_7 = arith.constant 0 : index
    %c0_8 = arith.constant 0 : index
    %c0_9 = arith.constant 0 : index
    %7 = vector.load %arg6[%c0_7, %c0_8, %c0_9] : memref<1x96x1xf32, #tpu.memory_space<vmem>>, vector<1x96x1xf32>
    %8 = vector.shape_cast %7 : vector<1x96x1xf32> to vector<96x1xf32>
    %c0_10 = arith.constant 0 : index
    %c0_11 = arith.constant 0 : index
    %c0_12 = arith.constant 0 : index
    %9 = vector.load %arg7[%c0_10, %c0_11, %c0_12] : memref<1x32x32xbf16, #tpu.memory_space<vmem>>, vector<1x32x32xbf16>
    %10 = vector.shape_cast %9 : vector<1x32x32xbf16> to vector<32x32xbf16>
    %c0_13 = arith.constant 0 : index
    %c0_14 = arith.constant 0 : index
    %c0_15 = arith.constant 0 : index
    %11 = vector.load %arg11[%c0_13, %c0_14, %c0_15] : memref<1x32x64xbf16, #tpu.memory_space<vmem>>, vector<1x32x64xbf16>
    %12 = vector.shape_cast %11 : vector<1x32x64xbf16> to vector<32x64xbf16>
    %c0_16 = arith.constant 0 : index
    %c0_17 = arith.constant 0 : index
    %c0_18 = arith.constant 0 : index
    %13 = vector.load %arg13[%c0_16, %c0_17, %c0_18] : memref<1x64x32xbf16, #tpu.memory_space<vmem>>, vector<1x64x32xbf16>
    %14 = vector.shape_cast %13 : vector<1x64x32xbf16> to vector<64x32xbf16>
    %15 = vector.extract_strided_slice %3 {offsets = [0, 0], sizes = [8, 32], strides = [1, 1]} : vector<16x32xf32> to vector<8x32xf32>
    %16 = arith.truncf %15 : vector<8x32xf32> to vector<8x32xbf16>
    %cst = arith.constant dense<0.000000e+00> : vector<96x8xf32>
    %17 = tpu.matmul %6, %16, %cst {dimension_numbers = #tpu.dot_dimension_numbers<[1], [1], [0], [0], [0, 0, 1, 0], [], []>} : vector<96x32xbf16>, vector<8x32xbf16>, vector<96x8xf32> -> vector<96x8xf32>
    %18 = vector.broadcast %8 : vector<96x1xf32> to vector<96x8xf32>
    %19 = arith.addf %17, %18 : vector<96x8xf32>
    %20 = vector.shape_cast %19 : vector<96x8xf32> to vector<12x8x8xf32>
    %21 = vector.extract_strided_slice %20 {offsets = [0, 0, 0], sizes = [1, 8, 8], strides = [1, 1, 1]} : vector<12x8x8xf32> to vector<1x8x8xf32>
    %22 = vector.shape_cast %21 : vector<1x8x8xf32> to vector<8x8xf32>
    %23 = vector.extract_strided_slice %20 {offsets = [4, 0, 0], sizes = [1, 8, 8], strides = [1, 1, 1]} : vector<12x8x8xf32> to vector<1x8x8xf32>
    %24 = vector.shape_cast %23 : vector<1x8x8xf32> to vector<8x8xf32>
    %cst_19 = arith.constant dense<0.000000e+00> : vector<8x8xf32>
    %25 = tpu.matmul %22, %24, %cst_19 {dimension_numbers = #tpu.dot_dimension_numbers<[0], [0], [1], [1], [0, 1, 1, 1], [], []>} : vector<8x8xf32>, vector<8x8xf32>, vector<8x8xf32> -> vector<8x8xf32>
    %26 = vector.extract_strided_slice %20 {offsets = [1, 0, 0], sizes = [1, 8, 8], strides = [1, 1, 1]} : vector<12x8x8xf32> to vector<1x8x8xf32>
    %27 = vector.shape_cast %26 : vector<1x8x8xf32> to vector<8x8xf32>
    %28 = vector.extract_strided_slice %20 {offsets = [5, 0, 0], sizes = [1, 8, 8], strides = [1, 1, 1]} : vector<12x8x8xf32> to vector<1x8x8xf32>
    %29 = vector.shape_cast %28 : vector<1x8x8xf32> to vector<8x8xf32>
    %cst_20 = arith.constant dense<0.000000e+00> : vector<8x8xf32>
    %30 = tpu.matmul %27, %29, %cst_20 {dimension_numbers = #tpu.dot_dimension_numbers<[0], [0], [1], [1], [0, 1, 1, 1], [], []>} : vector<8x8xf32>, vector<8x8xf32>, vector<8x8xf32> -> vector<8x8xf32>
    %31 = vector.extract_strided_slice %20 {offsets = [2, 0, 0], sizes = [1, 8, 8], strides = [1, 1, 1]} : vector<12x8x8xf32> to vector<1x8x8xf32>
    %32 = vector.shape_cast %31 : vector<1x8x8xf32> to vector<8x8xf32>
    %33 = vector.extract_strided_slice %20 {offsets = [6, 0, 0], sizes = [1, 8, 8], strides = [1, 1, 1]} : vector<12x8x8xf32> to vector<1x8x8xf32>
    %34 = vector.shape_cast %33 : vector<1x8x8xf32> to vector<8x8xf32>
    %cst_21 = arith.constant dense<0.000000e+00> : vector<8x8xf32>
    %35 = tpu.matmul %32, %34, %cst_21 {dimension_numbers = #tpu.dot_dimension_numbers<[0], [0], [1], [1], [0, 1, 1, 1], [], []>} : vector<8x8xf32>, vector<8x8xf32>, vector<8x8xf32> -> vector<8x8xf32>
    %36 = vector.extract_strided_slice %20 {offsets = [3, 0, 0], sizes = [1, 8, 8], strides = [1, 1, 1]} : vector<12x8x8xf32> to vector<1x8x8xf32>
    %37 = vector.shape_cast %36 : vector<1x8x8xf32> to vector<8x8xf32>
    %38 = vector.extract_strided_slice %20 {offsets = [7, 0, 0], sizes = [1, 8, 8], strides = [1, 1, 1]} : vector<12x8x8xf32> to vector<1x8x8xf32>
    %39 = vector.shape_cast %38 : vector<1x8x8xf32> to vector<8x8xf32>
    %cst_22 = arith.constant dense<0.000000e+00> : vector<8x8xf32>
    %40 = tpu.matmul %37, %39, %cst_22 {dimension_numbers = #tpu.dot_dimension_numbers<[0], [0], [1], [1], [0, 1, 1, 1], [], []>} : vector<8x8xf32>, vector<8x8xf32>, vector<8x8xf32> -> vector<8x8xf32>
    %41 = vector.shape_cast %25 : vector<8x8xf32> to vector<1x8x8xf32>
    %42 = vector.shape_cast %30 : vector<8x8xf32> to vector<1x8x8xf32>
    %43 = vector.shape_cast %35 : vector<8x8xf32> to vector<1x8x8xf32>
    %44 = vector.shape_cast %40 : vector<8x8xf32> to vector<1x8x8xf32>
    %45 = tpu.concatenate %41, %42, %43, %44 in 0 : vector<1x8x8xf32>, vector<1x8x8xf32>, vector<1x8x8xf32>, vector<1x8x8xf32> -> vector<4x8x8xf32>
    %46 = vector.extract_strided_slice %4 {offsets = [0, 0], sizes = [1, 8], strides = [1, 1]} : vector<2x8xf32> to vector<1x8xf32>
    %47 = vector.shape_cast %46 : vector<1x8xf32> to vector<1x1x8xf32>
    %48 = vector.broadcast %47 : vector<1x1x8xf32> to vector<4x8x8xf32>
    %49 = arith.addf %45, %48 : vector<4x8x8xf32>
    %cst_23 = arith.constant dense<0xFF800000> : vector<4x8xf32>
    %50 = vector.multi_reduction <maximumf>, %49, %cst_23 [2] : vector<4x8x8xf32> to vector<4x8xf32>
    %51 = vector.shape_cast %50 : vector<4x8xf32> to vector<4x8x1xf32>
    %52 = vector.broadcast %51 : vector<4x8x1xf32> to vector<4x8x8xf32>
    %53 = arith.subf %49, %52 : vector<4x8x8xf32>
    %54 = math.exp %53 : vector<4x8x8xf32>
    %cst_24 = arith.constant dense<0.000000e+00> : vector<4x8xf32>
    %55 = vector.multi_reduction <add>, %54, %cst_24 [2] : vector<4x8x8xf32> to vector<4x8xf32>
    %56 = vector.shape_cast %55 : vector<4x8xf32> to vector<4x8x1xf32>
    %57 = vector.broadcast %56 : vector<4x8x1xf32> to vector<4x8x8xf32>
    %58 = arith.divf %54, %57 : vector<4x8x8xf32>
    %c0_25 = arith.constant 0 : index
    %c0_26 = arith.constant 0 : index
    %c0_27 = arith.constant 0 : index
    %c0_28 = arith.constant 0 : index
    %c0_29 = arith.constant 0 : index
    %59 = vector.load %arg17[%c0_25, %c0_26, %c0_27, %c0_28, %c0_29] : memref<1x2x4x8x8xf32, #tpu.memory_space<vmem>>, vector<1x1x4x8x8xf32>
    %60 = vector.shape_cast %59 : vector<1x1x4x8x8xf32> to vector<4x8x8xf32>
    %61 = vector.shape_cast %58 : vector<4x8x8xf32> to vector<1x1x4x8x8xf32>
    tpu.vector_store %arg17[%c0_25, %c0_26, %c0_27, %c0_28, %c0_29], %61 {strides = array<i32>} : memref<1x2x4x8x8xf32, #tpu.memory_space<vmem>>, vector<1x1x4x8x8xf32>,
    %62 = vector.extract_strided_slice %20 {offsets = [8, 0, 0], sizes = [4, 8, 8], strides = [1, 1, 1]} : vector<12x8x8xf32> to vector<4x8x8xf32>
    "tpu.trace_start"() <{level = 10 : i32, message = "ndk,nqk->ndq"}> : () -> ()
    %cst_30 = arith.constant dense<0.000000e+00> : vector<4x8x8xf32>
    %63 = tpu.matmul %62, %58, %cst_30 {dimension_numbers = #tpu.dot_dimension_numbers<[2], [2], [1], [1], [0, 0, 0, 1, 1, 1], [0], [0]>} : vector<4x8x8xf32>, vector<4x8x8xf32>, vector<4x8x8xf32> -> vector<4x8x8xf32>
    "tpu.trace_stop"() : () -> ()
    %64 = vector.shape_cast %63 : vector<4x8x8xf32> to vector<32x8xf32>
    %65 = arith.truncf %64 : vector<32x8xf32> to vector<32x8xbf16>
    %cst_31 = arith.constant dense<0.000000e+00> : vector<8x32xf32>
    %66 = tpu.matmul %65, %10, %cst_31 {dimension_numbers = #tpu.dot_dimension_numbers<[0], [0], [1], [1], [0, 1, 1, 1], [], []>} : vector<32x8xbf16>, vector<32x32xbf16>, vector<8x32xf32> -> vector<8x32xf32>
    %67 = vector.extract_strided_slice %3 {offsets = [8, 0], sizes = [8, 32], strides = [1, 1]} : vector<16x32xf32> to vector<8x32xf32>
    %68 = arith.truncf %67 : vector<8x32xf32> to vector<8x32xbf16>
    %cst_32 = arith.constant dense<0.000000e+00> : vector<96x8xf32>
    %69 = tpu.matmul %6, %68, %cst_32 {dimension_numbers = #tpu.dot_dimension_numbers<[1], [1], [0], [0], [0, 0, 1, 0], [], []>} : vector<96x32xbf16>, vector<8x32xbf16>, vector<96x8xf32> -> vector<96x8xf32>
    %70 = vector.broadcast %8 : vector<96x1xf32> to vector<96x8xf32>
    %71 = arith.addf %69, %70 : vector<96x8xf32>
    %72 = vector.shape_cast %71 : vector<96x8xf32> to vector<12x8x8xf32>
    %73 = vector.extract_strided_slice %72 {offsets = [0, 0, 0], sizes = [1, 8, 8], strides = [1, 1, 1]} : vector<12x8x8xf32> to vector<1x8x8xf32>
    %74 = vector.shape_cast %73 : vector<1x8x8xf32> to vector<8x8xf32>
    %75 = vector.extract_strided_slice %72 {offsets = [4, 0, 0], sizes = [1, 8, 8], strides = [1, 1, 1]} : vector<12x8x8xf32> to vector<1x8x8xf32>
    %76 = vector.shape_cast %75 : vector<1x8x8xf32> to vector<8x8xf32>
    %cst_33 = arith.constant dense<0.000000e+00> : vector<8x8xf32>
    %77 = tpu.matmul %74, %76, %cst_33 {dimension_numbers = #tpu.dot_dimension_numbers<[0], [0], [1], [1], [0, 1, 1, 1], [], []>} : vector<8x8xf32>, vector<8x8xf32>, vector<8x8xf32> -> vector<8x8xf32>
    %78 = vector.extract_strided_slice %72 {offsets = [1, 0, 0], sizes = [1, 8, 8], strides = [1, 1, 1]} : vector<12x8x8xf32> to vector<1x8x8xf32>
    %79 = vector.shape_cast %78 : vector<1x8x8xf32> to vector<8x8xf32>
    %80 = vector.extract_strided_slice %72 {offsets = [5, 0, 0], sizes = [1, 8, 8], strides = [1, 1, 1]} : vector<12x8x8xf32> to vector<1x8x8xf32>
    %81 = vector.shape_cast %80 : vector<1x8x8xf32> to vector<8x8xf32>
    %cst_34 = arith.constant dense<0.000000e+00> : vector<8x8xf32>
    %82 = tpu.matmul %79, %81, %cst_34 {dimension_numbers = #tpu.dot_dimension_numbers<[0], [0], [1], [1], [0, 1, 1, 1], [], []>} : vector<8x8xf32>, vector<8x8xf32>, vector<8x8xf32> -> vector<8x8xf32>
    %83 = vector.extract_strided_slice %72 {offsets = [2, 0, 0], sizes = [1, 8, 8], strides = [1, 1, 1]} : vector<12x8x8xf32> to vector<1x8x8xf32>
    %84 = vector.shape_cast %83 : vector<1x8x8xf32> to vector<8x8xf32>
    %85 = vector.extract_strided_slice %72 {offsets = [6, 0, 0], sizes = [1, 8, 8], strides = [1, 1, 1]} : vector<12x8x8xf32> to vector<1x8x8xf32>
    %86 = vector.shape_cast %85 : vector<1x8x8xf32> to vector<8x8xf32>
    %cst_35 = arith.constant dense<0.000000e+00> : vector<8x8xf32>
    %87 = tpu.matmul %84, %86, %cst_35 {dimension_numbers = #tpu.dot_dimension_numbers<[0], [0], [1], [1], [0, 1, 1, 1], [], []>} : vector<8x8xf32>, vector<8x8xf32>, vector<8x8xf32> -> vector<8x8xf32>
    %88 = vector.extract_strided_slice %72 {offsets = [3, 0, 0], sizes = [1, 8, 8], strides = [1, 1, 1]} : vector<12x8x8xf32> to vector<1x8x8xf32>
    %89 = vector.shape_cast %88 : vector<1x8x8xf32> to vector<8x8xf32>
    %90 = vector.extract_strided_slice %72 {offsets = [7, 0, 0], sizes = [1, 8, 8], strides = [1, 1, 1]} : vector<12x8x8xf32> to vector<1x8x8xf32>
    %91 = vector.shape_cast %90 : vector<1x8x8xf32> to vector<8x8xf32>
    %cst_36 = arith.constant dense<0.000000e+00> : vector<8x8xf32>
    %92 = tpu.matmul %89, %91, %cst_36 {dimension_numbers = #tpu.dot_dimension_numbers<[0], [0], [1], [1], [0, 1, 1, 1], [], []>} : vector<8x8xf32>, vector<8x8xf32>, vector<8x8xf32> -> vector<8x8xf32>
    %93 = vector.shape_cast %77 : vector<8x8xf32> to vector<1x8x8xf32>
    %94 = vector.shape_cast %82 : vector<8x8xf32> to vector<1x8x8xf32>
    %95 = vector.shape_cast %87 : vector<8x8xf32> to vector<1x8x8xf32>
    %96 = vector.shape_cast %92 : vector<8x8xf32> to vector<1x8x8xf32>
    %97 = tpu.concatenate %93, %94, %95, %96 in 0 : vector<1x8x8xf32>, vector<1x8x8xf32>, vector<1x8x8xf32>, vector<1x8x8xf32> -> vector<4x8x8xf32>
    %98 = vector.extract_strided_slice %4 {offsets = [1, 0], sizes = [1, 8], strides = [1, 1]} : vector<2x8xf32> to vector<1x8xf32>
    %99 = vector.shape_cast %98 : vector<1x8xf32> to vector<1x1x8xf32>
    %100 = vector.broadcast %99 : vector<1x1x8xf32> to vector<4x8x8xf32>
    %101 = arith.addf %97, %100 : vector<4x8x8xf32>
    %cst_37 = arith.constant dense<0xFF800000> : vector<4x8xf32>
    %102 = vector.multi_reduction <maximumf>, %101, %cst_37 [2] : vector<4x8x8xf32> to vector<4x8xf32>
    %103 = vector.shape_cast %102 : vector<4x8xf32> to vector<4x8x1xf32>
    %104 = vector.broadcast %103 : vector<4x8x1xf32> to vector<4x8x8xf32>
    %105 = arith.subf %101, %104 : vector<4x8x8xf32>
    %106 = math.exp %105 : vector<4x8x8xf32>
    %cst_38 = arith.constant dense<0.000000e+00> : vector<4x8xf32>
    %107 = vector.multi_reduction <add>, %106, %cst_38 [2] : vector<4x8x8xf32> to vector<4x8xf32>
    %108 = vector.shape_cast %107 : vector<4x8xf32> to vector<4x8x1xf32>
    %109 = vector.broadcast %108 : vector<4x8x1xf32> to vector<4x8x8xf32>
    %110 = arith.divf %106, %109 : vector<4x8x8xf32>
    %c0_39 = arith.constant 0 : index
    %c1 = arith.constant 1 : index
    %c0_40 = arith.constant 0 : index
    %c0_41 = arith.constant 0 : index
    %c0_42 = arith.constant 0 : index
    %111 = vector.load %arg17[%c0_39, %c1, %c0_40, %c0_41, %c0_42] : memref<1x2x4x8x8xf32, #tpu.memory_space<vmem>>, vector<1x1x4x8x8xf32>
    %112 = vector.shape_cast %111 : vector<1x1x4x8x8xf32> to vector<4x8x8xf32>
    %113 = vector.shape_cast %110 : vector<4x8x8xf32> to vector<1x1x4x8x8xf32>
    tpu.vector_store %arg17[%c0_39, %c1, %c0_40, %c0_41, %c0_42], %113 {strides = array<i32>} : memref<1x2x4x8x8xf32, #tpu.memory_space<vmem>>, vector<1x1x4x8x8xf32>,
    %114 = vector.extract_strided_slice %72 {offsets = [8, 0, 0], sizes = [4, 8, 8], strides = [1, 1, 1]} : vector<12x8x8xf32> to vector<4x8x8xf32>
    "tpu.trace_start"() <{level = 10 : i32, message = "ndk,nqk->ndq"}> : () -> ()
    %cst_43 = arith.constant dense<0.000000e+00> : vector<4x8x8xf32>
    %115 = tpu.matmul %114, %110, %cst_43 {dimension_numbers = #tpu.dot_dimension_numbers<[2], [2], [1], [1], [0, 0, 0, 1, 1, 1], [0], [0]>} : vector<4x8x8xf32>, vector<4x8x8xf32>, vector<4x8x8xf32> -> vector<4x8x8xf32>
    "tpu.trace_stop"() : () -> ()
    %116 = vector.shape_cast %115 : vector<4x8x8xf32> to vector<32x8xf32>
    %117 = arith.truncf %116 : vector<32x8xf32> to vector<32x8xbf16>
    %cst_44 = arith.constant dense<0.000000e+00> : vector<8x32xf32>
    %118 = tpu.matmul %117, %10, %cst_44 {dimension_numbers = #tpu.dot_dimension_numbers<[0], [0], [1], [1], [0, 1, 1, 1], [], []>} : vector<32x8xbf16>, vector<32x32xbf16>, vector<8x32xf32> -> vector<8x32xf32>
    %119 = tpu.concatenate %66, %118 in 0 : vector<8x32xf32>, vector<8x32xf32> -> vector<16x32xf32>
    %c0_45 = arith.constant 0 : index
    %c0_46 = arith.constant 0 : index
    %c0_47 = arith.constant 0 : index
    %120 = vector.load %arg8[%c0_45, %c0_46, %c0_47] : memref<1x1x32xf32, #tpu.memory_space<vmem>>, vector<1x1x32xf32>
    %121 = vector.shape_cast %120 : vector<1x1x32xf32> to vector<1x32xf32>
    %122 = vector.broadcast %121 : vector<1x32xf32> to vector<16x32xf32>
    %123 = arith.addf %119, %122 : vector<16x32xf32>
    %124 = arith.addf %3, %123 : vector<16x32xf32>
    %c0_48 = arith.constant 0 : index
    %c0_49 = arith.constant 0 : index
    %c0_50 = arith.constant 0 : index
    %125 = vector.load %arg9[%c0_48, %c0_49, %c0_50] : memref<1x1x32xf32, #tpu.memory_space<vmem>>, vector<1x1x32xf32>
    %126 = vector.shape_cast %125 : vector<1x1x32xf32> to vector<1x32xf32>
    %c0_51 = arith.constant 0 : index
    %c0_52 = arith.constant 0 : index
    %c0_53 = arith.constant 0 : index
    %127 = vector.load %arg10[%c0_51, %c0_52, %c0_53] : memref<1x1x32xf32, #tpu.memory_space<vmem>>, vector<1x1x32xf32>
    %128 = vector.shape_cast %127 : vector<1x1x32xf32> to vector<1x32xf32>
    %cst_54 = arith.constant dense<0.000000e+00> : vector<16xf32>
    %129 = vector.multi_reduction <add>, %124, %cst_54 [1] : vector<16x32xf32> to vector<16xf32>
    %130 = vector.shape_cast %129 : vector<16xf32> to vector<16x1xf32>
    %cst_55 = arith.constant 3.200000e+01 : f32
    %131 = vector.broadcast %cst_55 : f32 to vector<16x1xf32>
    %132 = arith.divf %130, %131 : vector<16x1xf32>
    %133 = vector.broadcast %132 : vector<16x1xf32> to vector<16x32xf32>
    %134 = arith.subf %124, %133 : vector<16x32xf32>
    %135 = arith.mulf %134, %134 : vector<16x32xf32>
    %cst_56 = arith.constant dense<0.000000e+00> : vector<16xf32>
    %136 = vector.multi_reduction <add>, %135, %cst_56 [1] : vector<16x32xf32> to vector<16xf32>
    %137 = vector.shape_cast %136 : vector<16xf32> to vector<16x1xf32>
    %cst_57 = arith.constant 3.200000e+01 : f32
    %138 = vector.broadcast %cst_57 : f32 to vector<16x1xf32>
    %139 = arith.divf %137, %138 : vector<16x1xf32>
    %cst_58 = arith.constant 9.99999996E-13 : f32
    %140 = vector.broadcast %cst_58 : f32 to vector<16x1xf32>
    %141 = arith.addf %139, %140 : vector<16x1xf32>
    %142 = math.rsqrt %141 : vector<16x1xf32>
    %143 = vector.broadcast %142 : vector<16x1xf32> to vector<16x32xf32>
    %144 = arith.mulf %134, %143 : vector<16x32xf32>
    %145 = vector.broadcast %126 : vector<1x32xf32> to vector<16x32xf32>
    %146 = arith.mulf %144, %145 : vector<16x32xf32>
    %147 = vector.broadcast %128 : vector<1x32xf32> to vector<16x32xf32>
    %148 = arith.addf %146, %147 : vector<16x32xf32>
    %149 = arith.truncf %148 : vector<16x32xf32> to vector<16x32xbf16>
    %cst_59 = arith.constant dense<0.000000e+00> : vector<16x64xf32>
    %150 = tpu.matmul %149, %12, %cst_59 {dimension_numbers = #tpu.dot_dimension_numbers<[1], [0], [0], [1], [0, 0, 1, 1], [], []>} : vector<16x32xbf16>, vector<32x64xbf16>, vector<16x64xf32> -> vector<16x64xf32>
    %c0_60 = arith.constant 0 : index
    %c0_61 = arith.constant 0 : index
    %c0_62 = arith.constant 0 : index
    %151 = vector.load %arg12[%c0_60, %c0_61, %c0_62] : memref<1x1x64xf32, #tpu.memory_space<vmem>>, vector<1x1x64xf32>
    %152 = vector.shape_cast %151 : vector<1x1x64xf32> to vector<1x64xf32>
    %153 = vector.broadcast %152 : vector<1x64xf32> to vector<16x64xf32>
    %154 = arith.addf %150, %153 : vector<16x64xf32>
    %cst_63 = arith.constant 5.000000e-01 : f32
    %155 = vector.broadcast %cst_63 : f32 to vector<16x64xf32>
    %156 = arith.mulf %155, %154 : vector<16x64xf32>
    %cst_64 = arith.constant 4.471500e-02 : f32
    %157 = vector.broadcast %cst_64 : f32 to vector<16x64xf32>
    %158 = arith.mulf %157, %154 : vector<16x64xf32>
    %159 = arith.mulf %158, %154 : vector<16x64xf32>
    %160 = arith.mulf %159, %154 : vector<16x64xf32>
    %161 = arith.addf %154, %160 : vector<16x64xf32>
    %cst_65 = arith.constant 0.797884583 : f32
    %162 = vector.broadcast %cst_65 : f32 to vector<16x64xf32>
    %163 = arith.mulf %162, %161 : vector<16x64xf32>
    %164 = math.tanh %163 : vector<16x64xf32>
    %cst_66 = arith.constant 1.000000e+00 : f32
    %165 = vector.broadcast %cst_66 : f32 to vector<16x64xf32>
    %166 = arith.addf %165, %164 : vector<16x64xf32>
    %167 = arith.mulf %156, %166 : vector<16x64xf32>
    %168 = arith.truncf %167 : vector<16x64xf32> to vector<16x64xbf16>
    %cst_67 = arith.constant dense<0.000000e+00> : vector<16x32xf32>
    %169 = tpu.matmul %168, %14, %cst_67 {dimension_numbers = #tpu.dot_dimension_numbers<[1], [0], [0], [1], [0, 0, 1, 1], [], []>} : vector<16x64xbf16>, vector<64x32xbf16>, vector<16x32xf32> -> vector<16x32xf32>
    %c0_68 = arith.constant 0 : index
    %c0_69 = arith.constant 0 : index
    %c0_70 = arith.constant 0 : index
    %170 = vector.load %arg14[%c0_68, %c0_69, %c0_70] : memref<1x1x32xf32, #tpu.memory_space<vmem>>, vector<1x1x32xf32>
    %171 = vector.shape_cast %170 : vector<1x1x32xf32> to vector<1x32xf32>
    %172 = vector.broadcast %171 : vector<1x32xf32> to vector<16x32xf32>
    %173 = arith.addf %169, %172 : vector<16x32xf32>
    %174 = arith.addf %148, %173 : vector<16x32xf32>
    %c0_71 = arith.constant 0 : index
    %c0_72 = arith.constant 0 : index
    %c0_73 = arith.constant 0 : index
    %175 = vector.load %arg15[%c0_71, %c0_72, %c0_73] : memref<1x1x32xf32, #tpu.memory_space<vmem>>, vector<1x1x32xf32>
    %176 = vector.shape_cast %175 : vector<1x1x32xf32> to vector<1x32xf32>
    %c0_74 = arith.constant 0 : index
    %c0_75 = arith.constant 0 : index
    %c0_76 = arith.constant 0 : index
    %177 = vector.load %arg16[%c0_74, %c0_75, %c0_76] : memref<1x1x32xf32, #tpu.memory_space<vmem>>, vector<1x1x32xf32>
    %178 = vector.shape_cast %177 : vector<1x1x32xf32> to vector<1x32xf32>
    %cst_77 = arith.constant dense<0.000000e+00> : vector<16xf32>
    %179 = vector.multi_reduction <add>, %174, %cst_77 [1] : vector<16x32xf32> to vector<16xf32>
    %180 = vector.shape_cast %179 : vector<16xf32> to vector<16x1xf32>
    %cst_78 = arith.constant 3.200000e+01 : f32
    %181 = vector.broadcast %cst_78 : f32 to vector<16x1xf32>
    %182 = arith.divf %180, %181 : vector<16x1xf32>
    %183 = vector.broadcast %182 : vector<16x1xf32> to vector<16x32xf32>
    %184 = arith.subf %174, %183 : vector<16x32xf32>
    %185 = arith.mulf %184, %184 : vector<16x32xf32>
    %cst_79 = arith.constant dense<0.000000e+00> : vector<16xf32>
    %186 = vector.multi_reduction <add>, %185, %cst_79 [1] : vector<16x32xf32> to vector<16xf32>
    %187 = vector.shape_cast %186 : vector<16xf32> to vector<16x1xf32>
    %cst_80 = arith.constant 3.200000e+01 : f32
    %188 = vector.broadcast %cst_80 : f32 to vector<16x1xf32>
    %189 = arith.divf %187, %188 : vector<16x1xf32>
    %cst_81 = arith.constant 9.99999996E-13 : f32
    %190 = vector.broadcast %cst_81 : f32 to vector<16x1xf32>
    %191 = arith.addf %189, %190 : vector<16x1xf32>
    %192 = math.rsqrt %191 : vector<16x1xf32>
    %193 = vector.broadcast %192 : vector<16x1xf32> to vector<16x32xf32>
    %194 = arith.mulf %184, %193 : vector<16x32xf32>
    %195 = vector.broadcast %176 : vector<1x32xf32> to vector<16x32xf32>
    %196 = arith.mulf %194, %195 : vector<16x32xf32>
    %197 = vector.broadcast %178 : vector<1x32xf32> to vector<16x32xf32>
    %198 = arith.addf %196, %197 : vector<16x32xf32>
    %c0_82 = arith.constant 0 : index
    %c0_83 = arith.constant 0 : index
    %199 = vector.load %arg18[%c0_82, %c0_83] : memref<16x32xf32, #tpu.memory_space<vmem>>, vector<16x32xf32>
    tpu.vector_store %arg18[%c0_82, %c0_83], %198 {strides = array<i32>} : memref<16x32xf32, #tpu.memory_space<vmem>>, vector<16x32xf32>,
    return
  }
  func.func @transform_0(%arg0: i32) -> (i32, i32) {
    %c0_i32 = arith.constant 0 : i32
    %c0_i32_0 = arith.constant 0 : i32
    %c0_i32_1 = arith.constant 0 : i32
    return %c0_i32, %c0_i32_0 : i32, i32
  }
  func.func @transform_1(%arg0: i32) -> (i32, i32) {
    %c0_i32 = arith.constant 0 : i32
    %c0_i32_0 = arith.constant 0 : i32
    %c0_i32_1 = arith.constant 0 : i32
    return %c0_i32, %c0_i32_0 : i32, i32
  }
  func.func @transform_2(%arg0: i32) -> (i32, i32) {
    %c0_i32 = arith.constant 0 : i32
    %c0_i32_0 = arith.constant 0 : i32
    %c0_i32_1 = arith.constant 0 : i32
    return %c0_i32, %c0_i32_0 : i32, i32
  }
  func.func @transform_3(%arg0: i32) -> (i32, i32) {
    %c0_i32 = arith.constant 0 : i32
    %c0_i32_0 = arith.constant 0 : i32
    %c0_i32_1 = arith.constant 0 : i32
    return %c0_i32, %c0_i32_0 : i32, i32
  }
  func.func @transform_4(%arg0: i32) -> (i32, i32, i32) {
    %c0_i32 = arith.constant 0 : i32
    %c0_i32_0 = arith.constant 0 : i32
    %c0_i32_1 = arith.constant 0 : i32
    return %arg0, %c0_i32, %c0_i32_0 : i32, i32, i32
  }
  func.func @transform_5(%arg0: i32) -> (i32, i32, i32) {
    %c0_i32 = arith.constant 0 : i32
    %c0_i32_0 = arith.constant 0 : i32
    %c0_i32_1 = arith.constant 0 : i32
    return %arg0, %c0_i32, %c0_i32_0 : i32, i32, i32
  }
  func.func @transform_6(%arg0: i32) -> (i32, i32, i32) {
    %c0_i32 = arith.constant 0 : i32
    %c0_i32_0 = arith.constant 0 : i32
    %c0_i32_1 = arith.constant 0 : i32
    return %arg0, %c0_i32, %c0_i32_0 : i32, i32, i32
  }
  func.func @transform_7(%arg0: i32) -> (i32, i32, i32) {
    %c0_i32 = arith.constant 0 : i32
    %c0_i32_0 = arith.constant 0 : i32
    %c0_i32_1 = arith.constant 0 : i32
    return %arg0, %c0_i32, %c0_i32_0 : i32, i32, i32
  }
  func.func @transform_8(%arg0: i32) -> (i32, i32, i32) {
    %c0_i32 = arith.constant 0 : i32
    %c0_i32_0 = arith.constant 0 : i32
    %c0_i32_1 = arith.constant 0 : i32
    return %arg0, %c0_i32, %c0_i32_0 : i32, i32, i32
  }
  func.func @transform_9(%arg0: i32) -> (i32, i32, i32) {
    %c0_i32 = arith.constant 0 : i32
    %c0_i32_0 = arith.constant 0 : i32
    %c0_i32_1 = arith.constant 0 : i32
    return %arg0, %c0_i32, %c0_i32_0 : i32, i32, i32
  }
  func.func @transform_10(%arg0: i32) -> (i32, i32, i32) {
    %c0_i32 = arith.constant 0 : i32
    %c0_i32_0 = arith.constant 0 : i32
    %c0_i32_1 = arith.constant 0 : i32
    return %arg0, %c0_i32, %c0_i32_0 : i32, i32, i32
  }
  func.func @transform_11(%arg0: i32) -> (i32, i32, i32) {
    %c0_i32 = arith.constant 0 : i32
    %c0_i32_0 = arith.constant 0 : i32
    %c0_i32_1 = arith.constant 0 : i32
    return %arg0, %c0_i32, %c0_i32_0 : i32, i32, i32
  }
  func.func @transform_12(%arg0: i32) -> (i32, i32, i32) {
    %c0_i32 = arith.constant 0 : i32
    %c0_i32_0 = arith.constant 0 : i32
    %c0_i32_1 = arith.constant 0 : i32
    return %arg0, %c0_i32, %c0_i32_0 : i32, i32, i32
  }
  func.func @transform_13(%arg0: i32) -> (i32, i32, i32) {
    %c0_i32 = arith.constant 0 : i32
    %c0_i32_0 = arith.constant 0 : i32
    %c0_i32_1 = arith.constant 0 : i32
    return %arg0, %c0_i32, %c0_i32_0 : i32, i32, i32
  }
  func.func @transform_14(%arg0: i32) -> (i32, i32, i32) {
    %c0_i32 = arith.constant 0 : i32
    %c0_i32_0 = arith.constant 0 : i32
    %c0_i32_1 = arith.constant 0 : i32
    return %arg0, %c0_i32, %c0_i32_0 : i32, i32, i32
  }
  func.func @transform_15(%arg0: i32) -> (i32, i32, i32) {
    %c0_i32 = arith.constant 0 : i32
    %c0_i32_0 = arith.constant 0 : i32
    %c0_i32_1 = arith.constant 0 : i32
    return %arg0, %c0_i32, %c0_i32_0 : i32, i32, i32
  }
  func.func @transform_16(%arg0: i32) -> (i32, i32, i32, i32, i32) {
    %c0_i32 = arith.constant 0 : i32
    %c0_i32_0 = arith.constant 0 : i32
    %c0_i32_1 = arith.constant 0 : i32
    %c0_i32_2 = arith.constant 0 : i32
    %c0_i32_3 = arith.constant 0 : i32
    return %arg0, %c0_i32, %c0_i32_0, %c0_i32_1, %c0_i32_2 : i32, i32, i32, i32, i32
  }
  func.func @transform_17(%arg0: i32) -> (i32, i32) {
    %c0_i32 = arith.constant 0 : i32
    %c0_i32_0 = arith.constant 0 : i32
    %c0_i32_1 = arith.constant 0 : i32
    return %c0_i32, %c0_i32_0 : i32, i32
  }
}

</mosaic_0001>

<llo_original>
// kernel: bert_for_text_classification.1
$region0: #{bert_for_text_classification.1}
  #allocation0 [shape = 'u32[]', space=smem, size = 0x4, offset = 0x4, fixed_abs, tag = 'smem constant byte address 0x4 - core index']
  #allocation1 [shape = 'u32[144,128]{1,0:T(1,128)}', space=vmem, size = 0x12000, scoped, tag = 'internal scratch']
  %s0 = inlined_call_operand.vmem [shape: f32[16,32], index: 0, kind: input, shape index: {}]
  %s1 = inlined_call_operand.vmem [shape: f32[2,8], index: 1, kind: input, shape index: {}]
  %s2 = inlined_call_operand.vmem [shape: f32[1,32], index: 2, kind: input, shape index: {}]
  %s3 = inlined_call_operand.vmem [shape: f32[1,32], index: 3, kind: input, shape index: {}]
  %s4 = inlined_call_operand.vmem [shape: bf16[2,96,32], index: 4, kind: input, shape index: {}]
  %s5 = inlined_call_operand.vmem [shape: f32[2,96,1], index: 5, kind: input, shape index: {}]
  %s6 = inlined_call_operand.vmem [shape: bf16[2,32,32], index: 6, kind: input, shape index: {}]
  %s7 = inlined_call_operand.vmem [shape: f32[2,1,32], index: 7, kind: input, shape index: {}]
  %s8 = inlined_call_operand.vmem [shape: f32[2,1,32], index: 8, kind: input, shape index: {}]
  %s9 = inlined_call_operand.vmem [shape: f32[2,1,32], index: 9, kind: input, shape index: {}]
  %s10 = inlined_call_operand.vmem [shape: bf16[2,32,64], index: 10, kind: input, shape index: {}]
  %s11 = inlined_call_operand.vmem [shape: f32[2,1,64], index: 11, kind: input, shape index: {}]
  %s12 = inlined_call_operand.vmem [shape: bf16[2,64,32], index: 12, kind: input, shape index: {}]
  %s13 = inlined_call_operand.vmem [shape: f32[2,1,32], index: 13, kind: input, shape index: {}]
  %s14 = inlined_call_operand.vmem [shape: f32[2,1,32], index: 14, kind: input, shape index: {}]
  %s15 = inlined_call_operand.vmem [shape: f32[2,1,32], index: 15, kind: input, shape index: {}]
  %s16 = inlined_call_operand.vmem [shape: f32[2,2,4,8,8], index: 16, kind: output, shape index: {0}]
  %s17 = inlined_call_operand.vmem [shape: f32[16,32], index: 17, kind: output, shape index: {1}]
  %18 = xla_tuple %s16, %s17
  %s19 = sld [smem:[#allocation0]]
  $region109: #{bert_for_text_classification.1} parent=0
    _
  %s21 = ssub.s32 1, %s19
  %s22 = scalar_select 0, %s21, %s19
  loop: start=0, step=1, limit=4
  $region2: #{bert_for_text_classification.1} parent=0 // loop_pre_header
    _
  $region3: #{bert_for_text_classification.1} parent=0 // loop_header
    %s24 = sphi 0, %s28
    %p25 = scmp.ge.s32.totalorder %s24, 4
    %s32 = sphi 0, %s32
    %s34 = sphi 0, %s32
    %s35 = sphi 0, %s34
    %s49 = sphi 0, %s35
    %s53 = sphi 0, %s53
    %s55 = sphi 0, %s53
    %s56 = sphi 0, %s55
    %s70 = sphi 0, %s56
    %s74 = sphi 0, %s74
    %s76 = sphi 0, %s74
    %s77 = sphi 0, %s76
    %s91 = sphi 0, %s77
    %s95 = sphi 0, %s95
    %s97 = sphi 0, %s95
    %s98 = sphi 0, %s97
    %s112 = sphi 0, %s98
    %s118 = sphi 0, %s120
    %s121 = sphi 0, %s118
    %s122 = sphi 0, %s121
    %s138 = sphi 0, %s122
    %s144 = sphi 0, %s146
    %s147 = sphi 0, %s144
    %s148 = sphi 0, %s147
    %s164 = sphi 0, %s148
    %s170 = sphi 0, %s172
    %s173 = sphi 0, %s170
    %s174 = sphi 0, %s173
    %s190 = sphi 0, %s174
    %s196 = sphi 0, %s198
    %s199 = sphi 0, %s196
    %s200 = sphi 0, %s199
    %s216 = sphi 0, %s200
    %s222 = sphi 0, %s224
    %s225 = sphi 0, %s222
    %s226 = sphi 0, %s225
    %s242 = sphi 0, %s226
    %s248 = sphi 0, %s250
    %s251 = sphi 0, %s248
    %s252 = sphi 0, %s251
    %s268 = sphi 0, %s252
    %s274 = sphi 0, %s276
    %s277 = sphi 0, %s274
    %s278 = sphi 0, %s277
    %s294 = sphi 0, %s278
    %s300 = sphi 0, %s302
    %s303 = sphi 0, %s300
    %s304 = sphi 0, %s303
    %s320 = sphi 0, %s304
    %s326 = sphi 0, %s328
    %s329 = sphi 0, %s326
    %s330 = sphi 0, %s329
    %s346 = sphi 0, %s330
    %s352 = sphi 0, %s354
    %s355 = sphi 0, %s352
    %s356 = sphi 0, %s355
    %s372 = sphi 0, %s356
    %s378 = sphi 0, %s380
    %s381 = sphi 0, %s378
    %s382 = sphi 0, %s381
    %s398 = sphi 0, %s382
    %s404 = sphi 0, %s406
    %s407 = sphi 0, %s404
    %s408 = sphi 0, %s407
    %s424 = sphi 0, %s408
    %s430 = sphi 0, %s432
    %s433 = sphi 0, %s430
    %s434 = sphi 0, %s433
    %s450 = sphi 0, %s434
    %s454 = sphi 0, %s454
    %s456 = sphi 0, %s454
    %s457 = sphi 0, %s456
    %s471 = sphi 0, %s457
  $region4: #{bert_for_text_classification.1} parent=0 // loop_header_branch
    %27 = sbr.rel (%p25) target = $region8
  $region5: #{bert_for_text_classification.1} parent=0 // loop_body
    %s29 = ssub.s32 %s24, 1
    %s30 = ssub.s32 %s24, 2
    %s31 = sadd.s32 %s24, 1
    %s33 = sadd.s32 %s32, 1
    %p36 = scmp.eq.s32.totalorder %s24, 1
    %p37 = scmp.ne.s32.totalorder %s32, %s34
    %p38 = scmp.eq.s32.totalorder %s24, 0
    %p39 = por %p37, %p38
    %p40 = scmp.ne.s32.totalorder %s32, %s34
    %p41 = scmp.eq.s32.totalorder %s29, 1
    %p42 = por %p40, %p41
    %p43 = scmp.ne.s32.totalorder %s34, %s35
    %p44 = scmp.eq.s32.totalorder %s29, 0
    %p45 = por %p43, %p44
    %p46 = scmp.ne.s32.totalorder %s34, %s35
    %p47 = scmp.eq.s32.totalorder %s30, 1
    %p48 = por %p46, %p47
    %p50 = scmp.ne.s32.totalorder %s35, %s49
    %p51 = scmp.eq.s32.totalorder %s30, 0
    %p52 = por %p50, %p51
    %s54 = sadd.s32 %s53, 1
    %p57 = scmp.eq.s32.totalorder %s24, 1
    %p58 = scmp.ne.s32.totalorder %s53, %s55
    %p59 = scmp.eq.s32.totalorder %s24, 0
    %p60 = por %p58, %p59
    %p61 = scmp.ne.s32.totalorder %s53, %s55
    %p62 = scmp.eq.s32.totalorder %s29, 1
    %p63 = por %p61, %p62
    %p64 = scmp.ne.s32.totalorder %s55, %s56
    %p65 = scmp.eq.s32.totalorder %s29, 0
    %p66 = por %p64, %p65
    %p67 = scmp.ne.s32.totalorder %s55, %s56
    %p68 = scmp.eq.s32.totalorder %s30, 1
    %p69 = por %p67, %p68
    %p71 = scmp.ne.s32.totalorder %s56, %s70
    %p72 = scmp.eq.s32.totalorder %s30, 0
    %p73 = por %p71, %p72
    %s75 = sadd.s32 %s74, 1
    %p78 = scmp.eq.s32.totalorder %s24, 1
    %p79 = scmp.ne.s32.totalorder %s74, %s76
    %p80 = scmp.eq.s32.totalorder %s24, 0
    %p81 = por %p79, %p80
    %p82 = scmp.ne.s32.totalorder %s74, %s76
    %p83 = scmp.eq.s32.totalorder %s29, 1
    %p84 = por %p82, %p83
    %p85 = scmp.ne.s32.totalorder %s76, %s77
    %p86 = scmp.eq.s32.totalorder %s29, 0
    %p87 = por %p85, %p86
    %p88 = scmp.ne.s32.totalorder %s76, %s77
    %p89 = scmp.eq.s32.totalorder %s30, 1
    %p90 = por %p88, %p89
    %p92 = scmp.ne.s32.totalorder %s77, %s91
    %p93 = scmp.eq.s32.totalorder %s30, 0
    %p94 = por %p92, %p93
    %s96 = sadd.s32 %s95, 1
    %p99 = scmp.eq.s32.totalorder %s24, 1
    %p100 = scmp.ne.s32.totalorder %s95, %s97
    %p101 = scmp.eq.s32.totalorder %s24, 0
    %p102 = por %p100, %p101
    %p103 = scmp.ne.s32.totalorder %s95, %s97
    %p104 = scmp.eq.s32.totalorder %s29, 1
    %p105 = por %p103, %p104
    %p106 = scmp.ne.s32.totalorder %s97, %s98
    %p107 = scmp.eq.s32.totalorder %s29, 0
    %p108 = por %p106, %p107
    %p109 = scmp.ne.s32.totalorder %s97, %s98
    %p110 = scmp.eq.s32.totalorder %s30, 1
    %p111 = por %p109, %p110
    %p113 = scmp.ne.s32.totalorder %s98, %s112
    %p114 = scmp.eq.s32.totalorder %s30, 0
    %p115 = por %p113, %p114
    %s116 = ssub.s32 %s24, %s31
    %p117 = scmp.eq.s32.totalorder %s116, 0
    %s119 = sadd.s32 %s118, 1
    %s120 = scalar_select %p117, %s118, %s119
    %p123 = pneg %p117
    %p124 = scmp.eq.s32.totalorder %s24, 1
    %p125 = por %p123, %p124
    %p126 = scmp.ne.s32.totalorder %s118, %s121
    %p127 = scmp.eq.s32.totalorder %s24, 0
    %p128 = por %p126, %p127
    %p129 = scmp.ne.s32.totalorder %s118, %s121
    %p130 = scmp.eq.s32.totalorder %s29, 1
    %p131 = por %p129, %p130
    %p132 = scmp.ne.s32.totalorder %s121, %s122
    %p133 = scmp.eq.s32.totalorder %s29, 0
    %p134 = por %p132, %p133
    %p135 = scmp.ne.s32.totalorder %s121, %s122
    %p136 = scmp.eq.s32.totalorder %s30, 1
    %p137 = por %p135, %p136
    %p139 = scmp.ne.s32.totalorder %s122, %s138
    %p140 = scmp.eq.s32.totalorder %s30, 0
    %p141 = por %p139, %p140
    %s142 = ssub.s32 %s24, %s31
    %p143 = scmp.eq.s32.totalorder %s142, 0
    %s145 = sadd.s32 %s144, 1
    %s146 = scalar_select %p143, %s144, %s145
    %p149 = pneg %p143
    %p150 = scmp.eq.s32.totalorder %s24, 1
    %p151 = por %p149, %p150
    %p152 = scmp.ne.s32.totalorder %s144, %s147
    %p153 = scmp.eq.s32.totalorder %s24, 0
    %p154 = por %p152, %p153
    %p155 = scmp.ne.s32.totalorder %s144, %s147
    %p156 = scmp.eq.s32.totalorder %s29, 1
    %p157 = por %p155, %p156
    %p158 = scmp.ne.s32.totalorder %s147, %s148
    %p159 = scmp.eq.s32.totalorder %s29, 0
    %p160 = por %p158, %p159
    %p161 = scmp.ne.s32.totalorder %s147, %s148
    %p162 = scmp.eq.s32.totalorder %s30, 1
    %p163 = por %p161, %p162
    %p165 = scmp.ne.s32.totalorder %s148, %s164
    %p166 = scmp.eq.s32.totalorder %s30, 0
    %p167 = por %p165, %p166
    %s168 = ssub.s32 %s24, %s31
    %p169 = scmp.eq.s32.totalorder %s168, 0
    %s171 = sadd.s32 %s170, 1
    %s172 = scalar_select %p169, %s170, %s171
    %p175 = pneg %p169
    %p176 = scmp.eq.s32.totalorder %s24, 1
    %p177 = por %p175, %p176
    %p178 = scmp.ne.s32.totalorder %s170, %s173
    %p179 = scmp.eq.s32.totalorder %s24, 0
    %p180 = por %p178, %p179
    %p181 = scmp.ne.s32.totalorder %s170, %s173
    %p182 = scmp.eq.s32.totalorder %s29, 1
    %p183 = por %p181, %p182
    %p184 = scmp.ne.s32.totalorder %s173, %s174
    %p185 = scmp.eq.s32.totalorder %s29, 0
    %p186 = por %p184, %p185
    %p187 = scmp.ne.s32.totalorder %s173, %s174
    %p188 = scmp.eq.s32.totalorder %s30, 1
    %p189 = por %p187, %p188
    %p191 = scmp.ne.s32.totalorder %s174, %s190
    %p192 = scmp.eq.s32.totalorder %s30, 0
    %p193 = por %p191, %p192
    %s194 = ssub.s32 %s24, %s31
    %p195 = scmp.eq.s32.totalorder %s194, 0
    %s197 = sadd.s32 %s196, 1
    %s198 = scalar_select %p195, %s196, %s197
    %p201 = pneg %p195
    %p202 = scmp.eq.s32.totalorder %s24, 1
    %p203 = por %p201, %p202
    %p204 = scmp.ne.s32.totalorder %s196, %s199
    %p205 = scmp.eq.s32.totalorder %s24, 0
    %p206 = por %p204, %p205
    %p207 = scmp.ne.s32.totalorder %s196, %s199
    %p208 = scmp.eq.s32.totalorder %s29, 1
    %p209 = por %p207, %p208
    %p210 = scmp.ne.s32.totalorder %s199, %s200
    %p211 = scmp.eq.s32.totalorder %s29, 0
    %p212 = por %p210, %p211
    %p213 = scmp.ne.s32.totalorder %s199, %s200
    %p214 = scmp.eq.s32.totalorder %s30, 1
    %p215 = por %p213, %p214
    %p217 = scmp.ne.s32.totalorder %s200, %s216
    %p218 = scmp.eq.s32.totalorder %s30, 0
    %p219 = por %p217, %p218
    %s220 = ssub.s32 %s24, %s31
    %p221 = scmp.eq.s32.totalorder %s220, 0
    %s223 = sadd.s32 %s222, 1
    %s224 = scalar_select %p221, %s222, %s223
    %p227 = pneg %p221
    %p228 = scmp.eq.s32.totalorder %s24, 1
    %p229 = por %p227, %p228
    %p230 = scmp.ne.s32.totalorder %s222, %s225
    %p231 = scmp.eq.s32.totalorder %s24, 0
    %p232 = por %p230, %p231
    %p233 = scmp.ne.s32.totalorder %s222, %s225
    %p234 = scmp.eq.s32.totalorder %s29, 1
    %p235 = por %p233, %p234
    %p236 = scmp.ne.s32.totalorder %s225, %s226
    %p237 = scmp.eq.s32.totalorder %s29, 0
    %p238 = por %p236, %p237
    %p239 = scmp.ne.s32.totalorder %s225, %s226
    %p240 = scmp.eq.s32.totalorder %s30, 1
    %p241 = por %p239, %p240
    %p243 = scmp.ne.s32.totalorder %s226, %s242
    %p244 = scmp.eq.s32.totalorder %s30, 0
    %p245 = por %p243, %p244
    %s246 = ssub.s32 %s24, %s31
    %p247 = scmp.eq.s32.totalorder %s246, 0
    %s249 = sadd.s32 %s248, 1
    %s250 = scalar_select %p247, %s248, %s249
    %p253 = pneg %p247
    %p254 = scmp.eq.s32.totalorder %s24, 1
    %p255 = por %p253, %p254
    %p256 = scmp.ne.s32.totalorder %s248, %s251
    %p257 = scmp.eq.s32.totalorder %s24, 0
    %p258 = por %p256, %p257
    %p259 = scmp.ne.s32.totalorder %s248, %s251
    %p260 = scmp.eq.s32.totalorder %s29, 1
    %p261 = por %p259, %p260
    %p262 = scmp.ne.s32.totalorder %s251, %s252
    %p263 = scmp.eq.s32.totalorder %s29, 0
    %p264 = por %p262, %p263
    %p265 = scmp.ne.s32.totalorder %s251, %s252
    %p266 = scmp.eq.s32.totalorder %s30, 1
    %p267 = por %p265, %p266
    %p269 = scmp.ne.s32.totalorder %s252, %s268
    %p270 = scmp.eq.s32.totalorder %s30, 0
    %p271 = por %p269, %p270
    %s272 = ssub.s32 %s24, %s31
    %p273 = scmp.eq.s32.totalorder %s272, 0
    %s275 = sadd.s32 %s274, 1
    %s276 = scalar_select %p273, %s274, %s275
    %p279 = pneg %p273
    %p280 = scmp.eq.s32.totalorder %s24, 1
    %p281 = por %p279, %p280
    %p282 = scmp.ne.s32.totalorder %s274, %s277
    %p283 = scmp.eq.s32.totalorder %s24, 0
    %p284 = por %p282, %p283
    %p285 = scmp.ne.s32.totalorder %s274, %s277
    %p286 = scmp.eq.s32.totalorder %s29, 1
    %p287 = por %p285, %p286
    %p288 = scmp.ne.s32.totalorder %s277, %s278
    %p289 = scmp.eq.s32.totalorder %s29, 0
    %p290 = por %p288, %p289
    %p291 = scmp.ne.s32.totalorder %s277, %s278
    %p292 = scmp.eq.s32.totalorder %s30, 1
    %p293 = por %p291, %p292
    %p295 = scmp.ne.s32.totalorder %s278, %s294
    %p296 = scmp.eq.s32.totalorder %s30, 0
    %p297 = por %p295, %p296
    %s298 = ssub.s32 %s24, %s31
    %p299 = scmp.eq.s32.totalorder %s298, 0
    %s301 = sadd.s32 %s300, 1
    %s302 = scalar_select %p299, %s300, %s301
    %p305 = pneg %p299
    %p306 = scmp.eq.s32.totalorder %s24, 1
    %p307 = por %p305, %p306
    %p308 = scmp.ne.s32.totalorder %s300, %s303
    %p309 = scmp.eq.s32.totalorder %s24, 0
    %p310 = por %p308, %p309
    %p311 = scmp.ne.s32.totalorder %s300, %s303
    %p312 = scmp.eq.s32.totalorder %s29, 1
    %p313 = por %p311, %p312
    %p314 = scmp.ne.s32.totalorder %s303, %s304
    %p315 = scmp.eq.s32.totalorder %s29, 0
    %p316 = por %p314, %p315
    %p317 = scmp.ne.s32.totalorder %s303, %s304
    %p318 = scmp.eq.s32.totalorder %s30, 1
    %p319 = por %p317, %p318
    %p321 = scmp.ne.s32.totalorder %s304, %s320
    %p322 = scmp.eq.s32.totalorder %s30, 0
    %p323 = por %p321, %p322
    %s324 = ssub.s32 %s24, %s31
    %p325 = scmp.eq.s32.totalorder %s324, 0
    %s327 = sadd.s32 %s326, 1
    %s328 = scalar_select %p325, %s326, %s327
    %p331 = pneg %p325
    %p332 = scmp.eq.s32.totalorder %s24, 1
    %p333 = por %p331, %p332
    %p334 = scmp.ne.s32.totalorder %s326, %s329
    %p335 = scmp.eq.s32.totalorder %s24, 0
    %p336 = por %p334, %p335
    %p337 = scmp.ne.s32.totalorder %s326, %s329
    %p338 = scmp.eq.s32.totalorder %s29, 1
    %p339 = por %p337, %p338
    %p340 = scmp.ne.s32.totalorder %s329, %s330
    %p341 = scmp.eq.s32.totalorder %s29, 0
    %p342 = por %p340, %p341
    %p343 = scmp.ne.s32.totalorder %s329, %s330
    %p344 = scmp.eq.s32.totalorder %s30, 1
    %p345 = por %p343, %p344
    %p347 = scmp.ne.s32.totalorder %s330, %s346
    %p348 = scmp.eq.s32.totalorder %s30, 0
    %p349 = por %p347, %p348
    %s350 = ssub.s32 %s24, %s31
    %p351 = scmp.eq.s32.totalorder %s350, 0
    %s353 = sadd.s32 %s352, 1
    %s354 = scalar_select %p351, %s352, %s353
    %p357 = pneg %p351
    %p358 = scmp.eq.s32.totalorder %s24, 1
    %p359 = por %p357, %p358
    %p360 = scmp.ne.s32.totalorder %s352, %s355
    %p361 = scmp.eq.s32.totalorder %s24, 0
    %p362 = por %p360, %p361
    %p363 = scmp.ne.s32.totalorder %s352, %s355
    %p364 = scmp.eq.s32.totalorder %s29, 1
    %p365 = por %p363, %p364
    %p366 = scmp.ne.s32.totalorder %s355, %s356
    %p367 = scmp.eq.s32.totalorder %s29, 0
    %p368 = por %p366, %p367
    %p369 = scmp.ne.s32.totalorder %s355, %s356
    %p370 = scmp.eq.s32.totalorder %s30, 1
    %p371 = por %p369, %p370
    %p373 = scmp.ne.s32.totalorder %s356, %s372
    %p374 = scmp.eq.s32.totalorder %s30, 0
    %p375 = por %p373, %p374
    %s376 = ssub.s32 %s24, %s31
    %p377 = scmp.eq.s32.totalorder %s376, 0
    %s379 = sadd.s32 %s378, 1
    %s380 = scalar_select %p377, %s378, %s379
    %p383 = pneg %p377
    %p384 = scmp.eq.s32.totalorder %s24, 1
    %p385 = por %p383, %p384
    %p386 = scmp.ne.s32.totalorder %s378, %s381
    %p387 = scmp.eq.s32.totalorder %s24, 0
    %p388 = por %p386, %p387
    %p389 = scmp.ne.s32.totalorder %s378, %s381
    %p390 = scmp.eq.s32.totalorder %s29, 1
    %p391 = por %p389, %p390
    %p392 = scmp.ne.s32.totalorder %s381, %s382
    %p393 = scmp.eq.s32.totalorder %s29, 0
    %p394 = por %p392, %p393
    %p395 = scmp.ne.s32.totalorder %s381, %s382
    %p396 = scmp.eq.s32.totalorder %s30, 1
    %p397 = por %p395, %p396
    %p399 = scmp.ne.s32.totalorder %s382, %s398
    %p400 = scmp.eq.s32.totalorder %s30, 0
    %p401 = por %p399, %p400
    %s402 = ssub.s32 %s24, %s31
    %p403 = scmp.eq.s32.totalorder %s402, 0
    %s405 = sadd.s32 %s404, 1
    %s406 = scalar_select %p403, %s404, %s405
    %p409 = pneg %p403
    %p410 = scmp.eq.s32.totalorder %s24, 1
    %p411 = por %p409, %p410
    %p412 = scmp.ne.s32.totalorder %s404, %s407
    %p413 = scmp.eq.s32.totalorder %s24, 0
    %p414 = por %p412, %p413
    %p415 = scmp.ne.s32.totalorder %s404, %s407
    %p416 = scmp.eq.s32.totalorder %s29, 1
    %p417 = por %p415, %p416
    %p418 = scmp.ne.s32.totalorder %s407, %s408
    %p419 = scmp.eq.s32.totalorder %s29, 0
    %p420 = por %p418, %p419
    %p421 = scmp.ne.s32.totalorder %s407, %s408
    %p422 = scmp.eq.s32.totalorder %s30, 1
    %p423 = por %p421, %p422
    %p425 = scmp.ne.s32.totalorder %s408, %s424
    %p426 = scmp.eq.s32.totalorder %s30, 0
    %p427 = por %p425, %p426
    %s428 = ssub.s32 %s24, %s31
    %p429 = scmp.eq.s32.totalorder %s428, 0
    %s431 = sadd.s32 %s430, 1
    %s432 = scalar_select %p429, %s430, %s431
    %p435 = pneg %p429
    %p436 = scmp.eq.s32.totalorder %s24, 1
    %p437 = por %p435, %p436
    %p438 = scmp.ne.s32.totalorder %s430, %s433
    %p439 = scmp.eq.s32.totalorder %s24, 0
    %p440 = por %p438, %p439
    %p441 = scmp.ne.s32.totalorder %s430, %s433
    %p442 = scmp.eq.s32.totalorder %s29, 1
    %p443 = por %p441, %p442
    %p444 = scmp.ne.s32.totalorder %s433, %s434
    %p445 = scmp.eq.s32.totalorder %s29, 0
    %p446 = por %p444, %p445
    %p447 = scmp.ne.s32.totalorder %s433, %s434
    %p448 = scmp.eq.s32.totalorder %s30, 1
    %p449 = por %p447, %p448
    %p451 = scmp.ne.s32.totalorder %s434, %s450
    %p452 = scmp.eq.s32.totalorder %s30, 0
    %p453 = por %p451, %p452
    %s455 = sadd.s32 %s454, 1
    %p458 = scmp.eq.s32.totalorder %s24, 1
    %p459 = scmp.ne.s32.totalorder %s454, %s456
    %p460 = scmp.eq.s32.totalorder %s24, 0
    %p461 = por %p459, %p460
    %p462 = scmp.ne.s32.totalorder %s454, %s456
    %p463 = scmp.eq.s32.totalorder %s29, 1
    %p464 = por %p462, %p463
    %p465 = scmp.ne.s32.totalorder %s456, %s457
    %p466 = scmp.eq.s32.totalorder %s29, 0
    %p467 = por %p465, %p466
    %p468 = scmp.ne.s32.totalorder %s456, %s457
    %p469 = scmp.eq.s32.totalorder %s30, 1
    %p470 = por %p468, %p469
    %p472 = scmp.ne.s32.totalorder %s457, %s471
    %p473 = scmp.eq.s32.totalorder %s30, 0
    %p474 = por %p472, %p473
    %p475 = scmp.le.s32.totalorder 1, %s24
    %p476 = scmp.lt.s32.totalorder %s24, 3
    %p477 = pnand %p475, %p476
    %p478 = pneg %p477
    // Predicated region
    $region9: #{bert_for_text_classification.1} parent=5 // pred_check
      _
    $region10: #{bert_for_text_classification.1} parent=5 // pred_check_branch
      %480 = sbr.rel (%p477) target = $region12
    $region11: #{bert_for_text_classification.1} parent=5 // pred_region
      %s481 = ssub.s32 %s24, 1
      // Predicated region
      $region13: #{bert_for_text_classification.1} parent=11 // pred_check
        %p482 = pneg %p45
      $region14: #{bert_for_text_classification.1} parent=11 // pred_check_branch
        %484 = sbr.rel (%p482) target = $region16
      $region15: #{bert_for_text_classification.1} parent=11 // pred_region
        _
      $region16: #{bert_for_text_classification.1} parent=11 // pred_fallthru
        _
      // Predicated region
      $region17: #{bert_for_text_classification.1} parent=11 // pred_check
        %p485 = pneg %p66
      $region18: #{bert_for_text_classification.1} parent=11 // pred_check_branch
        %487 = sbr.rel (%p485) target = $region20
      $region19: #{bert_for_text_classification.1} parent=11 // pred_region
        _
      $region20: #{bert_for_text_classification.1} parent=11 // pred_fallthru
        _
      // Predicated region
      $region21: #{bert_for_text_classification.1} parent=11 // pred_check
        %p488 = pneg %p87
      $region22: #{bert_for_text_classification.1} parent=11 // pred_check_branch
        %490 = sbr.rel (%p488) target = $region24
      $region23: #{bert_for_text_classification.1} parent=11 // pred_region
        _
      $region24: #{bert_for_text_classification.1} parent=11 // pred_fallthru
        _
      // Predicated region
      $region25: #{bert_for_text_classification.1} parent=11 // pred_check
        %p491 = pneg %p108
      $region26: #{bert_for_text_classification.1} parent=11 // pred_check_branch
        %493 = sbr.rel (%p491) target = $region28
      $region27: #{bert_for_text_classification.1} parent=11 // pred_region
        _
      $region28: #{bert_for_text_classification.1} parent=11 // pred_fallthru
        _
    $region12: #{bert_for_text_classification.1} parent=5 // pred_fallthru
      _
    %p494 = scmp.lt.s32.totalorder %s24, 2
    // Predicated region
    $region29: #{bert_for_text_classification.1} parent=5 // pred_check
      %p495 = pneg %p494
    $region30: #{bert_for_text_classification.1} parent=5 // pred_check_branch
      %497 = sbr.rel (%p495) target = $region32
    $region31: #{bert_for_text_classification.1} parent=5 // pred_region
      // Predicated region
      $region33: #{bert_for_text_classification.1} parent=31 // pred_check
        %p498 = pneg %p128
      $region34: #{bert_for_text_classification.1} parent=31 // pred_check_branch
        %500 = sbr.rel (%p498) target = $region36
      $region35: #{bert_for_text_classification.1} parent=31 // pred_region
        %p501 = scmp.lt.s32.totalorder %s24, 1
        %s502 = scalar_select %p501, %s24, 1
        %s503 = smul.addr %s502, 12
        %s504 = smul.addr %s503, 4
        %s505 = scalar_lea.vmem %s4, %s504
      $region36: #{bert_for_text_classification.1} parent=31 // pred_fallthru
        _
      // Predicated region
      $region37: #{bert_for_text_classification.1} parent=31 // pred_check
        %p506 = pneg %p154
      $region38: #{bert_for_text_classification.1} parent=31 // pred_check_branch
        %508 = sbr.rel (%p506) target = $region40
      $region39: #{bert_for_text_classification.1} parent=31 // pred_region
        %p509 = scmp.lt.s32.totalorder %s24, 1
        %s510 = scalar_select %p509, %s24, 1
        %s511 = smul.addr %s510, 12
        %s512 = smul.addr %s511, 8
        %s513 = scalar_lea.vmem %s5, %s512
      $region40: #{bert_for_text_classification.1} parent=31 // pred_fallthru
        _
      // Predicated region
      $region41: #{bert_for_text_classification.1} parent=31 // pred_check
        %p514 = pneg %p180
      $region42: #{bert_for_text_classification.1} parent=31 // pred_check_branch
        %516 = sbr.rel (%p514) target = $region44
      $region43: #{bert_for_text_classification.1} parent=31 // pred_region
        %p517 = scmp.lt.s32.totalorder %s24, 1
        %s518 = scalar_select %p517, %s24, 1
        %s519 = smul.addr %s518, 4
        %s520 = smul.addr %s519, 4
        %s521 = scalar_lea.vmem %s6, %s520
      $region44: #{bert_for_text_classification.1} parent=31 // pred_fallthru
        _
      // Predicated region
      $region45: #{bert_for_text_classification.1} parent=31 // pred_check
        %p522 = pneg %p206
      $region46: #{bert_for_text_classification.1} parent=31 // pred_check_branch
        %524 = sbr.rel (%p522) target = $region48
      $region47: #{bert_for_text_classification.1} parent=31 // pred_region
        %p525 = scmp.lt.s32.totalorder %s24, 1
        %s526 = scalar_select %p525, %s24, 1
        %s527 = scalar_lea.vmem %s7, %s526
      $region48: #{bert_for_text_classification.1} parent=31 // pred_fallthru
        _
      // Predicated region
      $region49: #{bert_for_text_classification.1} parent=31 // pred_check
        %p528 = pneg %p232
      $region50: #{bert_for_text_classification.1} parent=31 // pred_check_branch
        %530 = sbr.rel (%p528) target = $region52
      $region51: #{bert_for_text_classification.1} parent=31 // pred_region
        %p531 = scmp.lt.s32.totalorder %s24, 1
        %s532 = scalar_select %p531, %s24, 1
        %s533 = scalar_lea.vmem %s8, %s532
      $region52: #{bert_for_text_classification.1} parent=31 // pred_fallthru
        _
      // Predicated region
      $region53: #{bert_for_text_classification.1} parent=31 // pred_check
        %p534 = pneg %p258
      $region54: #{bert_for_text_classification.1} parent=31 // pred_check_branch
        %536 = sbr.rel (%p534) target = $region56
      $region55: #{bert_for_text_classification.1} parent=31 // pred_region
        %p537 = scmp.lt.s32.totalorder %s24, 1
        %s538 = scalar_select %p537, %s24, 1
        %s539 = scalar_lea.vmem %s9, %s538
      $region56: #{bert_for_text_classification.1} parent=31 // pred_fallthru
        _
      // Predicated region
      $region57: #{bert_for_text_classification.1} parent=31 // pred_check
        %p540 = pneg %p284
      $region58: #{bert_for_text_classification.1} parent=31 // pred_check_branch
        %542 = sbr.rel (%p540) target = $region60
      $region59: #{bert_for_text_classification.1} parent=31 // pred_region
        %p543 = scmp.lt.s32.totalorder %s24, 1
        %s544 = scalar_select %p543, %s24, 1
        %s545 = smul.addr %s544, 4
        %s546 = smul.addr %s545, 4
        %s547 = scalar_lea.vmem %s10, %s546
      $region60: #{bert_for_text_classification.1} parent=31 // pred_fallthru
        _
      // Predicated region
      $region61: #{bert_for_text_classification.1} parent=31 // pred_check
        %p548 = pneg %p310
      $region62: #{bert_for_text_classification.1} parent=31 // pred_check_branch
        %550 = sbr.rel (%p548) target = $region64
      $region63: #{bert_for_text_classification.1} parent=31 // pred_region
        %p551 = scmp.lt.s32.totalorder %s24, 1
        %s552 = scalar_select %p551, %s24, 1
        %s553 = scalar_lea.vmem %s11, %s552
      $region64: #{bert_for_text_classification.1} parent=31 // pred_fallthru
        _
      // Predicated region
      $region65: #{bert_for_text_classification.1} parent=31 // pred_check
        %p554 = pneg %p336
      $region66: #{bert_for_text_classification.1} parent=31 // pred_check_branch
        %556 = sbr.rel (%p554) target = $region68
      $region67: #{bert_for_text_classification.1} parent=31 // pred_region
        %p557 = scmp.lt.s32.totalorder %s24, 1
        %s558 = scalar_select %p557, %s24, 1
        %s559 = smul.addr %s558, 8
        %s560 = smul.addr %s559, 4
        %s561 = scalar_lea.vmem %s12, %s560
      $region68: #{bert_for_text_classification.1} parent=31 // pred_fallthru
        _
      // Predicated region
      $region69: #{bert_for_text_classification.1} parent=31 // pred_check
        %p562 = pneg %p362
      $region70: #{bert_for_text_classification.1} parent=31 // pred_check_branch
        %564 = sbr.rel (%p562) target = $region72
      $region71: #{bert_for_text_classification.1} parent=31 // pred_region
        %p565 = scmp.lt.s32.totalorder %s24, 1
        %s566 = scalar_select %p565, %s24, 1
        %s567 = scalar_lea.vmem %s13, %s566
      $region72: #{bert_for_text_classification.1} parent=31 // pred_fallthru
        _
      // Predicated region
      $region73: #{bert_for_text_classification.1} parent=31 // pred_check
        %p568 = pneg %p388
      $region74: #{bert_for_text_classification.1} parent=31 // pred_check_branch
        %570 = sbr.rel (%p568) target = $region76
      $region75: #{bert_for_text_classification.1} parent=31 // pred_region
        %p571 = scmp.lt.s32.totalorder %s24, 1
        %s572 = scalar_select %p571, %s24, 1
        %s573 = scalar_lea.vmem %s14, %s572
      $region76: #{bert_for_text_classification.1} parent=31 // pred_fallthru
        _
      // Predicated region
      $region77: #{bert_for_text_classification.1} parent=31 // pred_check
        %p574 = pneg %p414
      $region78: #{bert_for_text_classification.1} parent=31 // pred_check_branch
        %576 = sbr.rel (%p574) target = $region80
      $region79: #{bert_for_text_classification.1} parent=31 // pred_region
        %p577 = scmp.lt.s32.totalorder %s24, 1
        %s578 = scalar_select %p577, %s24, 1
        %s579 = scalar_lea.vmem %s15, %s578
      $region80: #{bert_for_text_classification.1} parent=31 // pred_fallthru
        _
    $region32: #{bert_for_text_classification.1} parent=5 // pred_fallthru
      _
    %p580 = scmp.le.s32.totalorder 1, %s24
    %p581 = scmp.lt.s32.totalorder %s24, 3
    %p582 = pnand %p580, %p581
    %p583 = pneg %p582
    // Predicated region
    $region81: #{bert_for_text_classification.1} parent=5 // pred_check
      _
    $region82: #{bert_for_text_classification.1} parent=5 // pred_check_branch
      %585 = sbr.rel (%p582) target = $region84
    $region83: #{bert_for_text_classification.1} parent=5 // pred_region
      %s586 = ssub.s32 %s24, 1
      %p587 = pneg %p45
      %p588 = pneg %p42
      %p589 = pneg %p66
      %p590 = pneg %p63
      %p591 = pneg %p87
      %p592 = pneg %p84
      %p593 = pneg %p108
      %p594 = pneg %p105
      %p595 = scmp.lt.s32.totalorder %s29, 1
      %s596 = scalar_select %p595, %s29, 1
      %s597 = smul.addr %s596, 12
      %s598 = smul.addr %s597, 4
      %s599 = scalar_lea.vmem %s4, %s598
      %p600 = pneg %p134
      %p601 = pneg %p131
      %p602 = scmp.lt.s32.totalorder %s29, 1
      %s603 = scalar_select %p602, %s29, 1
      %s604 = smul.addr %s603, 12
      %s605 = smul.addr %s604, 8
      %s606 = scalar_lea.vmem %s5, %s605
      %p607 = pneg %p160
      %p608 = pneg %p157
      %p609 = scmp.lt.s32.totalorder %s29, 1
      %s610 = scalar_select %p609, %s29, 1
      %s611 = smul.addr %s610, 4
      %s612 = smul.addr %s611, 4
      %s613 = scalar_lea.vmem %s6, %s612
      %p614 = pneg %p186
      %p615 = pneg %p183
      %p616 = scmp.lt.s32.totalorder %s29, 1
      %s617 = scalar_select %p616, %s29, 1
      %s618 = scalar_lea.vmem %s7, %s617
      %p619 = pneg %p212
      %p620 = pneg %p209
      %p621 = scmp.lt.s32.totalorder %s29, 1
      %s622 = scalar_select %p621, %s29, 1
      %s623 = scalar_lea.vmem %s8, %s622
      %p624 = pneg %p238
      %p625 = pneg %p235
      %p626 = scmp.lt.s32.totalorder %s29, 1
      %s627 = scalar_select %p626, %s29, 1
      %s628 = scalar_lea.vmem %s9, %s627
      %p629 = pneg %p264
      %p630 = pneg %p261
      %p631 = scmp.lt.s32.totalorder %s29, 1
      %s632 = scalar_select %p631, %s29, 1
      %s633 = smul.addr %s632, 4
      %s634 = smul.addr %s633, 4
      %s635 = scalar_lea.vmem %s10, %s634
      %p636 = pneg %p290
      %p637 = pneg %p287
      %p638 = scmp.lt.s32.totalorder %s29, 1
      %s639 = scalar_select %p638, %s29, 1
      %s640 = scalar_lea.vmem %s11, %s639
      %p641 = pneg %p316
      %p642 = pneg %p313
      %p643 = scmp.lt.s32.totalorder %s29, 1
      %s644 = scalar_select %p643, %s29, 1
      %s645 = smul.addr %s644, 8
      %s646 = smul.addr %s645, 4
      %s647 = scalar_lea.vmem %s12, %s646
      %p648 = pneg %p342
      %p649 = pneg %p339
      %p650 = scmp.lt.s32.totalorder %s29, 1
      %s651 = scalar_select %p650, %s29, 1
      %s652 = scalar_lea.vmem %s13, %s651
      %p653 = pneg %p368
      %p654 = pneg %p365
      %p655 = scmp.lt.s32.totalorder %s29, 1
      %s656 = scalar_select %p655, %s29, 1
      %s657 = scalar_lea.vmem %s14, %s656
      %p658 = pneg %p394
      %p659 = pneg %p391
      %p660 = scmp.lt.s32.totalorder %s29, 1
      %s661 = scalar_select %p660, %s29, 1
      %s662 = scalar_lea.vmem %s15, %s661
      %p663 = pneg %p420
      %p664 = pneg %p417
      %p665 = pneg %p446
      %p666 = pneg %p443
      %p667 = scmp.lt.s32.totalorder %s29, 1
      %s668 = scalar_select %p667, %s29, 1
      %s669 = smul.addr %s668, 8
      %s670 = smul.addr %s669, 8
      %s671 = scalar_lea.vmem %s16, %s670
      %p672 = pneg %p467
      %p673 = pneg %p464
      %p674 = scmp.lt.s32.totalorder %s29, 1
      %s675 = scalar_select %p674, %s29, 1
      %s676 = smul.addr %s675, 12
      %s677 = smul.addr %s676, 4
      %s678 = scalar_lea.vmem %s4, %s677
      %p679 = scmp.lt.s32.totalorder %s29, 1
      %s680 = scalar_select %p679, %s29, 1
      %s681 = smul.addr %s680, 12
      %s682 = smul.addr %s681, 8
      %s683 = scalar_lea.vmem %s5, %s682
      %p684 = scmp.lt.s32.totalorder %s29, 1
      %s685 = scalar_select %p684, %s29, 1
      %s686 = smul.addr %s685, 4
      %s687 = smul.addr %s686, 4
      %s688 = scalar_lea.vmem %s6, %s687
      %p689 = scmp.lt.s32.totalorder %s29, 1
      %s690 = scalar_select %p689, %s29, 1
      %s691 = scalar_lea.vmem %s7, %s690
      %p692 = scmp.lt.s32.totalorder %s29, 1
      %s693 = scalar_select %p692, %s29, 1
      %s694 = scalar_lea.vmem %s8, %s693
      %p695 = scmp.lt.s32.totalorder %s29, 1
      %s696 = scalar_select %p695, %s29, 1
      %s697 = scalar_lea.vmem %s9, %s696
      %p698 = scmp.lt.s32.totalorder %s29, 1
      %s699 = scalar_select %p698, %s29, 1
      %s700 = smul.addr %s699, 4
      %s701 = smul.addr %s700, 4
      %s702 = scalar_lea.vmem %s10, %s701
      %p703 = scmp.lt.s32.totalorder %s29, 1
      %s704 = scalar_select %p703, %s29, 1
      %s705 = scalar_lea.vmem %s11, %s704
      %p706 = scmp.lt.s32.totalorder %s29, 1
      %s707 = scalar_select %p706, %s29, 1
      %s708 = smul.addr %s707, 8
      %s709 = smul.addr %s708, 4
      %s710 = scalar_lea.vmem %s12, %s709
      %p711 = scmp.lt.s32.totalorder %s29, 1
      %s712 = scalar_select %p711, %s29, 1
      %s713 = scalar_lea.vmem %s13, %s712
      %p714 = scmp.lt.s32.totalorder %s29, 1
      %s715 = scalar_select %p714, %s29, 1
      %s716 = scalar_lea.vmem %s14, %s715
      %p717 = scmp.lt.s32.totalorder %s29, 1
      %s718 = scalar_select %p717, %s29, 1
      %s719 = scalar_lea.vmem %s15, %s718
      %p720 = scmp.lt.s32.totalorder %s29, 1
      %s721 = scalar_select %p720, %s29, 1
      %s722 = smul.addr %s721, 8
      %s723 = smul.addr %s722, 8
      %s724 = scalar_lea.vmem %s16, %s723
      %p726 = scmp.eq.s32.totalorder %s29, 0
      // Predicated region
      $region85: #{bert_for_text_classification.1} parent=83 // pred_check
        %p727 = pneg %p726
      $region86: #{bert_for_text_classification.1} parent=83 // pred_check_branch
        %729 = sbr.rel (%p727) target = $region88
      $region87: #{bert_for_text_classification.1} parent=83 // pred_region
        %v730 = vld [vmem:[%s0] sm:$0xff]
        %v731 = vld [vmem:[%s0 + $0x8] sm:$0xff]
        %v732 = vld [vmem:[%s2] sm:$0x1]
        %v733 = vld [vmem:[%s3] sm:$0x1]
        %vm734 = vcmask 261120
        %v735 = vsel %vm734, %v730, 0.0
        %736 = vadd.xlane.f32.xlu0 %v735
        %v737 = vpop.xlane.xlu0 %736
        %v738 = vsel %vm734, %v731, 0.0
        %739 = vadd.xlane.f32.xlu0 %v738
        %v740 = vpop.xlane.xlu0 %739
        %v741 = vrcp.pop 32.0
        %v742 = vmul.f32 %v737, %v741
        %v743 = vmul.f32 %v740, %v741
        %v744 = vsub.f32 %v730, %v742
        %v745 = vsub.f32 %v731, %v743
        %v746 = vmul.f32 %v744, %v744
        %v747 = vmul.f32 %v745, %v745
        %v748 = vsel %vm734, %v746, 0.0
        %749 = vadd.xlane.f32.xlu0 %v748
        %v750 = vpop.xlane.xlu0 %749
        %v751 = vsel %vm734, %v747, 0.0
        %752 = vadd.xlane.f32.xlu0 %v751
        %v753 = vpop.xlane.xlu0 %752
        %v754 = vmul.f32 %v750, %v741
        %v755 = vmul.f32 %v753, %v741
        %v756 = vadd.f32 %v754, 1e-12
        %v757 = vadd.f32 %v755, 1e-12
        %v758 = vrsqrt.pop %v756
        %v759 = vrsqrt.pop %v757
        %v760 = vmul.f32 %v744, %v758
        %v761 = vmul.f32 %v745, %v759
        %v763 = vlaneseq
        %v764 = vshrl.u32 %v763, 7
        %v765 = vsub.s32 0, %v764
        %v766 = vrot.slane %v732, %v765
        %v768 = vmul.f32 %v760, %v766
        %v769 = vmul.f32 %v761, %v766
        %v771 = vlaneseq
        %v772 = vshrl.u32 %v771, 7
        %v773 = vsub.s32 0, %v772
        %v774 = vrot.slane %v733, %v773
        %v776 = vadd.f32 %v768, %v774
        %v777 = vadd.f32 %v769, %v774
        %778 = vst.msk [vmem:[%s17] sm:$0xff] %vm734, %v776
        %779 = vst.msk [vmem:[%s17 + $0x8] sm:$0xff] %vm734, %v777
      $region88: #{bert_for_text_classification.1} parent=83 // pred_fallthru
        _
      %v780 = vld [vmem:[%s17] sm:$0xff]
      %v781 = vld [vmem:[%s17 + $0x8] sm:$0xff]
      %v782 = vld [vmem:[%s1] sm:$0x3]
      %v783 = vld [vmem:[%s678] sm:$0xf]
      %v784 = vld [vmem:[%s678 + $0x4] sm:$0xf]
      %v785 = vld [vmem:[%s678 + $0x8] sm:$0xf]
      %v786 = vld [vmem:[%s678 + $0xc] sm:$0xf]
      %v787 = vld [vmem:[%s678 + $0x10] sm:$0xf]
      %v788 = vld [vmem:[%s678 + $0x14] sm:$0xf]
      %v789 = vld [vmem:[%s678 + $0x18] sm:$0xf]
      %v790 = vld [vmem:[%s678 + $0x1c] sm:$0xf]
      %v791 = vld [vmem:[%s678 + $0x20] sm:$0xf]
      %v792 = vld [vmem:[%s678 + $0x24] sm:$0xf]
      %v793 = vld [vmem:[%s678 + $0x28] sm:$0xf]
      %v794 = vld [vmem:[%s678 + $0x2c] sm:$0xf]
      %v795 = vld [vmem:[%s683] sm:$0xff]
      %v796 = vld [vmem:[%s683 + $0x8] sm:$0xff]
      %v797 = vld [vmem:[%s683 + $0x10] sm:$0xff]
      %v798 = vld [vmem:[%s683 + $0x18] sm:$0xff]
      %v799 = vld [vmem:[%s683 + $0x20] sm:$0xff]
      %v800 = vld [vmem:[%s683 + $0x28] sm:$0xff]
      %v801 = vld [vmem:[%s683 + $0x30] sm:$0xff]
      %v802 = vld [vmem:[%s683 + $0x38] sm:$0xff]
      %v803 = vld [vmem:[%s683 + $0x40] sm:$0xff]
      %v804 = vld [vmem:[%s683 + $0x48] sm:$0xff]
      %v805 = vld [vmem:[%s683 + $0x50] sm:$0xff]
      %v806 = vld [vmem:[%s683 + $0x58] sm:$0xff]
      %v807 = vld [vmem:[%s688] sm:$0xf]
      %v808 = vld [vmem:[%s688 + $0x4] sm:$0xf]
      %v809 = vld [vmem:[%s688 + $0x8] sm:$0xf]
      %v810 = vld [vmem:[%s688 + $0xc] sm:$0xf]
      %v811 = vld [vmem:[%s702] sm:$0xf]
      %v812 = vld [vmem:[%s702 + $0x4] sm:$0xf]
      %v813 = vld [vmem:[%s702 + $0x8] sm:$0xf]
      %v814 = vld [vmem:[%s702 + $0xc] sm:$0xf]
      %v815 = vld [vmem:[%s710] sm:$0xf]
      %v816 = vld [vmem:[%s710 + $0x4] sm:$0xf]
      %v817 = vld [vmem:[%s710 + $0x8] sm:$0xf]
      %v818 = vld [vmem:[%s710 + $0xc] sm:$0xf]
      %v819 = vld [vmem:[%s710 + $0x10] sm:$0xf]
      %v820 = vld [vmem:[%s710 + $0x14] sm:$0xf]
      %v821 = vld [vmem:[%s710 + $0x18] sm:$0xf]
      %v822 = vld [vmem:[%s710 + $0x1c] sm:$0xf]
      %v823 = vpack.c.bf16 %v780, %v780
      %825 = vset.pattern.permute.xlu0 0
      %826 = vperm.xlu0 %825, %v795
      %v827 = vpop.permute.xlu0 %826
      %830 = vset.pattern.permute.xlu0 0
      %831 = vperm.xlu0 %830, %v796
      %v832 = vpop.permute.xlu0 %831
      %835 = vset.pattern.permute.xlu0 0
      %836 = vperm.xlu0 %835, %v797
      %v837 = vpop.permute.xlu0 %836
      %840 = vset.pattern.permute.xlu0 0
      %841 = vperm.xlu0 %840, %v798
      %v842 = vpop.permute.xlu0 %841
      %845 = vset.pattern.permute.xlu0 0
      %846 = vperm.xlu0 %845, %v799
      %v847 = vpop.permute.xlu0 %846
      %850 = vset.pattern.permute.xlu0 0
      %851 = vperm.xlu0 %850, %v800
      %v852 = vpop.permute.xlu0 %851
      %855 = vset.pattern.permute.xlu0 0
      %856 = vperm.xlu0 %855, %v801
      %v857 = vpop.permute.xlu0 %856
      %860 = vset.pattern.permute.xlu0 0
      %861 = vperm.xlu0 %860, %v802
      %v862 = vpop.permute.xlu0 %861
      %865 = vset.pattern.permute.xlu0 0
      %866 = vperm.xlu0 %865, %v803
      %v867 = vpop.permute.xlu0 %866
      %870 = vset.pattern.permute.xlu0 0
      %871 = vperm.xlu0 %870, %v804
      %v872 = vpop.permute.xlu0 %871
      %875 = vset.pattern.permute.xlu0 0
      %876 = vperm.xlu0 %875, %v805
      %v877 = vpop.permute.xlu0 %876
      %880 = vset.pattern.permute.xlu0 0
      %881 = vperm.xlu0 %880, %v806
      %v882 = vpop.permute.xlu0 %881
      %v896 = vunpack.c.l.b16 %v783
      %v897 = vunpack.c.l.b16 %v784
      %v898 = vunpack.c.l.b16 %v785
      %v899 = vunpack.c.l.b16 %v786
      %v900 = vunpack.c.l.b16 %v787
      %v901 = vunpack.c.l.b16 %v788
      %v902 = vunpack.c.l.b16 %v789
      %v903 = vunpack.c.l.b16 %v790
      %v904 = vunpack.c.l.b16 %v791
      %v905 = vunpack.c.l.b16 %v792
      %v906 = vunpack.c.l.b16 %v793
      %v907 = vunpack.c.l.b16 %v794
      %v908 = vpack.c.b16 %v897, %v896
      %v909 = vpack.c.b16 %v899, %v898
      %v910 = vpack.c.b16 %v901, %v900
      %v911 = vpack.c.b16 %v903, %v902
      %v912 = vpack.c.b16 %v905, %v904
      %v913 = vpack.c.b16 %v907, %v906
      %vm914 = vcmask 261120
      %v916 = vsel %vm914, %v908, 0
      %v919 = vsel %vm914, %v909, 0
      %v922 = vsel %vm914, %v910, 0
      %v925 = vsel %vm914, %v911, 0
      %v928 = vsel %vm914, %v912, 0
      %v931 = vsel %vm914, %v913, 0
      %v934 = vsel %vm914, %v823, 0
      %936 = vmatprep.subr.bf16.mxu0 0
      %937 = vmatpush1.bf16.xpose.msra.mxu0 %v934
      %938 = vmatprep.subr.bf16.mxu0 0
      %939 = vmatpush1.bf16.xpose.msra.mxu0 0
      %940 = vmatprep.subr.bf16.mxu0 0
      %941 = vmatpush1.bf16.xpose.msra.mxu0 0
      %942 = vmatprep.subr.bf16.mxu0 0
      %943 = vmatpush1.bf16.xpose.msra.mxu0 0
      %944 = vmatprep.subr.bf16.mxu0 0
      %945 = vmatpush1.bf16.xpose.msra.mxu0 0
      %946 = vmatprep.subr.bf16.mxu0 0
      %947 = vmatpush1.bf16.xpose.msra.mxu0 0
      %948 = vmatprep.subr.bf16.mxu0 0
      %949 = vmatpush1.bf16.xpose.msra.mxu0 0
      %950 = vmatprep.subr.bf16.mxu0 0
      %951 = vmatpush1.bf16.xpose.msra.mxu0 0
      %952 = vmatprep.subr.bf16.mxu0 0
      %953 = vmatpush1.bf16.xpose.msra.mxu0 0
      %954 = vmatprep.subr.bf16.mxu0 0
      %955 = vmatpush1.bf16.xpose.msra.mxu0 0
      %956 = vmatprep.subr.bf16.mxu0 0
      %957 = vmatpush1.bf16.xpose.msra.mxu0 0
      %958 = vmatprep.subr.bf16.mxu0 0
      %959 = vmatpush1.bf16.xpose.msra.mxu0 0
      %960 = vmatprep.subr.bf16.mxu0 0
      %961 = vmatpush1.bf16.xpose.msra.mxu0 0
      %962 = vmatprep.subr.bf16.mxu0 0
      %963 = vmatpush1.bf16.xpose.msra.mxu0 0
      %964 = vmatprep.subr.bf16.mxu0 0
      %965 = vmatpush1.bf16.xpose.msra.mxu0 0
      %966 = vmatprep.subr.bf16.mxu0 0
      %967 = vmatpush1.bf16.xpose.msra.mxu0 0
      %968 = vmatprep.mubr.bf16.mxu0 0
      %969 = vmatmul.mubr.bf16.gmra.mrb[0].mxu0 %v916
      %v970 = vpop.f32.mrb[0].mxu0
      %v971 = vadd.f32 %v827, %v970
      %v972 = vpop.f32.mrb[0].mxu0
      %v973 = vpop.f32.mrb[0].mxu0
      %v974 = vadd.f32 %v832, %v973
      %v975 = vpop.f32.mrb[0].mxu0
      %976 = vmatprep.mubr.bf16.mxu0 0
      %977 = vmatmul.mubr.bf16.gmra.mrb[0].mxu0 %v919
      %v978 = vpop.f32.mrb[0].mxu0
      %v979 = vadd.f32 %v837, %v978
      %v980 = vpop.f32.mrb[0].mxu0
      %v981 = vpop.f32.mrb[0].mxu0
      %v982 = vadd.f32 %v842, %v981
      %v983 = vpop.f32.mrb[0].mxu0
      %984 = vmatprep.mubr.bf16.mxu0 0
      %985 = vmatmul.mubr.bf16.gmra.mrb[0].mxu0 %v922
      %v986 = vpop.f32.mrb[0].mxu0
      %v987 = vadd.f32 %v847, %v986
      %v988 = vpop.f32.mrb[0].mxu0
      %v989 = vpop.f32.mrb[0].mxu0
      %v990 = vadd.f32 %v852, %v989
      %v991 = vpop.f32.mrb[0].mxu0
      %992 = vmatprep.mubr.bf16.mxu0 0
      %993 = vmatmul.mubr.bf16.gmra.mrb[0].mxu0 %v925
      %v994 = vpop.f32.mrb[0].mxu0
      %v995 = vadd.f32 %v857, %v994
      %v996 = vpop.f32.mrb[0].mxu0
      %v997 = vpop.f32.mrb[0].mxu0
      %v998 = vadd.f32 %v862, %v997
      %v999 = vpop.f32.mrb[0].mxu0
      %1000 = vmatprep.mubr.bf16.mxu0 0
      %1001 = vmatmul.mubr.bf16.gmra.mrb[0].mxu0 %v928
      %v1002 = vpop.f32.mrb[0].mxu0
      %v1003 = vadd.f32 %v867, %v1002
      %v1004 = vpop.f32.mrb[0].mxu0
      %v1005 = vpop.f32.mrb[0].mxu0
      %v1006 = vadd.f32 %v872, %v1005
      %v1007 = vpop.f32.mrb[0].mxu0
      %1008 = vmatprep.mubr.bf16.mxu0 0
      %1009 = vmatmul.mubr.bf16.gmra.mrb[0].mxu0 %v931
      %v1010 = vpop.f32.mrb[0].mxu0
      %v1011 = vadd.f32 %v877, %v1010
      %v1012 = vpop.f32.mrb[0].mxu0
      %v1013 = vpop.f32.mrb[0].mxu0
      %v1014 = vadd.f32 %v882, %v1013
      %v1015 = vpop.f32.mrb[0].mxu0
      %1016 = vdwg.mxu0
      %1017 = vxpose.xlu0.b32.start [1/16] %v971, 128
      %1018 = vxpose.xlu0.b32.cont [2/16] 0.0, 128
      %1019 = vxpose.xlu0.b32.cont [3/16] 0.0, 128
      %1020 = vxpose.xlu0.b32.cont [4/16] 0.0, 128
      %1021 = vxpose.xlu0.b32.cont [5/16] 0.0, 128
      %1022 = vxpose.xlu0.b32.cont [6/16] 0.0, 128
      %1023 = vxpose.xlu0.b32.cont [7/16] 0.0, 128
      %1024 = vxpose.xlu0.b32.cont [8/16] 0.0, 128
      %1025 = vxpose.xlu0.b32.cont [9/16] 0.0, 128
      %1026 = vxpose.xlu0.b32.cont [10/16] 0.0, 128
      %1027 = vxpose.xlu0.b32.cont [11/16] 0.0, 128
      %1028 = vxpose.xlu0.b32.cont [12/16] 0.0, 128
      %1029 = vxpose.xlu0.b32.cont [13/16] 0.0, 128
      %1030 = vxpose.xlu0.b32.cont [14/16] 0.0, 128
      %1031 = vxpose.xlu0.b32.cont [15/16] 0.0, 128
      %1032 = vxpose.xlu0.b32.end [16/16] 0.0, 128
      %v1033 = vpop.trf.xlu0
      %v1034 = vpop.trf.xlu0
      %v1035 = vpop.trf.xlu0
      %v1036 = vpop.trf.xlu0
      %v1037 = vpop.trf.xlu0
      %v1038 = vpop.trf.xlu0
      %v1039 = vpop.trf.xlu0
      %v1040 = vpop.trf.xlu0
      %v1041 = vpop.trf.xlu0
      %v1042 = vpop.trf.xlu0
      %v1043 = vpop.trf.xlu0
      %v1044 = vpop.trf.xlu0
      %v1045 = vpop.trf.xlu0
      %v1046 = vpop.trf.xlu0
      %v1047 = vpop.trf.xlu0
      %v1048 = vpop.trf.xlu0
      %vm1049 = vcmask 64512
      %v1051 = vsel %vm1049, %v1033, 0
      %1053 = vmatprep.subr.mxu0 0.0
      %1054 = vmatpush1.msra.mxu0 %v987
      %1055 = vmatprep.subr.mxu0 0.0
      %1056 = vmatpush1.msra.mxu0 0.0
      %1057 = vmatprep.subr.mxu0 0.0
      %1058 = vmatpush1.msra.mxu0 0.0
      %1059 = vmatprep.subr.mxu0 0.0
      %1060 = vmatpush1.msra.mxu0 0.0
      %1061 = vmatprep.subr.mxu0 0.0
      %1062 = vmatpush1.msra.mxu0 0.0
      %1063 = vmatprep.subr.mxu0 0.0
      %1064 = vmatpush1.msra.mxu0 0.0
      %1065 = vmatprep.subr.mxu0 0.0
      %1066 = vmatpush1.msra.mxu0 0.0
      %1067 = vmatprep.subr.mxu0 0.0
      %1068 = vmatpush1.msra.mxu0 0.0
      %1069 = vmatprep.subr.mxu0 0.0
      %1070 = vmatpush1.msra.mxu0 0.0
      %1071 = vmatprep.subr.mxu0 0.0
      %1072 = vmatpush1.msra.mxu0 0.0
      %1073 = vmatprep.subr.mxu0 0.0
      %1074 = vmatpush1.msra.mxu0 0.0
      %1075 = vmatprep.subr.mxu0 0.0
      %1076 = vmatpush1.msra.mxu0 0.0
      %1077 = vmatprep.subr.mxu0 0.0
      %1078 = vmatpush1.msra.mxu0 0.0
      %1079 = vmatprep.subr.mxu0 0.0
      %1080 = vmatpush1.msra.mxu0 0.0
      %1081 = vmatprep.subr.mxu0 0.0
      %1082 = vmatpush1.msra.mxu0 0.0
      %1083 = vmatprep.subr.mxu0 0.0
      %1084 = vmatpush1.msra.mxu0 0.0
      %1085 = vmatprep.subr.mxu0 0.0
      %1086 = vmatpush1.msra.mxu0 0.0
      %1087 = vmatprep.subr.mxu0 0.0
      %1088 = vmatpush1.msra.mxu0 0.0
      %1089 = vmatprep.subr.mxu0 0.0
      %1090 = vmatpush1.msra.mxu0 0.0
      %1091 = vmatprep.subr.mxu0 0.0
      %1092 = vmatpush1.msra.mxu0 0.0
      %1093 = vmatprep.subr.mxu0 0.0
      %1094 = vmatpush1.msra.mxu0 0.0
      %1095 = vmatprep.subr.mxu0 0.0
      %1096 = vmatpush1.msra.mxu0 0.0
      %1097 = vmatprep.subr.mxu0 0.0
      %1098 = vmatpush1.msra.mxu0 0.0
      %1099 = vmatprep.subr.mxu0 0.0
      %1100 = vmatpush1.msra.mxu0 0.0
      %1101 = vmatprep.subr.mxu0 0.0
      %1102 = vmatpush1.msra.mxu0 0.0
      %1103 = vmatprep.subr.mxu0 0.0
      %1104 = vmatpush1.msra.mxu0 0.0
      %1105 = vmatprep.subr.mxu0 0.0
      %1106 = vmatpush1.msra.mxu0 0.0
      %1107 = vmatprep.subr.mxu0 0.0
      %1108 = vmatpush1.msra.mxu0 0.0
      %1109 = vmatprep.subr.mxu0 0.0
      %1110 = vmatpush1.msra.mxu0 0.0
      %1111 = vmatprep.subr.mxu0 0.0
      %1112 = vmatpush1.msra.mxu0 0.0
      %1113 = vmatprep.subr.mxu0 0.0
      %1114 = vmatpush1.msra.mxu0 0.0
      %1115 = vmatprep.subr.mxu0 0.0
      %1116 = vmatpush1.msra.mxu0 0.0
      %1117 = vmatprep.mubr.f32.mxu0 0.0
      %1118 = vmatmul.mubr.f32.gmra.mrb[0].mxu0 %v1051
      %v1119 = vpop.f32.mrb[0].mxu0
      %v1120 = vadd.f32 0.0, %v1119
      %v1121 = vpop.f32.mrb[0].mxu0
      %1122 = vdwg.mxu0
      %1123 = vxpose.xlu0.b32.start [1/16] %v974, 128
      %1124 = vxpose.xlu0.b32.cont [2/16] 0.0, 128
      %1125 = vxpose.xlu0.b32.cont [3/16] 0.0, 128
      %1126 = vxpose.xlu0.b32.cont [4/16] 0.0, 128
      %1127 = vxpose.xlu0.b32.cont [5/16] 0.0, 128
      %1128 = vxpose.xlu0.b32.cont [6/16] 0.0, 128
      %1129 = vxpose.xlu0.b32.cont [7/16] 0.0, 128
      %1130 = vxpose.xlu0.b32.cont [8/16] 0.0, 128
      %1131 = vxpose.xlu0.b32.cont [9/16] 0.0, 128
      %1132 = vxpose.xlu0.b32.cont [10/16] 0.0, 128
      %1133 = vxpose.xlu0.b32.cont [11/16] 0.0, 128
      %1134 = vxpose.xlu0.b32.cont [12/16] 0.0, 128
      %1135 = vxpose.xlu0.b32.cont [13/16] 0.0, 128
      %1136 = vxpose.xlu0.b32.cont [14/16] 0.0, 128
      %1137 = vxpose.xlu0.b32.cont [15/16] 0.0, 128
      %1138 = vxpose.xlu0.b32.end [16/16] 0.0, 128
      %v1139 = vpop.trf.xlu0
      %v1140 = vpop.trf.xlu0
      %v1141 = vpop.trf.xlu0
      %v1142 = vpop.trf.xlu0
      %v1143 = vpop.trf.xlu0
      %v1144 = vpop.trf.xlu0
      %v1145 = vpop.trf.xlu0
      %v1146 = vpop.trf.xlu0
      %v1147 = vpop.trf.xlu0
      %v1148 = vpop.trf.xlu0
      %v1149 = vpop.trf.xlu0
      %v1150 = vpop.trf.xlu0
      %v1151 = vpop.trf.xlu0
      %v1152 = vpop.trf.xlu0
      %v1153 = vpop.trf.xlu0
      %v1154 = vpop.trf.xlu0
      %v1156 = vsel %vm1049, %v1139, 0
      %1158 = vmatprep.subr.mxu0 0.0
      %1159 = vmatpush1.msra.mxu0 %v990
      %1160 = vmatprep.subr.mxu0 0.0
      %1161 = vmatpush1.msra.mxu0 0.0
      %1162 = vmatprep.subr.mxu0 0.0
      %1163 = vmatpush1.msra.mxu0 0.0
      %1164 = vmatprep.subr.mxu0 0.0
      %1165 = vmatpush1.msra.mxu0 0.0
      %1166 = vmatprep.subr.mxu0 0.0
      %1167 = vmatpush1.msra.mxu0 0.0
      %1168 = vmatprep.subr.mxu0 0.0
      %1169 = vmatpush1.msra.mxu0 0.0
      %1170 = vmatprep.subr.mxu0 0.0
      %1171 = vmatpush1.msra.mxu0 0.0
      %1172 = vmatprep.subr.mxu0 0.0
      %1173 = vmatpush1.msra.mxu0 0.0
      %1174 = vmatprep.subr.mxu0 0.0
      %1175 = vmatpush1.msra.mxu0 0.0
      %1176 = vmatprep.subr.mxu0 0.0
      %1177 = vmatpush1.msra.mxu0 0.0
      %1178 = vmatprep.subr.mxu0 0.0
      %1179 = vmatpush1.msra.mxu0 0.0
      %1180 = vmatprep.subr.mxu0 0.0
      %1181 = vmatpush1.msra.mxu0 0.0
      %1182 = vmatprep.subr.mxu0 0.0
      %1183 = vmatpush1.msra.mxu0 0.0
      %1184 = vmatprep.subr.mxu0 0.0
      %1185 = vmatpush1.msra.mxu0 0.0
      %1186 = vmatprep.subr.mxu0 0.0
      %1187 = vmatpush1.msra.mxu0 0.0
      %1188 = vmatprep.subr.mxu0 0.0
      %1189 = vmatpush1.msra.mxu0 0.0
      %1190 = vmatprep.subr.mxu0 0.0
      %1191 = vmatpush1.msra.mxu0 0.0
      %1192 = vmatprep.subr.mxu0 0.0
      %1193 = vmatpush1.msra.mxu0 0.0
      %1194 = vmatprep.subr.mxu0 0.0
      %1195 = vmatpush1.msra.mxu0 0.0
      %1196 = vmatprep.subr.mxu0 0.0
      %1197 = vmatpush1.msra.mxu0 0.0
      %1198 = vmatprep.subr.mxu0 0.0
      %1199 = vmatpush1.msra.mxu0 0.0
      %1200 = vmatprep.subr.mxu0 0.0
      %1201 = vmatpush1.msra.mxu0 0.0
      %1202 = vmatprep.subr.mxu0 0.0
      %1203 = vmatpush1.msra.mxu0 0.0
      %1204 = vmatprep.subr.mxu0 0.0
      %1205 = vmatpush1.msra.mxu0 0.0
      %1206 = vmatprep.subr.mxu0 0.0
      %1207 = vmatpush1.msra.mxu0 0.0
      %1208 = vmatprep.subr.mxu0 0.0
      %1209 = vmatpush1.msra.mxu0 0.0
      %1210 = vmatprep.subr.mxu0 0.0
      %1211 = vmatpush1.msra.mxu0 0.0
      %1212 = vmatprep.subr.mxu0 0.0
      %1213 = vmatpush1.msra.mxu0 0.0
      %1214 = vmatprep.subr.mxu0 0.0
      %1215 = vmatpush1.msra.mxu0 0.0
      %1216 = vmatprep.subr.mxu0 0.0
      %1217 = vmatpush1.msra.mxu0 0.0
      %1218 = vmatprep.subr.mxu0 0.0
      %1219 = vmatpush1.msra.mxu0 0.0
      %1220 = vmatprep.subr.mxu0 0.0
      %1221 = vmatpush1.msra.mxu0 0.0
      %1222 = vmatprep.mubr.f32.mxu0 0.0
      %1223 = vmatmul.mubr.f32.gmra.mrb[0].mxu0 %v1156
      %v1224 = vpop.f32.mrb[0].mxu0
      %v1225 = vadd.f32 0.0, %v1224
      %v1226 = vpop.f32.mrb[0].mxu0
      %1227 = vdwg.mxu0
      %1228 = vxpose.xlu0.b32.start [1/16] %v979, 128
      %1229 = vxpose.xlu0.b32.cont [2/16] 0.0, 128
      %1230 = vxpose.xlu0.b32.cont [3/16] 0.0, 128
      %1231 = vxpose.xlu0.b32.cont [4/16] 0.0, 128
      %1232 = vxpose.xlu0.b32.cont [5/16] 0.0, 128
      %1233 = vxpose.xlu0.b32.cont [6/16] 0.0, 128
      %1234 = vxpose.xlu0.b32.cont [7/16] 0.0, 128
      %1235 = vxpose.xlu0.b32.cont [8/16] 0.0, 128
      %1236 = vxpose.xlu0.b32.cont [9/16] 0.0, 128
      %1237 = vxpose.xlu0.b32.cont [10/16] 0.0, 128
      %1238 = vxpose.xlu0.b32.cont [11/16] 0.0, 128
      %1239 = vxpose.xlu0.b32.cont [12/16] 0.0, 128
      %1240 = vxpose.xlu0.b32.cont [13/16] 0.0, 128
      %1241 = vxpose.xlu0.b32.cont [14/16] 0.0, 128
      %1242 = vxpose.xlu0.b32.cont [15/16] 0.0, 128
      %1243 = vxpose.xlu0.b32.end [16/16] 0.0, 128
      %v1244 = vpop.trf.xlu0
      %v1245 = vpop.trf.xlu0
      %v1246 = vpop.trf.xlu0
      %v1247 = vpop.trf.xlu0
      %v1248 = vpop.trf.xlu0
      %v1249 = vpop.trf.xlu0
      %v1250 = vpop.trf.xlu0
      %v1251 = vpop.trf.xlu0
      %v1252 = vpop.trf.xlu0
      %v1253 = vpop.trf.xlu0
      %v1254 = vpop.trf.xlu0
      %v1255 = vpop.trf.xlu0
      %v1256 = vpop.trf.xlu0
      %v1257 = vpop.trf.xlu0
      %v1258 = vpop.trf.xlu0
      %v1259 = vpop.trf.xlu0
      %v1261 = vsel %vm1049, %v1244, 0
      %1263 = vmatprep.subr.mxu0 0.0
      %1264 = vmatpush1.msra.mxu0 %v995
      %1265 = vmatprep.subr.mxu0 0.0
      %1266 = vmatpush1.msra.mxu0 0.0
      %1267 = vmatprep.subr.mxu0 0.0
      %1268 = vmatpush1.msra.mxu0 0.0
      %1269 = vmatprep.subr.mxu0 0.0
      %1270 = vmatpush1.msra.mxu0 0.0
      %1271 = vmatprep.subr.mxu0 0.0
      %1272 = vmatpush1.msra.mxu0 0.0
      %1273 = vmatprep.subr.mxu0 0.0
      %1274 = vmatpush1.msra.mxu0 0.0
      %1275 = vmatprep.subr.mxu0 0.0
      %1276 = vmatpush1.msra.mxu0 0.0
      %1277 = vmatprep.subr.mxu0 0.0
      %1278 = vmatpush1.msra.mxu0 0.0
      %1279 = vmatprep.subr.mxu0 0.0
      %1280 = vmatpush1.msra.mxu0 0.0
      %1281 = vmatprep.subr.mxu0 0.0
      %1282 = vmatpush1.msra.mxu0 0.0
      %1283 = vmatprep.subr.mxu0 0.0
      %1284 = vmatpush1.msra.mxu0 0.0
      %1285 = vmatprep.subr.mxu0 0.0
      %1286 = vmatpush1.msra.mxu0 0.0
      %1287 = vmatprep.subr.mxu0 0.0
      %1288 = vmatpush1.msra.mxu0 0.0
      %1289 = vmatprep.subr.mxu0 0.0
      %1290 = vmatpush1.msra.mxu0 0.0
      %1291 = vmatprep.subr.mxu0 0.0
      %1292 = vmatpush1.msra.mxu0 0.0
      %1293 = vmatprep.subr.mxu0 0.0
      %1294 = vmatpush1.msra.mxu0 0.0
      %1295 = vmatprep.subr.mxu0 0.0
      %1296 = vmatpush1.msra.mxu0 0.0
      %1297 = vmatprep.subr.mxu0 0.0
      %1298 = vmatpush1.msra.mxu0 0.0
      %1299 = vmatprep.subr.mxu0 0.0
      %1300 = vmatpush1.msra.mxu0 0.0
      %1301 = vmatprep.subr.mxu0 0.0
      %1302 = vmatpush1.msra.mxu0 0.0
      %1303 = vmatprep.subr.mxu0 0.0
      %1304 = vmatpush1.msra.mxu0 0.0
      %1305 = vmatprep.subr.mxu0 0.0
      %1306 = vmatpush1.msra.mxu0 0.0
      %1307 = vmatprep.subr.mxu0 0.0
      %1308 = vmatpush1.msra.mxu0 0.0
      %1309 = vmatprep.subr.mxu0 0.0
      %1310 = vmatpush1.msra.mxu0 0.0
      %1311 = vmatprep.subr.mxu0 0.0
      %1312 = vmatpush1.msra.mxu0 0.0
      %1313 = vmatprep.subr.mxu0 0.0
      %1314 = vmatpush1.msra.mxu0 0.0
      %1315 = vmatprep.subr.mxu0 0.0
      %1316 = vmatpush1.msra.mxu0 0.0
      %1317 = vmatprep.subr.mxu0 0.0
      %1318 = vmatpush1.msra.mxu0 0.0
      %1319 = vmatprep.subr.mxu0 0.0
      %1320 = vmatpush1.msra.mxu0 0.0
      %1321 = vmatprep.subr.mxu0 0.0
      %1322 = vmatpush1.msra.mxu0 0.0
      %1323 = vmatprep.subr.mxu0 0.0
      %1324 = vmatpush1.msra.mxu0 0.0
      %1325 = vmatprep.subr.mxu0 0.0
      %1326 = vmatpush1.msra.mxu0 0.0
      %1327 = vmatprep.mubr.f32.mxu0 0.0
      %1328 = vmatmul.mubr.f32.gmra.mrb[0].mxu0 %v1261
      %v1329 = vpop.f32.mrb[0].mxu0
      %v1330 = vadd.f32 0.0, %v1329
      %v1331 = vpop.f32.mrb[0].mxu0
      %1332 = vdwg.mxu0
      %1333 = vxpose.xlu0.b32.start [1/16] %v982, 128
      %1334 = vxpose.xlu0.b32.cont [2/16] 0.0, 128
      %1335 = vxpose.xlu0.b32.cont [3/16] 0.0, 128
      %1336 = vxpose.xlu0.b32.cont [4/16] 0.0, 128
      %1337 = vxpose.xlu0.b32.cont [5/16] 0.0, 128
      %1338 = vxpose.xlu0.b32.cont [6/16] 0.0, 128
      %1339 = vxpose.xlu0.b32.cont [7/16] 0.0, 128
      %1340 = vxpose.xlu0.b32.cont [8/16] 0.0, 128
      %1341 = vxpose.xlu0.b32.cont [9/16] 0.0, 128
      %1342 = vxpose.xlu0.b32.cont [10/16] 0.0, 128
      %1343 = vxpose.xlu0.b32.cont [11/16] 0.0, 128
      %1344 = vxpose.xlu0.b32.cont [12/16] 0.0, 128
      %1345 = vxpose.xlu0.b32.cont [13/16] 0.0, 128
      %1346 = vxpose.xlu0.b32.cont [14/16] 0.0, 128
      %1347 = vxpose.xlu0.b32.cont [15/16] 0.0, 128
      %1348 = vxpose.xlu0.b32.end [16/16] 0.0, 128
      %v1349 = vpop.trf.xlu0
      %v1350 = vpop.trf.xlu0
      %v1351 = vpop.trf.xlu0
      %v1352 = vpop.trf.xlu0
      %v1353 = vpop.trf.xlu0
      %v1354 = vpop.trf.xlu0
      %v1355 = vpop.trf.xlu0
      %v1356 = vpop.trf.xlu0
      %v1357 = vpop.trf.xlu0
      %v1358 = vpop.trf.xlu0
      %v1359 = vpop.trf.xlu0
      %v1360 = vpop.trf.xlu0
      %v1361 = vpop.trf.xlu0
      %v1362 = vpop.trf.xlu0
      %v1363 = vpop.trf.xlu0
      %v1364 = vpop.trf.xlu0
      %v1366 = vsel %vm1049, %v1349, 0
      %1368 = vmatprep.subr.mxu0 0.0
      %1369 = vmatpush1.msra.mxu0 %v998
      %1370 = vmatprep.subr.mxu0 0.0
      %1371 = vmatpush1.msra.mxu0 0.0
      %1372 = vmatprep.subr.mxu0 0.0
      %1373 = vmatpush1.msra.mxu0 0.0
      %1374 = vmatprep.subr.mxu0 0.0
      %1375 = vmatpush1.msra.mxu0 0.0
      %1376 = vmatprep.subr.mxu0 0.0
      %1377 = vmatpush1.msra.mxu0 0.0
      %1378 = vmatprep.subr.mxu0 0.0
      %1379 = vmatpush1.msra.mxu0 0.0
      %1380 = vmatprep.subr.mxu0 0.0
      %1381 = vmatpush1.msra.mxu0 0.0
      %1382 = vmatprep.subr.mxu0 0.0
      %1383 = vmatpush1.msra.mxu0 0.0
      %1384 = vmatprep.subr.mxu0 0.0
      %1385 = vmatpush1.msra.mxu0 0.0
      %1386 = vmatprep.subr.mxu0 0.0
      %1387 = vmatpush1.msra.mxu0 0.0
      %1388 = vmatprep.subr.mxu0 0.0
      %1389 = vmatpush1.msra.mxu0 0.0
      %1390 = vmatprep.subr.mxu0 0.0
      %1391 = vmatpush1.msra.mxu0 0.0
      %1392 = vmatprep.subr.mxu0 0.0
      %1393 = vmatpush1.msra.mxu0 0.0
      %1394 = vmatprep.subr.mxu0 0.0
      %1395 = vmatpush1.msra.mxu0 0.0
      %1396 = vmatprep.subr.mxu0 0.0
      %1397 = vmatpush1.msra.mxu0 0.0
      %1398 = vmatprep.subr.mxu0 0.0
      %1399 = vmatpush1.msra.mxu0 0.0
      %1400 = vmatprep.subr.mxu0 0.0
      %1401 = vmatpush1.msra.mxu0 0.0
      %1402 = vmatprep.subr.mxu0 0.0
      %1403 = vmatpush1.msra.mxu0 0.0
      %1404 = vmatprep.subr.mxu0 0.0
      %1405 = vmatpush1.msra.mxu0 0.0
      %1406 = vmatprep.subr.mxu0 0.0
      %1407 = vmatpush1.msra.mxu0 0.0
      %1408 = vmatprep.subr.mxu0 0.0
      %1409 = vmatpush1.msra.mxu0 0.0
      %1410 = vmatprep.subr.mxu0 0.0
      %1411 = vmatpush1.msra.mxu0 0.0
      %1412 = vmatprep.subr.mxu0 0.0
      %1413 = vmatpush1.msra.mxu0 0.0
      %1414 = vmatprep.subr.mxu0 0.0
      %1415 = vmatpush1.msra.mxu0 0.0
      %1416 = vmatprep.subr.mxu0 0.0
      %1417 = vmatpush1.msra.mxu0 0.0
      %1418 = vmatprep.subr.mxu0 0.0
      %1419 = vmatpush1.msra.mxu0 0.0
      %1420 = vmatprep.subr.mxu0 0.0
      %1421 = vmatpush1.msra.mxu0 0.0
      %1422 = vmatprep.subr.mxu0 0.0
      %1423 = vmatpush1.msra.mxu0 0.0
      %1424 = vmatprep.subr.mxu0 0.0
      %1425 = vmatpush1.msra.mxu0 0.0
      %1426 = vmatprep.subr.mxu0 0.0
      %1427 = vmatpush1.msra.mxu0 0.0
      %1428 = vmatprep.subr.mxu0 0.0
      %1429 = vmatpush1.msra.mxu0 0.0
      %1430 = vmatprep.subr.mxu0 0.0
      %1431 = vmatpush1.msra.mxu0 0.0
      %1432 = vmatprep.mubr.f32.mxu0 0.0
      %1433 = vmatmul.mubr.f32.gmra.mrb[0].mxu0 %v1366
      %v1434 = vpop.f32.mrb[0].mxu0
      %v1435 = vadd.f32 0.0, %v1434
      %v1436 = vpop.f32.mrb[0].mxu0
      %1437 = vdwg.mxu0
      %v1438 = vlaneseq
      %v1439 = vshrl.u32 %v1438, 7
      %v1440 = vsub.s32 0, %v1439
      %v1441 = vrot.slane %v782, %v1440
      %v1442 = vadd.f32 %v1120, %v1441
      %v1443 = vadd.f32 %v1225, %v1441
      %v1444 = vadd.f32 %v1330, %v1441
      %v1445 = vadd.f32 %v1435, %v1441
      %v1446 = vsel %vm1049, %v1442, -inf
      %1447 = vmax.xlane.f32.xlu0 %v1446
      %v1448 = vpop.xlane.xlu0 %1447
      %v1449 = vsel %vm1049, %v1443, -inf
      %1450 = vmax.xlane.f32.xlu0 %v1449
      %v1451 = vpop.xlane.xlu0 %1450
      %v1452 = vsel %vm1049, %v1444, -inf
      %1453 = vmax.xlane.f32.xlu0 %v1452
      %v1454 = vpop.xlane.xlu0 %1453
      %v1455 = vsel %vm1049, %v1445, -inf
      %1456 = vmax.xlane.f32.xlu0 %v1455
      %v1457 = vpop.xlane.xlu0 %1456
      %v1458 = vsub.f32 %v1442, %v1448
      %v1459 = vsub.f32 %v1443, %v1451
      %v1460 = vsub.f32 %v1444, %v1454
      %v1461 = vsub.f32 %v1445, %v1457
      %v1462 = vmul.f32 %v1458, 1.442695
      %v1463 = vpow.pop %v1462
      %v1464 = vmul.f32 %v1459, 1.442695
      %v1465 = vpow.pop %v1464
      %v1466 = vmul.f32 %v1460, 1.442695
      %v1467 = vpow.pop %v1466
      %v1468 = vmul.f32 %v1461, 1.442695
      %v1469 = vpow.pop %v1468
      %v1470 = vsel %vm1049, %v1463, 0.0
      %1471 = vadd.xlane.f32.xlu0 %v1470
      %v1472 = vpop.xlane.xlu0 %1471
      %v1473 = vsel %vm1049, %v1465, 0.0
      %1474 = vadd.xlane.f32.xlu0 %v1473
      %v1475 = vpop.xlane.xlu0 %1474
      %v1476 = vsel %vm1049, %v1467, 0.0
      %1477 = vadd.xlane.f32.xlu0 %v1476
      %v1478 = vpop.xlane.xlu0 %1477
      %v1479 = vsel %vm1049, %v1469, 0.0
      %1480 = vadd.xlane.f32.xlu0 %v1479
      %v1481 = vpop.xlane.xlu0 %1480
      %v1482 = vrcp.pop %v1472
      %v1483 = vmul.f32 %v1463, %v1482
      %v1484 = vrcp.pop %v1475
      %v1485 = vmul.f32 %v1465, %v1484
      %v1486 = vrcp.pop %v1478
      %v1487 = vmul.f32 %v1467, %v1486
      %v1488 = vrcp.pop %v1481
      %v1489 = vmul.f32 %v1469, %v1488
      %1490 = vst.msk [vmem:[%s724] sm:$0xff] %vm1049, %v1483
      %1491 = vst.msk [vmem:[%s724 + $0x8] sm:$0xff] %vm1049, %v1485
      %1492 = vst.msk [vmem:[%s724 + $0x10] sm:$0xff] %vm1049, %v1487
      %1493 = vst.msk [vmem:[%s724 + $0x18] sm:$0xff] %vm1049, %v1489
      %v1495 = vsel %vm1049, %v1003, 0
      %v1498 = vsel %vm1049, %v1483, 0
      %1500 = vmatprep.subr.mxu0 0.0
      %1501 = vmatpush1.xpose.msra.mxu0 %v1498
      %1502 = vmatprep.subr.mxu0 0.0
      %1503 = vmatpush1.xpose.msra.mxu0 0.0
      %1504 = vmatprep.subr.mxu0 0.0
      %1505 = vmatpush1.xpose.msra.mxu0 0.0
      %1506 = vmatprep.subr.mxu0 0.0
      %1507 = vmatpush1.xpose.msra.mxu0 0.0
      %1508 = vmatprep.subr.mxu0 0.0
      %1509 = vmatpush1.xpose.msra.mxu0 0.0
      %1510 = vmatprep.subr.mxu0 0.0
      %1511 = vmatpush1.xpose.msra.mxu0 0.0
      %1512 = vmatprep.subr.mxu0 0.0
      %1513 = vmatpush1.xpose.msra.mxu0 0.0
      %1514 = vmatprep.subr.mxu0 0.0
      %1515 = vmatpush1.xpose.msra.mxu0 0.0
      %1516 = vmatprep.subr.mxu0 0.0
      %1517 = vmatpush1.xpose.msra.mxu0 0.0
      %1518 = vmatprep.subr.mxu0 0.0
      %1519 = vmatpush1.xpose.msra.mxu0 0.0
      %1520 = vmatprep.subr.mxu0 0.0
      %1521 = vmatpush1.xpose.msra.mxu0 0.0
      %1522 = vmatprep.subr.mxu0 0.0
      %1523 = vmatpush1.xpose.msra.mxu0 0.0
      %1524 = vmatprep.subr.mxu0 0.0
      %1525 = vmatpush1.xpose.msra.mxu0 0.0
      %1526 = vmatprep.subr.mxu0 0.0
      %1527 = vmatpush1.xpose.msra.mxu0 0.0
      %1528 = vmatprep.subr.mxu0 0.0
      %1529 = vmatpush1.xpose.msra.mxu0 0.0
      %1530 = vmatprep.subr.mxu0 0.0
      %1531 = vmatpush1.xpose.msra.mxu0 0.0
      %1532 = vmatprep.subr.mxu0 0.0
      %1533 = vmatpush1.xpose.msra.mxu0 0.0
      %1534 = vmatprep.subr.mxu0 0.0
      %1535 = vmatpush1.xpose.msra.mxu0 0.0
      %1536 = vmatprep.subr.mxu0 0.0
      %1537 = vmatpush1.xpose.msra.mxu0 0.0
      %1538 = vmatprep.subr.mxu0 0.0
      %1539 = vmatpush1.xpose.msra.mxu0 0.0
      %1540 = vmatprep.subr.mxu0 0.0
      %1541 = vmatpush1.xpose.msra.mxu0 0.0
      %1542 = vmatprep.subr.mxu0 0.0
      %1543 = vmatpush1.xpose.msra.mxu0 0.0
      %1544 = vmatprep.subr.mxu0 0.0
      %1545 = vmatpush1.xpose.msra.mxu0 0.0
      %1546 = vmatprep.subr.mxu0 0.0
      %1547 = vmatpush1.xpose.msra.mxu0 0.0
      %1548 = vmatprep.subr.mxu0 0.0
      %1549 = vmatpush1.xpose.msra.mxu0 0.0
      %1550 = vmatprep.subr.mxu0 0.0
      %1551 = vmatpush1.xpose.msra.mxu0 0.0
      %1552 = vmatprep.subr.mxu0 0.0
      %1553 = vmatpush1.xpose.msra.mxu0 0.0
      %1554 = vmatprep.subr.mxu0 0.0
      %1555 = vmatpush1.xpose.msra.mxu0 0.0
      %1556 = vmatprep.subr.mxu0 0.0
      %1557 = vmatpush1.xpose.msra.mxu0 0.0
      %1558 = vmatprep.subr.mxu0 0.0
      %1559 = vmatpush1.xpose.msra.mxu0 0.0
      %1560 = vmatprep.subr.mxu0 0.0
      %1561 = vmatpush1.xpose.msra.mxu0 0.0
      %1562 = vmatprep.subr.mxu0 0.0
      %1563 = vmatpush1.xpose.msra.mxu0 0.0
      %1564 = vmatprep.mubr.f32.mxu0 0.0
      %1565 = vmatmul.mubr.f32.gmra.mrb[0].mxu0 %v1495
      %v1566 = vpop.f32.mrb[0].mxu0
      %v1567 = vadd.f32 0.0, %v1566
      %v1568 = vpop.f32.mrb[0].mxu0
      %1569 = vdwg.mxu0
      %v1571 = vsel %vm1049, %v1006, 0
      %v1574 = vsel %vm1049, %v1485, 0
      %1576 = vmatprep.subr.mxu0 0.0
      %1577 = vmatpush1.xpose.msra.mxu0 %v1574
      %1578 = vmatprep.subr.mxu0 0.0
      %1579 = vmatpush1.xpose.msra.mxu0 0.0
      %1580 = vmatprep.subr.mxu0 0.0
      %1581 = vmatpush1.xpose.msra.mxu0 0.0
      %1582 = vmatprep.subr.mxu0 0.0
      %1583 = vmatpush1.xpose.msra.mxu0 0.0
      %1584 = vmatprep.subr.mxu0 0.0
      %1585 = vmatpush1.xpose.msra.mxu0 0.0
      %1586 = vmatprep.subr.mxu0 0.0
      %1587 = vmatpush1.xpose.msra.mxu0 0.0
      %1588 = vmatprep.subr.mxu0 0.0
      %1589 = vmatpush1.xpose.msra.mxu0 0.0
      %1590 = vmatprep.subr.mxu0 0.0
      %1591 = vmatpush1.xpose.msra.mxu0 0.0
      %1592 = vmatprep.subr.mxu0 0.0
      %1593 = vmatpush1.xpose.msra.mxu0 0.0
      %1594 = vmatprep.subr.mxu0 0.0
      %1595 = vmatpush1.xpose.msra.mxu0 0.0
      %1596 = vmatprep.subr.mxu0 0.0
      %1597 = vmatpush1.xpose.msra.mxu0 0.0
      %1598 = vmatprep.subr.mxu0 0.0
      %1599 = vmatpush1.xpose.msra.mxu0 0.0
      %1600 = vmatprep.subr.mxu0 0.0
      %1601 = vmatpush1.xpose.msra.mxu0 0.0
      %1602 = vmatprep.subr.mxu0 0.0
      %1603 = vmatpush1.xpose.msra.mxu0 0.0
      %1604 = vmatprep.subr.mxu0 0.0
      %1605 = vmatpush1.xpose.msra.mxu0 0.0
      %1606 = vmatprep.subr.mxu0 0.0
      %1607 = vmatpush1.xpose.msra.mxu0 0.0
      %1608 = vmatprep.subr.mxu0 0.0
      %1609 = vmatpush1.xpose.msra.mxu0 0.0
      %1610 = vmatprep.subr.mxu0 0.0
      %1611 = vmatpush1.xpose.msra.mxu0 0.0
      %1612 = vmatprep.subr.mxu0 0.0
      %1613 = vmatpush1.xpose.msra.mxu0 0.0
      %1614 = vmatprep.subr.mxu0 0.0
      %1615 = vmatpush1.xpose.msra.mxu0 0.0
      %1616 = vmatprep.subr.mxu0 0.0
      %1617 = vmatpush1.xpose.msra.mxu0 0.0
      %1618 = vmatprep.subr.mxu0 0.0
      %1619 = vmatpush1.xpose.msra.mxu0 0.0
      %1620 = vmatprep.subr.mxu0 0.0
      %1621 = vmatpush1.xpose.msra.mxu0 0.0
      %1622 = vmatprep.subr.mxu0 0.0
      %1623 = vmatpush1.xpose.msra.mxu0 0.0
      %1624 = vmatprep.subr.mxu0 0.0
      %1625 = vmatpush1.xpose.msra.mxu0 0.0
      %1626 = vmatprep.subr.mxu0 0.0
      %1627 = vmatpush1.xpose.msra.mxu0 0.0
      %1628 = vmatprep.subr.mxu0 0.0
      %1629 = vmatpush1.xpose.msra.mxu0 0.0
      %1630 = vmatprep.subr.mxu0 0.0
      %1631 = vmatpush1.xpose.msra.mxu0 0.0
      %1632 = vmatprep.subr.mxu0 0.0
      %1633 = vmatpush1.xpose.msra.mxu0 0.0
      %1634 = vmatprep.subr.mxu0 0.0
      %1635 = vmatpush1.xpose.msra.mxu0 0.0
      %1636 = vmatprep.subr.mxu0 0.0
      %1637 = vmatpush1.xpose.msra.mxu0 0.0
      %1638 = vmatprep.subr.mxu0 0.0
      %1639 = vmatpush1.xpose.msra.mxu0 0.0
      %1640 = vmatprep.mubr.f32.mxu0 0.0
      %1641 = vmatmul.mubr.f32.gmra.mrb[0].mxu0 %v1571
      %v1642 = vpop.f32.mrb[0].mxu0
      %v1643 = vadd.f32 0.0, %v1642
      %v1644 = vpop.f32.mrb[0].mxu0
      %1645 = vdwg.mxu0
      %v1647 = vsel %vm1049, %v1011, 0
      %v1650 = vsel %vm1049, %v1487, 0
      %1652 = vmatprep.subr.mxu0 0.0
      %1653 = vmatpush1.xpose.msra.mxu0 %v1650
      %1654 = vmatprep.subr.mxu0 0.0
      %1655 = vmatpush1.xpose.msra.mxu0 0.0
      %1656 = vmatprep.subr.mxu0 0.0
      %1657 = vmatpush1.xpose.msra.mxu0 0.0
      %1658 = vmatprep.subr.mxu0 0.0
      %1659 = vmatpush1.xpose.msra.mxu0 0.0
      %1660 = vmatprep.subr.mxu0 0.0
      %1661 = vmatpush1.xpose.msra.mxu0 0.0
      %1662 = vmatprep.subr.mxu0 0.0
      %1663 = vmatpush1.xpose.msra.mxu0 0.0
      %1664 = vmatprep.subr.mxu0 0.0
      %1665 = vmatpush1.xpose.msra.mxu0 0.0
      %1666 = vmatprep.subr.mxu0 0.0
      %1667 = vmatpush1.xpose.msra.mxu0 0.0
      %1668 = vmatprep.subr.mxu0 0.0
      %1669 = vmatpush1.xpose.msra.mxu0 0.0
      %1670 = vmatprep.subr.mxu0 0.0
      %1671 = vmatpush1.xpose.msra.mxu0 0.0
      %1672 = vmatprep.subr.mxu0 0.0
      %1673 = vmatpush1.xpose.msra.mxu0 0.0
      %1674 = vmatprep.subr.mxu0 0.0
      %1675 = vmatpush1.xpose.msra.mxu0 0.0
      %1676 = vmatprep.subr.mxu0 0.0
      %1677 = vmatpush1.xpose.msra.mxu0 0.0
      %1678 = vmatprep.subr.mxu0 0.0
      %1679 = vmatpush1.xpose.msra.mxu0 0.0
      %1680 = vmatprep.subr.mxu0 0.0
      %1681 = vmatpush1.xpose.msra.mxu0 0.0
      %1682 = vmatprep.subr.mxu0 0.0
      %1683 = vmatpush1.xpose.msra.mxu0 0.0
      %1684 = vmatprep.subr.mxu0 0.0
      %1685 = vmatpush1.xpose.msra.mxu0 0.0
      %1686 = vmatprep.subr.mxu0 0.0
      %1687 = vmatpush1.xpose.msra.mxu0 0.0
      %1688 = vmatprep.subr.mxu0 0.0
      %1689 = vmatpush1.xpose.msra.mxu0 0.0
      %1690 = vmatprep.subr.mxu0 0.0
      %1691 = vmatpush1.xpose.msra.mxu0 0.0
      %1692 = vmatprep.subr.mxu0 0.0
      %1693 = vmatpush1.xpose.msra.mxu0 0.0
      %1694 = vmatprep.subr.mxu0 0.0
      %1695 = vmatpush1.xpose.msra.mxu0 0.0
      %1696 = vmatprep.subr.mxu0 0.0
      %1697 = vmatpush1.xpose.msra.mxu0 0.0
      %1698 = vmatprep.subr.mxu0 0.0
      %1699 = vmatpush1.xpose.msra.mxu0 0.0
      %1700 = vmatprep.subr.mxu0 0.0
      %1701 = vmatpush1.xpose.msra.mxu0 0.0
      %1702 = vmatprep.subr.mxu0 0.0
      %1703 = vmatpush1.xpose.msra.mxu0 0.0
      %1704 = vmatprep.subr.mxu0 0.0
      %1705 = vmatpush1.xpose.msra.mxu0 0.0
      %1706 = vmatprep.subr.mxu0 0.0
      %1707 = vmatpush1.xpose.msra.mxu0 0.0
      %1708 = vmatprep.subr.mxu0 0.0
      %1709 = vmatpush1.xpose.msra.mxu0 0.0
      %1710 = vmatprep.subr.mxu0 0.0
      %1711 = vmatpush1.xpose.msra.mxu0 0.0
      %1712 = vmatprep.subr.mxu0 0.0
      %1713 = vmatpush1.xpose.msra.mxu0 0.0
      %1714 = vmatprep.subr.mxu0 0.0
      %1715 = vmatpush1.xpose.msra.mxu0 0.0
      %1716 = vmatprep.mubr.f32.mxu0 0.0
      %1717 = vmatmul.mubr.f32.gmra.mrb[0].mxu0 %v1647
      %v1718 = vpop.f32.mrb[0].mxu0
      %v1719 = vadd.f32 0.0, %v1718
      %v1720 = vpop.f32.mrb[0].mxu0
      %1721 = vdwg.mxu0
      %v1723 = vsel %vm1049, %v1014, 0
      %v1726 = vsel %vm1049, %v1489, 0
      %1728 = vmatprep.subr.mxu0 0.0
      %1729 = vmatpush1.xpose.msra.mxu0 %v1726
      %1730 = vmatprep.subr.mxu0 0.0
      %1731 = vmatpush1.xpose.msra.mxu0 0.0
      %1732 = vmatprep.subr.mxu0 0.0
      %1733 = vmatpush1.xpose.msra.mxu0 0.0
      %1734 = vmatprep.subr.mxu0 0.0
      %1735 = vmatpush1.xpose.msra.mxu0 0.0
      %1736 = vmatprep.subr.mxu0 0.0
      %1737 = vmatpush1.xpose.msra.mxu0 0.0
      %1738 = vmatprep.subr.mxu0 0.0
      %1739 = vmatpush1.xpose.msra.mxu0 0.0
      %1740 = vmatprep.subr.mxu0 0.0
      %1741 = vmatpush1.xpose.msra.mxu0 0.0
      %1742 = vmatprep.subr.mxu0 0.0
      %1743 = vmatpush1.xpose.msra.mxu0 0.0
      %1744 = vmatprep.subr.mxu0 0.0
      %1745 = vmatpush1.xpose.msra.mxu0 0.0
      %1746 = vmatprep.subr.mxu0 0.0
      %1747 = vmatpush1.xpose.msra.mxu0 0.0
      %1748 = vmatprep.subr.mxu0 0.0
      %1749 = vmatpush1.xpose.msra.mxu0 0.0
      %1750 = vmatprep.subr.mxu0 0.0
      %1751 = vmatpush1.xpose.msra.mxu0 0.0
      %1752 = vmatprep.subr.mxu0 0.0
      %1753 = vmatpush1.xpose.msra.mxu0 0.0
      %1754 = vmatprep.subr.mxu0 0.0
      %1755 = vmatpush1.xpose.msra.mxu0 0.0
      %1756 = vmatprep.subr.mxu0 0.0
      %1757 = vmatpush1.xpose.msra.mxu0 0.0
      %1758 = vmatprep.subr.mxu0 0.0
      %1759 = vmatpush1.xpose.msra.mxu0 0.0
      %1760 = vmatprep.subr.mxu0 0.0
      %1761 = vmatpush1.xpose.msra.mxu0 0.0
      %1762 = vmatprep.subr.mxu0 0.0
      %1763 = vmatpush1.xpose.msra.mxu0 0.0
      %1764 = vmatprep.subr.mxu0 0.0
      %1765 = vmatpush1.xpose.msra.mxu0 0.0
      %1766 = vmatprep.subr.mxu0 0.0
      %1767 = vmatpush1.xpose.msra.mxu0 0.0
      %1768 = vmatprep.subr.mxu0 0.0
      %1769 = vmatpush1.xpose.msra.mxu0 0.0
      %1770 = vmatprep.subr.mxu0 0.0
      %1771 = vmatpush1.xpose.msra.mxu0 0.0
      %1772 = vmatprep.subr.mxu0 0.0
      %1773 = vmatpush1.xpose.msra.mxu0 0.0
      %1774 = vmatprep.subr.mxu0 0.0
      %1775 = vmatpush1.xpose.msra.mxu0 0.0
      %1776 = vmatprep.subr.mxu0 0.0
      %1777 = vmatpush1.xpose.msra.mxu0 0.0
      %1778 = vmatprep.subr.mxu0 0.0
      %1779 = vmatpush1.xpose.msra.mxu0 0.0
      %1780 = vmatprep.subr.mxu0 0.0
      %1781 = vmatpush1.xpose.msra.mxu0 0.0
      %1782 = vmatprep.subr.mxu0 0.0
      %1783 = vmatpush1.xpose.msra.mxu0 0.0
      %1784 = vmatprep.subr.mxu0 0.0
      %1785 = vmatpush1.xpose.msra.mxu0 0.0
      %1786 = vmatprep.subr.mxu0 0.0
      %1787 = vmatpush1.xpose.msra.mxu0 0.0
      %1788 = vmatprep.subr.mxu0 0.0
      %1789 = vmatpush1.xpose.msra.mxu0 0.0
      %1790 = vmatprep.subr.mxu0 0.0
      %1791 = vmatpush1.xpose.msra.mxu0 0.0
      %1792 = vmatprep.mubr.f32.mxu0 0.0
      %1793 = vmatmul.mubr.f32.gmra.mrb[0].mxu0 %v1723
      %v1794 = vpop.f32.mrb[0].mxu0
      %v1795 = vadd.f32 0.0, %v1794
      %v1796 = vpop.f32.mrb[0].mxu0
      %1797 = vdwg.mxu0
      %v1798 = vpack.c.bf16 %v1643, %v1567
      %v1799 = vpack.c.bf16 %v1795, %v1719
      %1800 = vxpose.xlu0.c.b16.start [1/8] %v1798, 128
      %1801 = vxpose.xlu0.c.b16.cont [2/8] %v1799, 128
      %1802 = vxpose.xlu0.c.b16.cont [3/8] 0, 128
      %1803 = vxpose.xlu0.c.b16.cont [4/8] 0, 128
      %1804 = vxpose.xlu0.c.b16.cont [5/8] 0, 128
      %1805 = vxpose.xlu0.c.b16.cont [6/8] 0, 128
      %1806 = vxpose.xlu0.c.b16.cont [7/8] 0, 128
      %1807 = vxpose.xlu0.c.b16.end [8/8] 0, 128
      %v1808 = vpop.trf.xlu0
      %v1809 = vpop.trf.xlu0
      %v1810 = vpop.trf.xlu0
      %v1811 = vpop.trf.xlu0
      %v1812 = vpop.trf.xlu0
      %v1813 = vpop.trf.xlu0
      %v1814 = vpop.trf.xlu0
      %v1815 = vpop.trf.xlu0
      %v1820 = vunpack.c.l.b16 %v807
      %v1821 = vunpack.c.l.b16 %v808
      %v1822 = vunpack.c.l.b16 %v809
      %v1823 = vunpack.c.l.b16 %v810
      %v1824 = vpack.c.b16 %v1821, %v1820
      %v1825 = vpack.c.b16 %v1823, %v1822
      %v1829 = vsel %vm914, %v1808, 0
      %1831 = vmatprep.subr.bf16.mxu0 0
      %1832 = vmatpush1.bf16.msra.mxu0 %v1824
      %1833 = vmatprep.subr.bf16.mxu0 0
      %1834 = vmatpush1.bf16.msra.mxu0 %v1825
      %1835 = vmatprep.subr.bf16.mxu0 0
      %1836 = vmatpush1.bf16.msra.mxu0 0
      %1837 = vmatprep.subr.bf16.mxu0 0
      %1838 = vmatpush1.bf16.msra.mxu0 0
      %1839 = vmatprep.subr.bf16.mxu0 0
      %1840 = vmatpush1.bf16.msra.mxu0 0
      %1841 = vmatprep.subr.bf16.mxu0 0
      %1842 = vmatpush1.bf16.msra.mxu0 0
      %1843 = vmatprep.subr.bf16.mxu0 0
      %1844 = vmatpush1.bf16.msra.mxu0 0
      %1845 = vmatprep.subr.bf16.mxu0 0
      %1846 = vmatpush1.bf16.msra.mxu0 0
      %1847 = vmatprep.subr.bf16.mxu0 0
      %1848 = vmatpush1.bf16.msra.mxu0 0
      %1849 = vmatprep.subr.bf16.mxu0 0
      %1850 = vmatpush1.bf16.msra.mxu0 0
      %1851 = vmatprep.subr.bf16.mxu0 0
      %1852 = vmatpush1.bf16.msra.mxu0 0
      %1853 = vmatprep.subr.bf16.mxu0 0
      %1854 = vmatpush1.bf16.msra.mxu0 0
      %1855 = vmatprep.subr.bf16.mxu0 0
      %1856 = vmatpush1.bf16.msra.mxu0 0
      %1857 = vmatprep.subr.bf16.mxu0 0
      %1858 = vmatpush1.bf16.msra.mxu0 0
      %1859 = vmatprep.subr.bf16.mxu0 0
      %1860 = vmatpush1.bf16.msra.mxu0 0
      %1861 = vmatprep.subr.bf16.mxu0 0
      %1862 = vmatpush1.bf16.msra.mxu0 0
      %1863 = vmatprep.mubr.bf16.mxu0 0
      %1864 = vmatmul.mubr.bf16.gmra.mrb[0].mxu0 %v1829
      %v1865 = vpop.f32.mrb[0].mxu0
      %v1866 = vadd.f32 0.0, %v1865
      %v1867 = vpop.f32.mrb[0].mxu0
      %v1868 = vpop.f32.mrb[0].mxu0
      %v1869 = vpop.f32.mrb[0].mxu0
      %1870 = vdwg.mxu0
      %v1871 = vpack.c.bf16 %v781, %v781
      %v1873 = vsel %vm914, %v1871, 0
      %1875 = vmatprep.subr.bf16.mxu0 0
      %1876 = vmatpush1.bf16.xpose.msra.mxu0 %v1873
      %1877 = vmatprep.subr.bf16.mxu0 0
      %1878 = vmatpush1.bf16.xpose.msra.mxu0 0
      %1879 = vmatprep.subr.bf16.mxu0 0
      %1880 = vmatpush1.bf16.xpose.msra.mxu0 0
      %1881 = vmatprep.subr.bf16.mxu0 0
      %1882 = vmatpush1.bf16.xpose.msra.mxu0 0
      %1883 = vmatprep.subr.bf16.mxu0 0
      %1884 = vmatpush1.bf16.xpose.msra.mxu0 0
      %1885 = vmatprep.subr.bf16.mxu0 0
      %1886 = vmatpush1.bf16.xpose.msra.mxu0 0
      %1887 = vmatprep.subr.bf16.mxu0 0
      %1888 = vmatpush1.bf16.xpose.msra.mxu0 0
      %1889 = vmatprep.subr.bf16.mxu0 0
      %1890 = vmatpush1.bf16.xpose.msra.mxu0 0
      %1891 = vmatprep.subr.bf16.mxu0 0
      %1892 = vmatpush1.bf16.xpose.msra.mxu0 0
      %1893 = vmatprep.subr.bf16.mxu0 0
      %1894 = vmatpush1.bf16.xpose.msra.mxu0 0
      %1895 = vmatprep.subr.bf16.mxu0 0
      %1896 = vmatpush1.bf16.xpose.msra.mxu0 0
      %1897 = vmatprep.subr.bf16.mxu0 0
      %1898 = vmatpush1.bf16.xpose.msra.mxu0 0
      %1899 = vmatprep.subr.bf16.mxu0 0
      %1900 = vmatpush1.bf16.xpose.msra.mxu0 0
      %1901 = vmatprep.subr.bf16.mxu0 0
      %1902 = vmatpush1.bf16.xpose.msra.mxu0 0
      %1903 = vmatprep.subr.bf16.mxu0 0
      %1904 = vmatpush1.bf16.xpose.msra.mxu0 0
      %1905 = vmatprep.subr.bf16.mxu0 0
      %1906 = vmatpush1.bf16.xpose.msra.mxu0 0
      %1907 = vmatprep.mubr.bf16.mxu0 0
      %1908 = vmatmul.mubr.bf16.gmra.mrb[0].mxu0 %v916
      %v1909 = vpop.f32.mrb[0].mxu0
      %v1910 = vadd.f32 %v827, %v1909
      %v1911 = vpop.f32.mrb[0].mxu0
      %v1912 = vpop.f32.mrb[0].mxu0
      %v1913 = vadd.f32 %v832, %v1912
      %v1914 = vpop.f32.mrb[0].mxu0
      %1915 = vmatprep.mubr.bf16.mxu0 0
      %1916 = vmatmul.mubr.bf16.gmra.mrb[0].mxu0 %v919
      %v1917 = vpop.f32.mrb[0].mxu0
      %v1918 = vadd.f32 %v837, %v1917
      %v1919 = vpop.f32.mrb[0].mxu0
      %v1920 = vpop.f32.mrb[0].mxu0
      %v1921 = vadd.f32 %v842, %v1920
      %v1922 = vpop.f32.mrb[0].mxu0
      %1923 = vmatprep.mubr.bf16.mxu0 0
      %1924 = vmatmul.mubr.bf16.gmra.mrb[0].mxu0 %v922
      %v1925 = vpop.f32.mrb[0].mxu0
      %v1926 = vadd.f32 %v847, %v1925
      %v1927 = vpop.f32.mrb[0].mxu0
      %v1928 = vpop.f32.mrb[0].mxu0
      %v1929 = vadd.f32 %v852, %v1928
      %v1930 = vpop.f32.mrb[0].mxu0
      %1931 = vmatprep.mubr.bf16.mxu0 0
      %1932 = vmatmul.mubr.bf16.gmra.mrb[0].mxu0 %v925
      %v1933 = vpop.f32.mrb[0].mxu0
      %v1934 = vadd.f32 %v857, %v1933
      %v1935 = vpop.f32.mrb[0].mxu0
      %v1936 = vpop.f32.mrb[0].mxu0
      %v1937 = vadd.f32 %v862, %v1936
      %v1938 = vpop.f32.mrb[0].mxu0
      %1939 = vmatprep.mubr.bf16.mxu0 0
      %1940 = vmatmul.mubr.bf16.gmra.mrb[0].mxu0 %v928
      %v1941 = vpop.f32.mrb[0].mxu0
      %v1942 = vadd.f32 %v867, %v1941
      %v1943 = vpop.f32.mrb[0].mxu0
      %v1944 = vpop.f32.mrb[0].mxu0
      %v1945 = vadd.f32 %v872, %v1944
      %v1946 = vpop.f32.mrb[0].mxu0
      %1947 = vmatprep.mubr.bf16.mxu0 0
      %1948 = vmatmul.mubr.bf16.gmra.mrb[0].mxu0 %v931
      %v1949 = vpop.f32.mrb[0].mxu0
      %v1950 = vadd.f32 %v877, %v1949
      %v1951 = vpop.f32.mrb[0].mxu0
      %v1952 = vpop.f32.mrb[0].mxu0
      %v1953 = vadd.f32 %v882, %v1952
      %v1954 = vpop.f32.mrb[0].mxu0
      %1955 = vdwg.mxu0
      %1956 = vxpose.xlu0.b32.start [1/16] %v1910, 128
      %1957 = vxpose.xlu0.b32.cont [2/16] 0.0, 128
      %1958 = vxpose.xlu0.b32.cont [3/16] 0.0, 128
      %1959 = vxpose.xlu0.b32.cont [4/16] 0.0, 128
      %1960 = vxpose.xlu0.b32.cont [5/16] 0.0, 128
      %1961 = vxpose.xlu0.b32.cont [6/16] 0.0, 128
      %1962 = vxpose.xlu0.b32.cont [7/16] 0.0, 128
      %1963 = vxpose.xlu0.b32.cont [8/16] 0.0, 128
      %1964 = vxpose.xlu0.b32.cont [9/16] 0.0, 128
      %1965 = vxpose.xlu0.b32.cont [10/16] 0.0, 128
      %1966 = vxpose.xlu0.b32.cont [11/16] 0.0, 128
      %1967 = vxpose.xlu0.b32.cont [12/16] 0.0, 128
      %1968 = vxpose.xlu0.b32.cont [13/16] 0.0, 128
      %1969 = vxpose.xlu0.b32.cont [14/16] 0.0, 128
      %1970 = vxpose.xlu0.b32.cont [15/16] 0.0, 128
      %1971 = vxpose.xlu0.b32.end [16/16] 0.0, 128
      %v1972 = vpop.trf.xlu0
      %v1973 = vpop.trf.xlu0
      %v1974 = vpop.trf.xlu0
      %v1975 = vpop.trf.xlu0
      %v1976 = vpop.trf.xlu0
      %v1977 = vpop.trf.xlu0
      %v1978 = vpop.trf.xlu0
      %v1979 = vpop.trf.xlu0
      %v1980 = vpop.trf.xlu0
      %v1981 = vpop.trf.xlu0
      %v1982 = vpop.trf.xlu0
      %v1983 = vpop.trf.xlu0
      %v1984 = vpop.trf.xlu0
      %v1985 = vpop.trf.xlu0
      %v1986 = vpop.trf.xlu0
      %v1987 = vpop.trf.xlu0
      %v1989 = vsel %vm1049, %v1972, 0
      %1991 = vmatprep.subr.mxu0 0.0
      %1992 = vmatpush1.msra.mxu0 %v1926
      %1993 = vmatprep.subr.mxu0 0.0
      %1994 = vmatpush1.msra.mxu0 0.0
      %1995 = vmatprep.subr.mxu0 0.0
      %1996 = vmatpush1.msra.mxu0 0.0
      %1997 = vmatprep.subr.mxu0 0.0
      %1998 = vmatpush1.msra.mxu0 0.0
      %1999 = vmatprep.subr.mxu0 0.0
      %2000 = vmatpush1.msra.mxu0 0.0
      %2001 = vmatprep.subr.mxu0 0.0
      %2002 = vmatpush1.msra.mxu0 0.0
      %2003 = vmatprep.subr.mxu0 0.0
      %2004 = vmatpush1.msra.mxu0 0.0
      %2005 = vmatprep.subr.mxu0 0.0
      %2006 = vmatpush1.msra.mxu0 0.0
      %2007 = vmatprep.subr.mxu0 0.0
      %2008 = vmatpush1.msra.mxu0 0.0
      %2009 = vmatprep.subr.mxu0 0.0
      %2010 = vmatpush1.msra.mxu0 0.0
      %2011 = vmatprep.subr.mxu0 0.0
      %2012 = vmatpush1.msra.mxu0 0.0
      %2013 = vmatprep.subr.mxu0 0.0
      %2014 = vmatpush1.msra.mxu0 0.0
      %2015 = vmatprep.subr.mxu0 0.0
      %2016 = vmatpush1.msra.mxu0 0.0
      %2017 = vmatprep.subr.mxu0 0.0
      %2018 = vmatpush1.msra.mxu0 0.0
      %2019 = vmatprep.subr.mxu0 0.0
      %2020 = vmatpush1.msra.mxu0 0.0
      %2021 = vmatprep.subr.mxu0 0.0
      %2022 = vmatpush1.msra.mxu0 0.0
      %2023 = vmatprep.subr.mxu0 0.0
      %2024 = vmatpush1.msra.mxu0 0.0
      %2025 = vmatprep.subr.mxu0 0.0
      %2026 = vmatpush1.msra.mxu0 0.0
      %2027 = vmatprep.subr.mxu0 0.0
      %2028 = vmatpush1.msra.mxu0 0.0
      %2029 = vmatprep.subr.mxu0 0.0
      %2030 = vmatpush1.msra.mxu0 0.0
      %2031 = vmatprep.subr.mxu0 0.0
      %2032 = vmatpush1.msra.mxu0 0.0
      %2033 = vmatprep.subr.mxu0 0.0
      %2034 = vmatpush1.msra.mxu0 0.0
      %2035 = vmatprep.subr.mxu0 0.0
      %2036 = vmatpush1.msra.mxu0 0.0
      %2037 = vmatprep.subr.mxu0 0.0
      %2038 = vmatpush1.msra.mxu0 0.0
      %2039 = vmatprep.subr.mxu0 0.0
      %2040 = vmatpush1.msra.mxu0 0.0
      %2041 = vmatprep.subr.mxu0 0.0
      %2042 = vmatpush1.msra.mxu0 0.0
      %2043 = vmatprep.subr.mxu0 0.0
      %2044 = vmatpush1.msra.mxu0 0.0
      %2045 = vmatprep.subr.mxu0 0.0
      %2046 = vmatpush1.msra.mxu0 0.0
      %2047 = vmatprep.subr.mxu0 0.0
      %2048 = vmatpush1.msra.mxu0 0.0
      %2049 = vmatprep.subr.mxu0 0.0
      %2050 = vmatpush1.msra.mxu0 0.0
      %2051 = vmatprep.subr.mxu0 0.0
      %2052 = vmatpush1.msra.mxu0 0.0
      %2053 = vmatprep.subr.mxu0 0.0
      %2054 = vmatpush1.msra.mxu0 0.0
      %2055 = vmatprep.mubr.f32.mxu0 0.0
      %2056 = vmatmul.mubr.f32.gmra.mrb[0].mxu0 %v1989
      %v2057 = vpop.f32.mrb[0].mxu0
      %v2058 = vadd.f32 0.0, %v2057
      %v2059 = vpop.f32.mrb[0].mxu0
      %2060 = vdwg.mxu0
      %2061 = vxpose.xlu0.b32.start [1/16] %v1913, 128
      %2062 = vxpose.xlu0.b32.cont [2/16] 0.0, 128
      %2063 = vxpose.xlu0.b32.cont [3/16] 0.0, 128
      %2064 = vxpose.xlu0.b32.cont [4/16] 0.0, 128
      %2065 = vxpose.xlu0.b32.cont [5/16] 0.0, 128
      %2066 = vxpose.xlu0.b32.cont [6/16] 0.0, 128
      %2067 = vxpose.xlu0.b32.cont [7/16] 0.0, 128
      %2068 = vxpose.xlu0.b32.cont [8/16] 0.0, 128
      %2069 = vxpose.xlu0.b32.cont [9/16] 0.0, 128
      %2070 = vxpose.xlu0.b32.cont [10/16] 0.0, 128
      %2071 = vxpose.xlu0.b32.cont [11/16] 0.0, 128
      %2072 = vxpose.xlu0.b32.cont [12/16] 0.0, 128
      %2073 = vxpose.xlu0.b32.cont [13/16] 0.0, 128
      %2074 = vxpose.xlu0.b32.cont [14/16] 0.0, 128
      %2075 = vxpose.xlu0.b32.cont [15/16] 0.0, 128
      %2076 = vxpose.xlu0.b32.end [16/16] 0.0, 128
      %v2077 = vpop.trf.xlu0
      %v2078 = vpop.trf.xlu0
      %v2079 = vpop.trf.xlu0
      %v2080 = vpop.trf.xlu0
      %v2081 = vpop.trf.xlu0
      %v2082 = vpop.trf.xlu0
      %v2083 = vpop.trf.xlu0
      %v2084 = vpop.trf.xlu0
      %v2085 = vpop.trf.xlu0
      %v2086 = vpop.trf.xlu0
      %v2087 = vpop.trf.xlu0
      %v2088 = vpop.trf.xlu0
      %v2089 = vpop.trf.xlu0
      %v2090 = vpop.trf.xlu0
      %v2091 = vpop.trf.xlu0
      %v2092 = vpop.trf.xlu0
      %v2094 = vsel %vm1049, %v2077, 0
      %2096 = vmatprep.subr.mxu0 0.0
      %2097 = vmatpush1.msra.mxu0 %v1929
      %2098 = vmatprep.subr.mxu0 0.0
      %2099 = vmatpush1.msra.mxu0 0.0
      %2100 = vmatprep.subr.mxu0 0.0
      %2101 = vmatpush1.msra.mxu0 0.0
      %2102 = vmatprep.subr.mxu0 0.0
      %2103 = vmatpush1.msra.mxu0 0.0
      %2104 = vmatprep.subr.mxu0 0.0
      %2105 = vmatpush1.msra.mxu0 0.0
      %2106 = vmatprep.subr.mxu0 0.0
      %2107 = vmatpush1.msra.mxu0 0.0
      %2108 = vmatprep.subr.mxu0 0.0
      %2109 = vmatpush1.msra.mxu0 0.0
      %2110 = vmatprep.subr.mxu0 0.0
      %2111 = vmatpush1.msra.mxu0 0.0
      %2112 = vmatprep.subr.mxu0 0.0
      %2113 = vmatpush1.msra.mxu0 0.0
      %2114 = vmatprep.subr.mxu0 0.0
      %2115 = vmatpush1.msra.mxu0 0.0
      %2116 = vmatprep.subr.mxu0 0.0
      %2117 = vmatpush1.msra.mxu0 0.0
      %2118 = vmatprep.subr.mxu0 0.0
      %2119 = vmatpush1.msra.mxu0 0.0
      %2120 = vmatprep.subr.mxu0 0.0
      %2121 = vmatpush1.msra.mxu0 0.0
      %2122 = vmatprep.subr.mxu0 0.0
      %2123 = vmatpush1.msra.mxu0 0.0
      %2124 = vmatprep.subr.mxu0 0.0
      %2125 = vmatpush1.msra.mxu0 0.0
      %2126 = vmatprep.subr.mxu0 0.0
      %2127 = vmatpush1.msra.mxu0 0.0
      %2128 = vmatprep.subr.mxu0 0.0
      %2129 = vmatpush1.msra.mxu0 0.0
      %2130 = vmatprep.subr.mxu0 0.0
      %2131 = vmatpush1.msra.mxu0 0.0
      %2132 = vmatprep.subr.mxu0 0.0
      %2133 = vmatpush1.msra.mxu0 0.0
      %2134 = vmatprep.subr.mxu0 0.0
      %2135 = vmatpush1.msra.mxu0 0.0
      %2136 = vmatprep.subr.mxu0 0.0
      %2137 = vmatpush1.msra.mxu0 0.0
      %2138 = vmatprep.subr.mxu0 0.0
      %2139 = vmatpush1.msra.mxu0 0.0
      %2140 = vmatprep.subr.mxu0 0.0
      %2141 = vmatpush1.msra.mxu0 0.0
      %2142 = vmatprep.subr.mxu0 0.0
      %2143 = vmatpush1.msra.mxu0 0.0
      %2144 = vmatprep.subr.mxu0 0.0
      %2145 = vmatpush1.msra.mxu0 0.0
      %2146 = vmatprep.subr.mxu0 0.0
      %2147 = vmatpush1.msra.mxu0 0.0
      %2148 = vmatprep.subr.mxu0 0.0
      %2149 = vmatpush1.msra.mxu0 0.0
      %2150 = vmatprep.subr.mxu0 0.0
      %2151 = vmatpush1.msra.mxu0 0.0
      %2152 = vmatprep.subr.mxu0 0.0
      %2153 = vmatpush1.msra.mxu0 0.0
      %2154 = vmatprep.subr.mxu0 0.0
      %2155 = vmatpush1.msra.mxu0 0.0
      %2156 = vmatprep.subr.mxu0 0.0
      %2157 = vmatpush1.msra.mxu0 0.0
      %2158 = vmatprep.subr.mxu0 0.0
      %2159 = vmatpush1.msra.mxu0 0.0
      %2160 = vmatprep.mubr.f32.mxu0 0.0
      %2161 = vmatmul.mubr.f32.gmra.mrb[0].mxu0 %v2094
      %v2162 = vpop.f32.mrb[0].mxu0
      %v2163 = vadd.f32 0.0, %v2162
      %v2164 = vpop.f32.mrb[0].mxu0
      %2165 = vdwg.mxu0
      %2166 = vxpose.xlu0.b32.start [1/16] %v1918, 128
      %2167 = vxpose.xlu0.b32.cont [2/16] 0.0, 128
      %2168 = vxpose.xlu0.b32.cont [3/16] 0.0, 128
      %2169 = vxpose.xlu0.b32.cont [4/16] 0.0, 128
      %2170 = vxpose.xlu0.b32.cont [5/16] 0.0, 128
      %2171 = vxpose.xlu0.b32.cont [6/16] 0.0, 128
      %2172 = vxpose.xlu0.b32.cont [7/16] 0.0, 128
      %2173 = vxpose.xlu0.b32.cont [8/16] 0.0, 128
      %2174 = vxpose.xlu0.b32.cont [9/16] 0.0, 128
      %2175 = vxpose.xlu0.b32.cont [10/16] 0.0, 128
      %2176 = vxpose.xlu0.b32.cont [11/16] 0.0, 128
      %2177 = vxpose.xlu0.b32.cont [12/16] 0.0, 128
      %2178 = vxpose.xlu0.b32.cont [13/16] 0.0, 128
      %2179 = vxpose.xlu0.b32.cont [14/16] 0.0, 128
      %2180 = vxpose.xlu0.b32.cont [15/16] 0.0, 128
      %2181 = vxpose.xlu0.b32.end [16/16] 0.0, 128
      %v2182 = vpop.trf.xlu0
      %v2183 = vpop.trf.xlu0
      %v2184 = vpop.trf.xlu0
      %v2185 = vpop.trf.xlu0
      %v2186 = vpop.trf.xlu0
      %v2187 = vpop.trf.xlu0
      %v2188 = vpop.trf.xlu0
      %v2189 = vpop.trf.xlu0
      %v2190 = vpop.trf.xlu0
      %v2191 = vpop.trf.xlu0
      %v2192 = vpop.trf.xlu0
      %v2193 = vpop.trf.xlu0
      %v2194 = vpop.trf.xlu0
      %v2195 = vpop.trf.xlu0
      %v2196 = vpop.trf.xlu0
      %v2197 = vpop.trf.xlu0
      %v2199 = vsel %vm1049, %v2182, 0
      %2201 = vmatprep.subr.mxu0 0.0
      %2202 = vmatpush1.msra.mxu0 %v1934
      %2203 = vmatprep.subr.mxu0 0.0
      %2204 = vmatpush1.msra.mxu0 0.0
      %2205 = vmatprep.subr.mxu0 0.0
      %2206 = vmatpush1.msra.mxu0 0.0
      %2207 = vmatprep.subr.mxu0 0.0
      %2208 = vmatpush1.msra.mxu0 0.0
      %2209 = vmatprep.subr.mxu0 0.0
      %2210 = vmatpush1.msra.mxu0 0.0
      %2211 = vmatprep.subr.mxu0 0.0
      %2212 = vmatpush1.msra.mxu0 0.0
      %2213 = vmatprep.subr.mxu0 0.0
      %2214 = vmatpush1.msra.mxu0 0.0
      %2215 = vmatprep.subr.mxu0 0.0
      %2216 = vmatpush1.msra.mxu0 0.0
      %2217 = vmatprep.subr.mxu0 0.0
      %2218 = vmatpush1.msra.mxu0 0.0
      %2219 = vmatprep.subr.mxu0 0.0
      %2220 = vmatpush1.msra.mxu0 0.0
      %2221 = vmatprep.subr.mxu0 0.0
      %2222 = vmatpush1.msra.mxu0 0.0
      %2223 = vmatprep.subr.mxu0 0.0
      %2224 = vmatpush1.msra.mxu0 0.0
      %2225 = vmatprep.subr.mxu0 0.0
      %2226 = vmatpush1.msra.mxu0 0.0
      %2227 = vmatprep.subr.mxu0 0.0
      %2228 = vmatpush1.msra.mxu0 0.0
      %2229 = vmatprep.subr.mxu0 0.0
      %2230 = vmatpush1.msra.mxu0 0.0
      %2231 = vmatprep.subr.mxu0 0.0
      %2232 = vmatpush1.msra.mxu0 0.0
      %2233 = vmatprep.subr.mxu0 0.0
      %2234 = vmatpush1.msra.mxu0 0.0
      %2235 = vmatprep.subr.mxu0 0.0
      %2236 = vmatpush1.msra.mxu0 0.0
      %2237 = vmatprep.subr.mxu0 0.0
      %2238 = vmatpush1.msra.mxu0 0.0
      %2239 = vmatprep.subr.mxu0 0.0
      %2240 = vmatpush1.msra.mxu0 0.0
      %2241 = vmatprep.subr.mxu0 0.0
      %2242 = vmatpush1.msra.mxu0 0.0
      %2243 = vmatprep.subr.mxu0 0.0
      %2244 = vmatpush1.msra.mxu0 0.0
      %2245 = vmatprep.subr.mxu0 0.0
      %2246 = vmatpush1.msra.mxu0 0.0
      %2247 = vmatprep.subr.mxu0 0.0
      %2248 = vmatpush1.msra.mxu0 0.0
      %2249 = vmatprep.subr.mxu0 0.0
      %2250 = vmatpush1.msra.mxu0 0.0
      %2251 = vmatprep.subr.mxu0 0.0
      %2252 = vmatpush1.msra.mxu0 0.0
      %2253 = vmatprep.subr.mxu0 0.0
      %2254 = vmatpush1.msra.mxu0 0.0
      %2255 = vmatprep.subr.mxu0 0.0
      %2256 = vmatpush1.msra.mxu0 0.0
      %2257 = vmatprep.subr.mxu0 0.0
      %2258 = vmatpush1.msra.mxu0 0.0
      %2259 = vmatprep.subr.mxu0 0.0
      %2260 = vmatpush1.msra.mxu0 0.0
      %2261 = vmatprep.subr.mxu0 0.0
      %2262 = vmatpush1.msra.mxu0 0.0
      %2263 = vmatprep.subr.mxu0 0.0
      %2264 = vmatpush1.msra.mxu0 0.0
      %2265 = vmatprep.mubr.f32.mxu0 0.0
      %2266 = vmatmul.mubr.f32.gmra.mrb[0].mxu0 %v2199
      %v2267 = vpop.f32.mrb[0].mxu0
      %v2268 = vadd.f32 0.0, %v2267
      %v2269 = vpop.f32.mrb[0].mxu0
      %2270 = vdwg.mxu0
      %2271 = vxpose.xlu0.b32.start [1/16] %v1921, 128
      %2272 = vxpose.xlu0.b32.cont [2/16] 0.0, 128
      %2273 = vxpose.xlu0.b32.cont [3/16] 0.0, 128
      %2274 = vxpose.xlu0.b32.cont [4/16] 0.0, 128
      %2275 = vxpose.xlu0.b32.cont [5/16] 0.0, 128
      %2276 = vxpose.xlu0.b32.cont [6/16] 0.0, 128
      %2277 = vxpose.xlu0.b32.cont [7/16] 0.0, 128
      %2278 = vxpose.xlu0.b32.cont [8/16] 0.0, 128
      %2279 = vxpose.xlu0.b32.cont [9/16] 0.0, 128
      %2280 = vxpose.xlu0.b32.cont [10/16] 0.0, 128
      %2281 = vxpose.xlu0.b32.cont [11/16] 0.0, 128
      %2282 = vxpose.xlu0.b32.cont [12/16] 0.0, 128
      %2283 = vxpose.xlu0.b32.cont [13/16] 0.0, 128
      %2284 = vxpose.xlu0.b32.cont [14/16] 0.0, 128
      %2285 = vxpose.xlu0.b32.cont [15/16] 0.0, 128
      %2286 = vxpose.xlu0.b32.end [16/16] 0.0, 128
      %v2287 = vpop.trf.xlu0
      %v2288 = vpop.trf.xlu0
      %v2289 = vpop.trf.xlu0
      %v2290 = vpop.trf.xlu0
      %v2291 = vpop.trf.xlu0
      %v2292 = vpop.trf.xlu0
      %v2293 = vpop.trf.xlu0
      %v2294 = vpop.trf.xlu0
      %v2295 = vpop.trf.xlu0
      %v2296 = vpop.trf.xlu0
      %v2297 = vpop.trf.xlu0
      %v2298 = vpop.trf.xlu0
      %v2299 = vpop.trf.xlu0
      %v2300 = vpop.trf.xlu0
      %v2301 = vpop.trf.xlu0
      %v2302 = vpop.trf.xlu0
      %v2304 = vsel %vm1049, %v2287, 0
      %2306 = vmatprep.subr.mxu0 0.0
      %2307 = vmatpush1.msra.mxu0 %v1937
      %2308 = vmatprep.subr.mxu0 0.0
      %2309 = vmatpush1.msra.mxu0 0.0
      %2310 = vmatprep.subr.mxu0 0.0
      %2311 = vmatpush1.msra.mxu0 0.0
      %2312 = vmatprep.subr.mxu0 0.0
      %2313 = vmatpush1.msra.mxu0 0.0
      %2314 = vmatprep.subr.mxu0 0.0
      %2315 = vmatpush1.msra.mxu0 0.0
      %2316 = vmatprep.subr.mxu0 0.0
      %2317 = vmatpush1.msra.mxu0 0.0
      %2318 = vmatprep.subr.mxu0 0.0
      %2319 = vmatpush1.msra.mxu0 0.0
      %2320 = vmatprep.subr.mxu0 0.0
      %2321 = vmatpush1.msra.mxu0 0.0
      %2322 = vmatprep.subr.mxu0 0.0
      %2323 = vmatpush1.msra.mxu0 0.0
      %2324 = vmatprep.subr.mxu0 0.0
      %2325 = vmatpush1.msra.mxu0 0.0
      %2326 = vmatprep.subr.mxu0 0.0
      %2327 = vmatpush1.msra.mxu0 0.0
      %2328 = vmatprep.subr.mxu0 0.0
      %2329 = vmatpush1.msra.mxu0 0.0
      %2330 = vmatprep.subr.mxu0 0.0
      %2331 = vmatpush1.msra.mxu0 0.0
      %2332 = vmatprep.subr.mxu0 0.0
      %2333 = vmatpush1.msra.mxu0 0.0
      %2334 = vmatprep.subr.mxu0 0.0
      %2335 = vmatpush1.msra.mxu0 0.0
      %2336 = vmatprep.subr.mxu0 0.0
      %2337 = vmatpush1.msra.mxu0 0.0
      %2338 = vmatprep.subr.mxu0 0.0
      %2339 = vmatpush1.msra.mxu0 0.0
      %2340 = vmatprep.subr.mxu0 0.0
      %2341 = vmatpush1.msra.mxu0 0.0
      %2342 = vmatprep.subr.mxu0 0.0
      %2343 = vmatpush1.msra.mxu0 0.0
      %2344 = vmatprep.subr.mxu0 0.0
      %2345 = vmatpush1.msra.mxu0 0.0
      %2346 = vmatprep.subr.mxu0 0.0
      %2347 = vmatpush1.msra.mxu0 0.0
      %2348 = vmatprep.subr.mxu0 0.0
      %2349 = vmatpush1.msra.mxu0 0.0
      %2350 = vmatprep.subr.mxu0 0.0
      %2351 = vmatpush1.msra.mxu0 0.0
      %2352 = vmatprep.subr.mxu0 0.0
      %2353 = vmatpush1.msra.mxu0 0.0
      %2354 = vmatprep.subr.mxu0 0.0
      %2355 = vmatpush1.msra.mxu0 0.0
      %2356 = vmatprep.subr.mxu0 0.0
      %2357 = vmatpush1.msra.mxu0 0.0
      %2358 = vmatprep.subr.mxu0 0.0
      %2359 = vmatpush1.msra.mxu0 0.0
      %2360 = vmatprep.subr.mxu0 0.0
      %2361 = vmatpush1.msra.mxu0 0.0
      %2362 = vmatprep.subr.mxu0 0.0
      %2363 = vmatpush1.msra.mxu0 0.0
      %2364 = vmatprep.subr.mxu0 0.0
      %2365 = vmatpush1.msra.mxu0 0.0
      %2366 = vmatprep.subr.mxu0 0.0
      %2367 = vmatpush1.msra.mxu0 0.0
      %2368 = vmatprep.subr.mxu0 0.0
      %2369 = vmatpush1.msra.mxu0 0.0
      %2370 = vmatprep.mubr.f32.mxu0 0.0
      %2371 = vmatmul.mubr.f32.gmra.mrb[0].mxu0 %v2304
      %v2372 = vpop.f32.mrb[0].mxu0
      %v2373 = vadd.f32 0.0, %v2372
      %v2374 = vpop.f32.mrb[0].mxu0
      %2375 = vdwg.mxu0
      %v2376 = vlaneseq
      %v2377 = vshrl.u32 %v2376, 7
      %v2378 = vsub.s32 1, %v2377
      %v2379 = vrot.slane %v782, %v2378
      %v2380 = vadd.f32 %v2058, %v2379
      %v2381 = vadd.f32 %v2163, %v2379
      %v2382 = vadd.f32 %v2268, %v2379
      %v2383 = vadd.f32 %v2373, %v2379
      %v2384 = vsel %vm1049, %v2380, -inf
      %2385 = vmax.xlane.f32.xlu0 %v2384
      %v2386 = vpop.xlane.xlu0 %2385
      %v2387 = vsel %vm1049, %v2381, -inf
      %2388 = vmax.xlane.f32.xlu0 %v2387
      %v2389 = vpop.xlane.xlu0 %2388
      %v2390 = vsel %vm1049, %v2382, -inf
      %2391 = vmax.xlane.f32.xlu0 %v2390
      %v2392 = vpop.xlane.xlu0 %2391
      %v2393 = vsel %vm1049, %v2383, -inf
      %2394 = vmax.xlane.f32.xlu0 %v2393
      %v2395 = vpop.xlane.xlu0 %2394
      %v2396 = vsub.f32 %v2380, %v2386
      %v2397 = vsub.f32 %v2381, %v2389
      %v2398 = vsub.f32 %v2382, %v2392
      %v2399 = vsub.f32 %v2383, %v2395
      %v2400 = vmul.f32 %v2396, 1.442695
      %v2401 = vpow.pop %v2400
      %v2402 = vmul.f32 %v2397, 1.442695
      %v2403 = vpow.pop %v2402
      %v2404 = vmul.f32 %v2398, 1.442695
      %v2405 = vpow.pop %v2404
      %v2406 = vmul.f32 %v2399, 1.442695
      %v2407 = vpow.pop %v2406
      %v2408 = vsel %vm1049, %v2401, 0.0
      %2409 = vadd.xlane.f32.xlu0 %v2408
      %v2410 = vpop.xlane.xlu0 %2409
      %v2411 = vsel %vm1049, %v2403, 0.0
      %2412 = vadd.xlane.f32.xlu0 %v2411
      %v2413 = vpop.xlane.xlu0 %2412
      %v2414 = vsel %vm1049, %v2405, 0.0
      %2415 = vadd.xlane.f32.xlu0 %v2414
      %v2416 = vpop.xlane.xlu0 %2415
      %v2417 = vsel %vm1049, %v2407, 0.0
      %2418 = vadd.xlane.f32.xlu0 %v2417
      %v2419 = vpop.xlane.xlu0 %2418
      %v2420 = vrcp.pop %v2410
      %v2421 = vmul.f32 %v2401, %v2420
      %v2422 = vrcp.pop %v2413
      %v2423 = vmul.f32 %v2403, %v2422
      %v2424 = vrcp.pop %v2416
      %v2425 = vmul.f32 %v2405, %v2424
      %v2426 = vrcp.pop %v2419
      %v2427 = vmul.f32 %v2407, %v2426
      %s2428 = scalar_lea.vmem %s724, 32
      %2429 = vst.msk [vmem:[%s2428] sm:$0xff] %vm1049, %v2421
      %2430 = vst.msk [vmem:[%s2428 + $0x8] sm:$0xff] %vm1049, %v2423
      %2431 = vst.msk [vmem:[%s2428 + $0x10] sm:$0xff] %vm1049, %v2425
      %2432 = vst.msk [vmem:[%s2428 + $0x18] sm:$0xff] %vm1049, %v2427
      %v2434 = vsel %vm1049, %v1942, 0
      %v2437 = vsel %vm1049, %v2421, 0
      %2439 = vmatprep.subr.mxu0 0.0
      %2440 = vmatpush1.xpose.msra.mxu0 %v2437
      %2441 = vmatprep.subr.mxu0 0.0
      %2442 = vmatpush1.xpose.msra.mxu0 0.0
      %2443 = vmatprep.subr.mxu0 0.0
      %2444 = vmatpush1.xpose.msra.mxu0 0.0
      %2445 = vmatprep.subr.mxu0 0.0
      %2446 = vmatpush1.xpose.msra.mxu0 0.0
      %2447 = vmatprep.subr.mxu0 0.0
      %2448 = vmatpush1.xpose.msra.mxu0 0.0
      %2449 = vmatprep.subr.mxu0 0.0
      %2450 = vmatpush1.xpose.msra.mxu0 0.0
      %2451 = vmatprep.subr.mxu0 0.0
      %2452 = vmatpush1.xpose.msra.mxu0 0.0
      %2453 = vmatprep.subr.mxu0 0.0
      %2454 = vmatpush1.xpose.msra.mxu0 0.0
      %2455 = vmatprep.subr.mxu0 0.0
      %2456 = vmatpush1.xpose.msra.mxu0 0.0
      %2457 = vmatprep.subr.mxu0 0.0
      %2458 = vmatpush1.xpose.msra.mxu0 0.0
      %2459 = vmatprep.subr.mxu0 0.0
      %2460 = vmatpush1.xpose.msra.mxu0 0.0
      %2461 = vmatprep.subr.mxu0 0.0
      %2462 = vmatpush1.xpose.msra.mxu0 0.0
      %2463 = vmatprep.subr.mxu0 0.0
      %2464 = vmatpush1.xpose.msra.mxu0 0.0
      %2465 = vmatprep.subr.mxu0 0.0
      %2466 = vmatpush1.xpose.msra.mxu0 0.0
      %2467 = vmatprep.subr.mxu0 0.0
      %2468 = vmatpush1.xpose.msra.mxu0 0.0
      %2469 = vmatprep.subr.mxu0 0.0
      %2470 = vmatpush1.xpose.msra.mxu0 0.0
      %2471 = vmatprep.subr.mxu0 0.0
      %2472 = vmatpush1.xpose.msra.mxu0 0.0
      %2473 = vmatprep.subr.mxu0 0.0
      %2474 = vmatpush1.xpose.msra.mxu0 0.0
      %2475 = vmatprep.subr.mxu0 0.0
      %2476 = vmatpush1.xpose.msra.mxu0 0.0
      %2477 = vmatprep.subr.mxu0 0.0
      %2478 = vmatpush1.xpose.msra.mxu0 0.0
      %2479 = vmatprep.subr.mxu0 0.0
      %2480 = vmatpush1.xpose.msra.mxu0 0.0
      %2481 = vmatprep.subr.mxu0 0.0
      %2482 = vmatpush1.xpose.msra.mxu0 0.0
      %2483 = vmatprep.subr.mxu0 0.0
      %2484 = vmatpush1.xpose.msra.mxu0 0.0
      %2485 = vmatprep.subr.mxu0 0.0
      %2486 = vmatpush1.xpose.msra.mxu0 0.0
      %2487 = vmatprep.subr.mxu0 0.0
      %2488 = vmatpush1.xpose.msra.mxu0 0.0
      %2489 = vmatprep.subr.mxu0 0.0
      %2490 = vmatpush1.xpose.msra.mxu0 0.0
      %2491 = vmatprep.subr.mxu0 0.0
      %2492 = vmatpush1.xpose.msra.mxu0 0.0
      %2493 = vmatprep.subr.mxu0 0.0
      %2494 = vmatpush1.xpose.msra.mxu0 0.0
      %2495 = vmatprep.subr.mxu0 0.0
      %2496 = vmatpush1.xpose.msra.mxu0 0.0
      %2497 = vmatprep.subr.mxu0 0.0
      %2498 = vmatpush1.xpose.msra.mxu0 0.0
      %2499 = vmatprep.subr.mxu0 0.0
      %2500 = vmatpush1.xpose.msra.mxu0 0.0
      %2501 = vmatprep.subr.mxu0 0.0
      %2502 = vmatpush1.xpose.msra.mxu0 0.0
      %2503 = vmatprep.mubr.f32.mxu0 0.0
      %2504 = vmatmul.mubr.f32.gmra.mrb[0].mxu0 %v2434
      %v2505 = vpop.f32.mrb[0].mxu0
      %v2506 = vadd.f32 0.0, %v2505
      %v2507 = vpop.f32.mrb[0].mxu0
      %2508 = vdwg.mxu0
      %v2510 = vsel %vm1049, %v1945, 0
      %v2513 = vsel %vm1049, %v2423, 0
      %2515 = vmatprep.subr.mxu0 0.0
      %2516 = vmatpush1.xpose.msra.mxu0 %v2513
      %2517 = vmatprep.subr.mxu0 0.0
      %2518 = vmatpush1.xpose.msra.mxu0 0.0
      %2519 = vmatprep.subr.mxu0 0.0
      %2520 = vmatpush1.xpose.msra.mxu0 0.0
      %2521 = vmatprep.subr.mxu0 0.0
      %2522 = vmatpush1.xpose.msra.mxu0 0.0
      %2523 = vmatprep.subr.mxu0 0.0
      %2524 = vmatpush1.xpose.msra.mxu0 0.0
      %2525 = vmatprep.subr.mxu0 0.0
      %2526 = vmatpush1.xpose.msra.mxu0 0.0
      %2527 = vmatprep.subr.mxu0 0.0
      %2528 = vmatpush1.xpose.msra.mxu0 0.0
      %2529 = vmatprep.subr.mxu0 0.0
      %2530 = vmatpush1.xpose.msra.mxu0 0.0
      %2531 = vmatprep.subr.mxu0 0.0
      %2532 = vmatpush1.xpose.msra.mxu0 0.0
      %2533 = vmatprep.subr.mxu0 0.0
      %2534 = vmatpush1.xpose.msra.mxu0 0.0
      %2535 = vmatprep.subr.mxu0 0.0
      %2536 = vmatpush1.xpose.msra.mxu0 0.0
      %2537 = vmatprep.subr.mxu0 0.0
      %2538 = vmatpush1.xpose.msra.mxu0 0.0
      %2539 = vmatprep.subr.mxu0 0.0
      %2540 = vmatpush1.xpose.msra.mxu0 0.0
      %2541 = vmatprep.subr.mxu0 0.0
      %2542 = vmatpush1.xpose.msra.mxu0 0.0
      %2543 = vmatprep.subr.mxu0 0.0
      %2544 = vmatpush1.xpose.msra.mxu0 0.0
      %2545 = vmatprep.subr.mxu0 0.0
      %2546 = vmatpush1.xpose.msra.mxu0 0.0
      %2547 = vmatprep.subr.mxu0 0.0
      %2548 = vmatpush1.xpose.msra.mxu0 0.0
      %2549 = vmatprep.subr.mxu0 0.0
      %2550 = vmatpush1.xpose.msra.mxu0 0.0
      %2551 = vmatprep.subr.mxu0 0.0
      %2552 = vmatpush1.xpose.msra.mxu0 0.0
      %2553 = vmatprep.subr.mxu0 0.0
      %2554 = vmatpush1.xpose.msra.mxu0 0.0
      %2555 = vmatprep.subr.mxu0 0.0
      %2556 = vmatpush1.xpose.msra.mxu0 0.0
      %2557 = vmatprep.subr.mxu0 0.0
      %2558 = vmatpush1.xpose.msra.mxu0 0.0
      %2559 = vmatprep.subr.mxu0 0.0
      %2560 = vmatpush1.xpose.msra.mxu0 0.0
      %2561 = vmatprep.subr.mxu0 0.0
      %2562 = vmatpush1.xpose.msra.mxu0 0.0
      %2563 = vmatprep.subr.mxu0 0.0
      %2564 = vmatpush1.xpose.msra.mxu0 0.0
      %2565 = vmatprep.subr.mxu0 0.0
      %2566 = vmatpush1.xpose.msra.mxu0 0.0
      %2567 = vmatprep.subr.mxu0 0.0
      %2568 = vmatpush1.xpose.msra.mxu0 0.0
      %2569 = vmatprep.subr.mxu0 0.0
      %2570 = vmatpush1.xpose.msra.mxu0 0.0
      %2571 = vmatprep.subr.mxu0 0.0
      %2572 = vmatpush1.xpose.msra.mxu0 0.0
      %2573 = vmatprep.subr.mxu0 0.0
      %2574 = vmatpush1.xpose.msra.mxu0 0.0
      %2575 = vmatprep.subr.mxu0 0.0
      %2576 = vmatpush1.xpose.msra.mxu0 0.0
      %2577 = vmatprep.subr.mxu0 0.0
      %2578 = vmatpush1.xpose.msra.mxu0 0.0
      %2579 = vmatprep.mubr.f32.mxu0 0.0
      %2580 = vmatmul.mubr.f32.gmra.mrb[0].mxu0 %v2510
      %v2581 = vpop.f32.mrb[0].mxu0
      %v2582 = vadd.f32 0.0, %v2581
      %v2583 = vpop.f32.mrb[0].mxu0
      %2584 = vdwg.mxu0
      %v2586 = vsel %vm1049, %v1950, 0
      %v2589 = vsel %vm1049, %v2425, 0
      %2591 = vmatprep.subr.mxu0 0.0
      %2592 = vmatpush1.xpose.msra.mxu0 %v2589
      %2593 = vmatprep.subr.mxu0 0.0
      %2594 = vmatpush1.xpose.msra.mxu0 0.0
      %2595 = vmatprep.subr.mxu0 0.0
      %2596 = vmatpush1.xpose.msra.mxu0 0.0
      %2597 = vmatprep.subr.mxu0 0.0
      %2598 = vmatpush1.xpose.msra.mxu0 0.0
      %2599 = vmatprep.subr.mxu0 0.0
      %2600 = vmatpush1.xpose.msra.mxu0 0.0
      %2601 = vmatprep.subr.mxu0 0.0
      %2602 = vmatpush1.xpose.msra.mxu0 0.0
      %2603 = vmatprep.subr.mxu0 0.0
      %2604 = vmatpush1.xpose.msra.mxu0 0.0
      %2605 = vmatprep.subr.mxu0 0.0
      %2606 = vmatpush1.xpose.msra.mxu0 0.0
      %2607 = vmatprep.subr.mxu0 0.0
      %2608 = vmatpush1.xpose.msra.mxu0 0.0
      %2609 = vmatprep.subr.mxu0 0.0
      %2610 = vmatpush1.xpose.msra.mxu0 0.0
      %2611 = vmatprep.subr.mxu0 0.0
      %2612 = vmatpush1.xpose.msra.mxu0 0.0
      %2613 = vmatprep.subr.mxu0 0.0
      %2614 = vmatpush1.xpose.msra.mxu0 0.0
      %2615 = vmatprep.subr.mxu0 0.0
      %2616 = vmatpush1.xpose.msra.mxu0 0.0
      %2617 = vmatprep.subr.mxu0 0.0
      %2618 = vmatpush1.xpose.msra.mxu0 0.0
      %2619 = vmatprep.subr.mxu0 0.0
      %2620 = vmatpush1.xpose.msra.mxu0 0.0
      %2621 = vmatprep.subr.mxu0 0.0
      %2622 = vmatpush1.xpose.msra.mxu0 0.0
      %2623 = vmatprep.subr.mxu0 0.0
      %2624 = vmatpush1.xpose.msra.mxu0 0.0
      %2625 = vmatprep.subr.mxu0 0.0
      %2626 = vmatpush1.xpose.msra.mxu0 0.0
      %2627 = vmatprep.subr.mxu0 0.0
      %2628 = vmatpush1.xpose.msra.mxu0 0.0
      %2629 = vmatprep.subr.mxu0 0.0
      %2630 = vmatpush1.xpose.msra.mxu0 0.0
      %2631 = vmatprep.subr.mxu0 0.0
      %2632 = vmatpush1.xpose.msra.mxu0 0.0
      %2633 = vmatprep.subr.mxu0 0.0
      %2634 = vmatpush1.xpose.msra.mxu0 0.0
      %2635 = vmatprep.subr.mxu0 0.0
      %2636 = vmatpush1.xpose.msra.mxu0 0.0
      %2637 = vmatprep.subr.mxu0 0.0
      %2638 = vmatpush1.xpose.msra.mxu0 0.0
      %2639 = vmatprep.subr.mxu0 0.0
      %2640 = vmatpush1.xpose.msra.mxu0 0.0
      %2641 = vmatprep.subr.mxu0 0.0
      %2642 = vmatpush1.xpose.msra.mxu0 0.0
      %2643 = vmatprep.subr.mxu0 0.0
      %2644 = vmatpush1.xpose.msra.mxu0 0.0
      %2645 = vmatprep.subr.mxu0 0.0
      %2646 = vmatpush1.xpose.msra.mxu0 0.0
      %2647 = vmatprep.subr.mxu0 0.0
      %2648 = vmatpush1.xpose.msra.mxu0 0.0
      %2649 = vmatprep.subr.mxu0 0.0
      %2650 = vmatpush1.xpose.msra.mxu0 0.0
      %2651 = vmatprep.subr.mxu0 0.0
      %2652 = vmatpush1.xpose.msra.mxu0 0.0
      %2653 = vmatprep.subr.mxu0 0.0
      %2654 = vmatpush1.xpose.msra.mxu0 0.0
      %2655 = vmatprep.mubr.f32.mxu0 0.0
      %2656 = vmatmul.mubr.f32.gmra.mrb[0].mxu0 %v2586
      %v2657 = vpop.f32.mrb[0].mxu0
      %v2658 = vadd.f32 0.0, %v2657
      %v2659 = vpop.f32.mrb[0].mxu0
      %2660 = vdwg.mxu0
      %v2662 = vsel %vm1049, %v1953, 0
      %v2665 = vsel %vm1049, %v2427, 0
      %2667 = vmatprep.subr.mxu0 0.0
      %2668 = vmatpush1.xpose.msra.mxu0 %v2665
      %2669 = vmatprep.subr.mxu0 0.0
      %2670 = vmatpush1.xpose.msra.mxu0 0.0
      %2671 = vmatprep.subr.mxu0 0.0
      %2672 = vmatpush1.xpose.msra.mxu0 0.0
      %2673 = vmatprep.subr.mxu0 0.0
      %2674 = vmatpush1.xpose.msra.mxu0 0.0
      %2675 = vmatprep.subr.mxu0 0.0
      %2676 = vmatpush1.xpose.msra.mxu0 0.0
      %2677 = vmatprep.subr.mxu0 0.0
      %2678 = vmatpush1.xpose.msra.mxu0 0.0
      %2679 = vmatprep.subr.mxu0 0.0
      %2680 = vmatpush1.xpose.msra.mxu0 0.0
      %2681 = vmatprep.subr.mxu0 0.0
      %2682 = vmatpush1.xpose.msra.mxu0 0.0
      %2683 = vmatprep.subr.mxu0 0.0
      %2684 = vmatpush1.xpose.msra.mxu0 0.0
      %2685 = vmatprep.subr.mxu0 0.0
      %2686 = vmatpush1.xpose.msra.mxu0 0.0
      %2687 = vmatprep.subr.mxu0 0.0
      %2688 = vmatpush1.xpose.msra.mxu0 0.0
      %2689 = vmatprep.subr.mxu0 0.0
      %2690 = vmatpush1.xpose.msra.mxu0 0.0
      %2691 = vmatprep.subr.mxu0 0.0
      %2692 = vmatpush1.xpose.msra.mxu0 0.0
      %2693 = vmatprep.subr.mxu0 0.0
      %2694 = vmatpush1.xpose.msra.mxu0 0.0
      %2695 = vmatprep.subr.mxu0 0.0
      %2696 = vmatpush1.xpose.msra.mxu0 0.0
      %2697 = vmatprep.subr.mxu0 0.0
      %2698 = vmatpush1.xpose.msra.mxu0 0.0
      %2699 = vmatprep.subr.mxu0 0.0
      %2700 = vmatpush1.xpose.msra.mxu0 0.0
      %2701 = vmatprep.subr.mxu0 0.0
      %2702 = vmatpush1.xpose.msra.mxu0 0.0
      %2703 = vmatprep.subr.mxu0 0.0
      %2704 = vmatpush1.xpose.msra.mxu0 0.0
      %2705 = vmatprep.subr.mxu0 0.0
      %2706 = vmatpush1.xpose.msra.mxu0 0.0
      %2707 = vmatprep.subr.mxu0 0.0
      %2708 = vmatpush1.xpose.msra.mxu0 0.0
      %2709 = vmatprep.subr.mxu0 0.0
      %2710 = vmatpush1.xpose.msra.mxu0 0.0
      %2711 = vmatprep.subr.mxu0 0.0
      %2712 = vmatpush1.xpose.msra.mxu0 0.0
      %2713 = vmatprep.subr.mxu0 0.0
      %2714 = vmatpush1.xpose.msra.mxu0 0.0
      %2715 = vmatprep.subr.mxu0 0.0
      %2716 = vmatpush1.xpose.msra.mxu0 0.0
      %2717 = vmatprep.subr.mxu0 0.0
      %2718 = vmatpush1.xpose.msra.mxu0 0.0
      %2719 = vmatprep.subr.mxu0 0.0
      %2720 = vmatpush1.xpose.msra.mxu0 0.0
      %2721 = vmatprep.subr.mxu0 0.0
      %2722 = vmatpush1.xpose.msra.mxu0 0.0
      %2723 = vmatprep.subr.mxu0 0.0
      %2724 = vmatpush1.xpose.msra.mxu0 0.0
      %2725 = vmatprep.subr.mxu0 0.0
      %2726 = vmatpush1.xpose.msra.mxu0 0.0
      %2727 = vmatprep.subr.mxu0 0.0
      %2728 = vmatpush1.xpose.msra.mxu0 0.0
      %2729 = vmatprep.subr.mxu0 0.0
      %2730 = vmatpush1.xpose.msra.mxu0 0.0
      %2731 = vmatprep.mubr.f32.mxu0 0.0
      %2732 = vmatmul.mubr.f32.gmra.mrb[0].mxu0 %v2662
      %v2733 = vpop.f32.mrb[0].mxu0
      %v2734 = vadd.f32 0.0, %v2733
      %v2735 = vpop.f32.mrb[0].mxu0
      %2736 = vdwg.mxu0
      %v2737 = vpack.c.bf16 %v2582, %v2506
      %v2738 = vpack.c.bf16 %v2734, %v2658
      %2739 = vxpose.xlu0.c.b16.start [1/8] %v2737, 128
      %2740 = vxpose.xlu0.c.b16.cont [2/8] %v2738, 128
      %2741 = vxpose.xlu0.c.b16.cont [3/8] 0, 128
      %2742 = vxpose.xlu0.c.b16.cont [4/8] 0, 128
      %2743 = vxpose.xlu0.c.b16.cont [5/8] 0, 128
      %2744 = vxpose.xlu0.c.b16.cont [6/8] 0, 128
      %2745 = vxpose.xlu0.c.b16.cont [7/8] 0, 128
      %2746 = vxpose.xlu0.c.b16.end [8/8] 0, 128
      %v2747 = vpop.trf.xlu0
      %v2748 = vpop.trf.xlu0
      %v2749 = vpop.trf.xlu0
      %v2750 = vpop.trf.xlu0
      %v2751 = vpop.trf.xlu0
      %v2752 = vpop.trf.xlu0
      %v2753 = vpop.trf.xlu0
      %v2754 = vpop.trf.xlu0
      %v2756 = vsel %vm914, %v2747, 0
      %2758 = vmatprep.subr.bf16.mxu0 0
      %2759 = vmatpush1.bf16.msra.mxu0 %v1824
      %2760 = vmatprep.subr.bf16.mxu0 0
      %2761 = vmatpush1.bf16.msra.mxu0 %v1825
      %2762 = vmatprep.subr.bf16.mxu0 0
      %2763 = vmatpush1.bf16.msra.mxu0 0
      %2764 = vmatprep.subr.bf16.mxu0 0
      %2765 = vmatpush1.bf16.msra.mxu0 0
      %2766 = vmatprep.subr.bf16.mxu0 0
      %2767 = vmatpush1.bf16.msra.mxu0 0
      %2768 = vmatprep.subr.bf16.mxu0 0
      %2769 = vmatpush1.bf16.msra.mxu0 0
      %2770 = vmatprep.subr.bf16.mxu0 0
      %2771 = vmatpush1.bf16.msra.mxu0 0
      %2772 = vmatprep.subr.bf16.mxu0 0
      %2773 = vmatpush1.bf16.msra.mxu0 0
      %2774 = vmatprep.subr.bf16.mxu0 0
      %2775 = vmatpush1.bf16.msra.mxu0 0
      %2776 = vmatprep.subr.bf16.mxu0 0
      %2777 = vmatpush1.bf16.msra.mxu0 0
      %2778 = vmatprep.subr.bf16.mxu0 0
      %2779 = vmatpush1.bf16.msra.mxu0 0
      %2780 = vmatprep.subr.bf16.mxu0 0
      %2781 = vmatpush1.bf16.msra.mxu0 0
      %2782 = vmatprep.subr.bf16.mxu0 0
      %2783 = vmatpush1.bf16.msra.mxu0 0
      %2784 = vmatprep.subr.bf16.mxu0 0
      %2785 = vmatpush1.bf16.msra.mxu0 0
      %2786 = vmatprep.subr.bf16.mxu0 0
      %2787 = vmatpush1.bf16.msra.mxu0 0
      %2788 = vmatprep.subr.bf16.mxu0 0
      %2789 = vmatpush1.bf16.msra.mxu0 0
      %2790 = vmatprep.mubr.bf16.mxu0 0
      %2791 = vmatmul.mubr.bf16.gmra.mrb[0].mxu0 %v2756
      %v2792 = vpop.f32.mrb[0].mxu0
      %v2793 = vadd.f32 0.0, %v2792
      %v2794 = vpop.f32.mrb[0].mxu0
      %v2795 = vpop.f32.mrb[0].mxu0
      %v2796 = vpop.f32.mrb[0].mxu0
      %2797 = vdwg.mxu0
      %v2798 = vld [vmem:[%s691] sm:$0x1]
      %v2800 = vlaneseq
      %v2801 = vshrl.u32 %v2800, 7
      %v2802 = vsub.s32 0, %v2801
      %v2803 = vrot.slane %v2798, %v2802
      %v2805 = vadd.f32 %v1866, %v2803
      %v2806 = vadd.f32 %v2793, %v2803
      %v2807 = vadd.f32 %v780, %v2805
      %v2808 = vadd.f32 %v781, %v2806
      %v2809 = vld [vmem:[%s694] sm:$0x1]
      %v2810 = vld [vmem:[%s697] sm:$0x1]
      %v2811 = vsel %vm914, %v2807, 0.0
      %2812 = vadd.xlane.f32.xlu0 %v2811
      %v2813 = vpop.xlane.xlu0 %2812
      %v2814 = vsel %vm914, %v2808, 0.0
      %2815 = vadd.xlane.f32.xlu0 %v2814
      %v2816 = vpop.xlane.xlu0 %2815
      %v2817 = vrcp.pop 32.0
      %v2818 = vmul.f32 %v2813, %v2817
      %v2819 = vmul.f32 %v2816, %v2817
      %v2820 = vsub.f32 %v2807, %v2818
      %v2821 = vsub.f32 %v2808, %v2819
      %v2822 = vmul.f32 %v2820, %v2820
      %v2823 = vmul.f32 %v2821, %v2821
      %v2824 = vsel %vm914, %v2822, 0.0
      %2825 = vadd.xlane.f32.xlu0 %v2824
      %v2826 = vpop.xlane.xlu0 %2825
      %v2827 = vsel %vm914, %v2823, 0.0
      %2828 = vadd.xlane.f32.xlu0 %v2827
      %v2829 = vpop.xlane.xlu0 %2828
      %v2830 = vmul.f32 %v2826, %v2817
      %v2831 = vmul.f32 %v2829, %v2817
      %v2832 = vadd.f32 %v2830, 1e-12
      %v2833 = vadd.f32 %v2831, 1e-12
      %v2834 = vrsqrt.pop %v2832
      %v2835 = vrsqrt.pop %v2833
      %v2836 = vmul.f32 %v2820, %v2834
      %v2837 = vmul.f32 %v2821, %v2835
      %v2839 = vlaneseq
      %v2840 = vshrl.u32 %v2839, 7
      %v2841 = vsub.s32 0, %v2840
      %v2842 = vrot.slane %v2809, %v2841
      %v2844 = vmul.f32 %v2836, %v2842
      %v2845 = vmul.f32 %v2837, %v2842
      %v2847 = vlaneseq
      %v2848 = vshrl.u32 %v2847, 7
      %v2849 = vsub.s32 0, %v2848
      %v2850 = vrot.slane %v2810, %v2849
      %v2852 = vadd.f32 %v2844, %v2850
      %v2853 = vadd.f32 %v2845, %v2850
      %v2854 = vpack.c.bf16 %v2853, %v2852
      %v2855 = vld [vmem:[%s705] sm:$0x1]
      %v2857 = vlaneseq
      %v2858 = vshrl.u32 %v2857, 7
      %v2859 = vsub.s32 0, %v2858
      %v2860 = vrot.slane %v2855, %v2859
      %v2866 = vunpack.c.l.b16 %v811
      %v2867 = vunpack.c.l.b16 %v812
      %v2868 = vunpack.c.l.b16 %v813
      %v2869 = vunpack.c.l.b16 %v814
      %v2870 = vpack.c.b16 %v2867, %v2866
      %v2871 = vpack.c.b16 %v2869, %v2868
      %v2875 = vsel %vm914, %v2854, 0
      %2877 = vmatprep.subr.bf16.mxu0 0
      %2878 = vmatpush1.bf16.msra.mxu0 %v2870
      %2879 = vmatprep.subr.bf16.mxu0 0
      %2880 = vmatpush1.bf16.msra.mxu0 %v2871
      %2881 = vmatprep.subr.bf16.mxu0 0
      %2882 = vmatpush1.bf16.msra.mxu0 0
      %2883 = vmatprep.subr.bf16.mxu0 0
      %2884 = vmatpush1.bf16.msra.mxu0 0
      %2885 = vmatprep.subr.bf16.mxu0 0
      %2886 = vmatpush1.bf16.msra.mxu0 0
      %2887 = vmatprep.subr.bf16.mxu0 0
      %2888 = vmatpush1.bf16.msra.mxu0 0
      %2889 = vmatprep.subr.bf16.mxu0 0
      %2890 = vmatpush1.bf16.msra.mxu0 0
      %2891 = vmatprep.subr.bf16.mxu0 0
      %2892 = vmatpush1.bf16.msra.mxu0 0
      %2893 = vmatprep.subr.bf16.mxu0 0
      %2894 = vmatpush1.bf16.msra.mxu0 0
      %2895 = vmatprep.subr.bf16.mxu0 0
      %2896 = vmatpush1.bf16.msra.mxu0 0
      %2897 = vmatprep.subr.bf16.mxu0 0
      %2898 = vmatpush1.bf16.msra.mxu0 0
      %2899 = vmatprep.subr.bf16.mxu0 0
      %2900 = vmatpush1.bf16.msra.mxu0 0
      %2901 = vmatprep.subr.bf16.mxu0 0
      %2902 = vmatpush1.bf16.msra.mxu0 0
      %2903 = vmatprep.subr.bf16.mxu0 0
      %2904 = vmatpush1.bf16.msra.mxu0 0
      %2905 = vmatprep.subr.bf16.mxu0 0
      %2906 = vmatpush1.bf16.msra.mxu0 0
      %2907 = vmatprep.subr.bf16.mxu0 0
      %2908 = vmatpush1.bf16.msra.mxu0 0
      %2909 = vmatprep.mubr.bf16.mxu0 0
      %2910 = vmatmul.mubr.bf16.gmra.mrb[0].mxu0 %v2875
      %v2911 = vpop.f32.mrb[0].mxu0
      %v2912 = vadd.f32 %v2860, %v2911
      %v2913 = vpop.f32.mrb[0].mxu0
      %v2914 = vpop.f32.mrb[0].mxu0
      %v2915 = vadd.f32 %v2860, %v2914
      %v2916 = vpop.f32.mrb[0].mxu0
      %2917 = vdwg.mxu0
      %v2918 = vmul.f32 %v2912, 0.5
      %v2919 = vmul.f32 %v2915, 0.5
      %v2920 = vmul.f32 %v2912, 0.044715
      %v2921 = vmul.f32 %v2915, 0.044715
      %v2922 = vmul.f32 %v2920, %v2912
      %v2923 = vmul.f32 %v2921, %v2915
      %v2924 = vmul.f32 %v2922, %v2912
      %v2925 = vmul.f32 %v2923, %v2915
      %v2926 = vadd.f32 %v2912, %v2924
      %v2927 = vadd.f32 %v2915, %v2925
      %v2928 = vmul.f32 %v2926, 0.7978846
      %v2929 = vmul.f32 %v2927, 0.7978846
      %v2930 = vtanh.pop %v2928
      %v2931 = vtanh.pop %v2929
      %v2932 = vadd.f32 %v2930, 1.0
      %v2933 = vadd.f32 %v2931, 1.0
      %v2934 = vmul.f32 %v2918, %v2932
      %v2935 = vmul.f32 %v2919, %v2933
      %v2936 = vpack.c.bf16 %v2935, %v2934
      %v2937 = vld [vmem:[%s713] sm:$0x1]
      %v2939 = vlaneseq
      %v2940 = vshrl.u32 %v2939, 7
      %v2941 = vsub.s32 0, %v2940
      %v2942 = vrot.slane %v2937, %v2941
      %v2952 = vunpack.c.l.b16 %v815
      %v2953 = vunpack.c.l.b16 %v816
      %v2954 = vunpack.c.l.b16 %v817
      %v2955 = vunpack.c.l.b16 %v818
      %v2956 = vunpack.c.l.b16 %v819
      %v2957 = vunpack.c.l.b16 %v820
      %v2958 = vunpack.c.l.b16 %v821
      %v2959 = vunpack.c.l.b16 %v822
      %v2960 = vpack.c.b16 %v2953, %v2952
      %v2961 = vpack.c.b16 %v2955, %v2954
      %v2962 = vpack.c.b16 %v2957, %v2956
      %v2963 = vpack.c.b16 %v2959, %v2958
      %vm2968 = vcmask 523264
      %v2970 = vsel %vm2968, %v2936, 0
      %2972 = vmatprep.subr.bf16.mxu0 0
      %2973 = vmatpush1.bf16.msra.mxu0 %v2960
      %2974 = vmatprep.subr.bf16.mxu0 0
      %2975 = vmatpush1.bf16.msra.mxu0 %v2961
      %2976 = vmatprep.subr.bf16.mxu0 0
      %2977 = vmatpush1.bf16.msra.mxu0 %v2962
      %2978 = vmatprep.subr.bf16.mxu0 0
      %2979 = vmatpush1.bf16.msra.mxu0 %v2963
      %2980 = vmatprep.subr.bf16.mxu0 0
      %2981 = vmatpush1.bf16.msra.mxu0 0
      %2982 = vmatprep.subr.bf16.mxu0 0
      %2983 = vmatpush1.bf16.msra.mxu0 0
      %2984 = vmatprep.subr.bf16.mxu0 0
      %2985 = vmatpush1.bf16.msra.mxu0 0
      %2986 = vmatprep.subr.bf16.mxu0 0
      %2987 = vmatpush1.bf16.msra.mxu0 0
      %2988 = vmatprep.subr.bf16.mxu0 0
      %2989 = vmatpush1.bf16.msra.mxu0 0
      %2990 = vmatprep.subr.bf16.mxu0 0
      %2991 = vmatpush1.bf16.msra.mxu0 0
      %2992 = vmatprep.subr.bf16.mxu0 0
      %2993 = vmatpush1.bf16.msra.mxu0 0
      %2994 = vmatprep.subr.bf16.mxu0 0
      %2995 = vmatpush1.bf16.msra.mxu0 0
      %2996 = vmatprep.subr.bf16.mxu0 0
      %2997 = vmatpush1.bf16.msra.mxu0 0
      %2998 = vmatprep.subr.bf16.mxu0 0
      %2999 = vmatpush1.bf16.msra.mxu0 0
      %3000 = vmatprep.subr.bf16.mxu0 0
      %3001 = vmatpush1.bf16.msra.mxu0 0
      %3002 = vmatprep.subr.bf16.mxu0 0
      %3003 = vmatpush1.bf16.msra.mxu0 0
      %3004 = vmatprep.mubr.bf16.mxu0 0
      %3005 = vmatmul.mubr.bf16.gmra.mrb[0].mxu0 %v2970
      %v3006 = vpop.f32.mrb[0].mxu0
      %v3007 = vadd.f32 %v2942, %v3006
      %v3008 = vpop.f32.mrb[0].mxu0
      %v3009 = vpop.f32.mrb[0].mxu0
      %v3010 = vadd.f32 %v2942, %v3009
      %v3011 = vpop.f32.mrb[0].mxu0
      %3012 = vdwg.mxu0
      %v3013 = vadd.f32 %v2852, %v3007
      %v3014 = vadd.f32 %v2853, %v3010
      %v3015 = vld [vmem:[%s716] sm:$0x1]
      %v3016 = vld [vmem:[%s719] sm:$0x1]
      %v3017 = vsel %vm914, %v3013, 0.0
      %3018 = vadd.xlane.f32.xlu0 %v3017
      %v3019 = vpop.xlane.xlu0 %3018
      %v3020 = vsel %vm914, %v3014, 0.0
      %3021 = vadd.xlane.f32.xlu0 %v3020
      %v3022 = vpop.xlane.xlu0 %3021
      %v3023 = vmul.f32 %v3019, %v2817
      %v3024 = vmul.f32 %v3022, %v2817
      %v3025 = vsub.f32 %v3013, %v3023
      %v3026 = vsub.f32 %v3014, %v3024
      %v3027 = vmul.f32 %v3025, %v3025
      %v3028 = vmul.f32 %v3026, %v3026
      %v3029 = vsel %vm914, %v3027, 0.0
      %3030 = vadd.xlane.f32.xlu0 %v3029
      %v3031 = vpop.xlane.xlu0 %3030
      %v3032 = vsel %vm914, %v3028, 0.0
      %3033 = vadd.xlane.f32.xlu0 %v3032
      %v3034 = vpop.xlane.xlu0 %3033
      %v3035 = vmul.f32 %v3031, %v2817
      %v3036 = vmul.f32 %v3034, %v2817
      %v3037 = vadd.f32 %v3035, 1e-12
      %v3038 = vadd.f32 %v3036, 1e-12
      %v3039 = vrsqrt.pop %v3037
      %v3040 = vrsqrt.pop %v3038
      %v3041 = vmul.f32 %v3025, %v3039
      %v3042 = vmul.f32 %v3026, %v3040
      %v3044 = vlaneseq
      %v3045 = vshrl.u32 %v3044, 7
      %v3046 = vsub.s32 0, %v3045
      %v3047 = vrot.slane %v3015, %v3046
      %v3049 = vmul.f32 %v3041, %v3047
      %v3050 = vmul.f32 %v3042, %v3047
      %v3052 = vlaneseq
      %v3053 = vshrl.u32 %v3052, 7
      %v3054 = vsub.s32 0, %v3053
      %v3055 = vrot.slane %v3016, %v3054
      %v3057 = vadd.f32 %v3049, %v3055
      %v3058 = vadd.f32 %v3050, %v3055
      %3059 = vst.msk [vmem:[%s17] sm:$0xff] %vm914, %v3057
      %3060 = vst.msk [vmem:[%s17 + $0x8] sm:$0xff] %vm914, %v3058
      %p3061 = scmp.lt.s32.totalorder %s29, 1
      %s3062 = scalar_select %p3061, %s29, 1
      %s3063 = smul.addr %s3062, 8
      %s3064 = smul.addr %s3063, 8
      %s3065 = scalar_lea.vmem %s16, %s3064
      // Predicated region
      $region89: #{bert_for_text_classification.1} parent=83 // pred_check
        %p3066 = pneg %p443
      $region90: #{bert_for_text_classification.1} parent=83 // pred_check_branch
        %3068 = sbr.rel (%p3066) target = $region92
      $region91: #{bert_for_text_classification.1} parent=83 // pred_region
        _
      $region92: #{bert_for_text_classification.1} parent=83 // pred_fallthru
        _
      // Predicated region
      $region93: #{bert_for_text_classification.1} parent=83 // pred_check
        %p3069 = pneg %p464
      $region94: #{bert_for_text_classification.1} parent=83 // pred_check_branch
        %3071 = sbr.rel (%p3069) target = $region96
      $region95: #{bert_for_text_classification.1} parent=83 // pred_region
        _
      $region96: #{bert_for_text_classification.1} parent=83 // pred_fallthru
        _
      // Predicated region
      $region97: #{bert_for_text_classification.1} parent=83 // pred_check
        %p3072 = pneg %p464
      $region98: #{bert_for_text_classification.1} parent=83 // pred_check_branch
        %3074 = sbr.rel (%p3072) target = $region100
      $region99: #{bert_for_text_classification.1} parent=83 // pred_region
        _
      $region100: #{bert_for_text_classification.1} parent=83 // pred_fallthru
        _
    $region84: #{bert_for_text_classification.1} parent=5 // pred_fallthru
      _
    %p3075 = scmp.le.s32.totalorder 2, %s24
    // Predicated region
    $region101: #{bert_for_text_classification.1} parent=5 // pred_check
      %p3076 = pneg %p3075
    $region102: #{bert_for_text_classification.1} parent=5 // pred_check_branch
      %3078 = sbr.rel (%p3076) target = $region104
    $region103: #{bert_for_text_classification.1} parent=5 // pred_region
      %s3079 = ssub.s32 %s24, 2
      // Predicated region
      $region105: #{bert_for_text_classification.1} parent=103 // pred_check
        %p3080 = pneg %p449
      $region106: #{bert_for_text_classification.1} parent=103 // pred_check_branch
        %3082 = sbr.rel (%p3080) target = $region108
      $region107: #{bert_for_text_classification.1} parent=103 // pred_region
        %p3083 = scmp.lt.s32.totalorder %s30, 1
        %s3084 = scalar_select %p3083, %s30, 1
        %s3085 = smul.addr %s3084, 8
        %s3086 = smul.addr %s3085, 8
        %s3087 = scalar_lea.vmem %s16, %s3086
      $region108: #{bert_for_text_classification.1} parent=103 // pred_fallthru
        _
    $region104: #{bert_for_text_classification.1} parent=5 // pred_fallthru
      _
  $region6: #{bert_for_text_classification.1} parent=0 // loop_footer
    %s28 = sadd.s32 1, %s24
  $region7: #{bert_for_text_classification.1} parent=0 // loop_footer_branch
    %23 = sbr.rel target = $region3
  $region8: #{bert_for_text_classification.1} parent=0 // loop_exit
    _

</llo_original>
